<compile_context>
chip_gen: v5e
topology: v5e:2x2
jax: 0.10.0
libtpu: 0.0.40
codegen_flags: <defaults>
</compile_context>

<pallas_src>
import numpy as np

import jax
import jax.numpy as jnp
from jax import lax
from jax.experimental import pallas as pl
from jax.experimental.pallas import tpu as pltpu


# ---------------------------------------------------------------------------
# Static layer configuration (spatial chain: 100 -> 50 -> 25 -> 12 -> 6 -> 3 -> 1)
# ---------------------------------------------------------------------------
_LAYER_SPECS = [(12, 8), (8, 16), (16, 16), (16, 24), (24, 24), (24, 32)]  # (Cin, Cout)
_CIN8 = [16, 8, 16, 16, 24, 24]          # Cin rounded up to a multiple of 8 sublanes

# Per conv+pool layer: (W, Cin8, Cout, Hp, Wp)   (H == W at every stage)
_POOL_LAYERS = (
    (100, 16, 8, 50, 50),
    (50, 8, 16, 25, 25),
    (25, 16, 16, 12, 12),
    (12, 16, 24, 6, 6),
    (6, 24, 24, 3, 3),
)
# Padded VMEM activation buffers for the outputs of layers 1..5: (Hp+2, Cout, Wp+2)
_BUF_SHAPES = ((52, 8, 52), (27, 16, 27), (14, 16, 14), (8, 24, 8), (5, 24, 5))

_IN_H, _IN_C, _IN_W = 102, 16, 102       # padded kernel input block (H+2, Cin8, W+2)
_BN_EPS = 1e-5


# ---------------------------------------------------------------------------
# In-kernel layer helpers
# ---------------------------------------------------------------------------
def _conv_pool_layer(src_ref, dst_ref, w_ref, aff_ref, sel_ref, r9_ref,
                     W, cin8, cout, Hp, Wp):
  """3x3 'same' conv -> +bias -> ReLU -> folded BN -> 2x2 avg-pool.

  src_ref: (H+2, cin8, W+2)  zero halo rows/cols already present.
  dst_ref: (Hp+2, cout, Wp+2) written with a zero halo for the next layer.
  w_ref:   (cout, 9*cin8) bf16 packed weights (tap-major, channel-minor).
  aff_ref: (cout, 3) f32 = [bias, bn_scale, bn_shift].
  sel_ref: (W, Wp+2) bf16 horizontal pair-average / halo-pad matrix.
  r9_ref:  (>=9*cin8, >=W) f32 im2col scratch.
  """
  wmat = w_ref[...]                       # (cout, 9*cin8) bf16
  bias = aff_ref[:, 0:1]                  # (cout, 1) f32
  scale = aff_ref[:, 1:2]
  shift = aff_ref[:, 2:3]
  sel = sel_ref[...]                      # (W, Wp+2) bf16

  zero_row = jnp.zeros((cout, Wp + 2), dst_ref.dtype)
  dst_ref[0] = zero_row                   # top halo row of the next layer
  dst_ref[Hp + 1] = zero_row              # bottom halo row of the next layer

  def conv_row(h):
    # im2col: stack the nine shifted (cin8, W) tap slabs along sublanes.
    for dy in range(3):
      row = src_ref[h + dy]               # (cin8, W+2)
      for dx in range(3):
        k = dy * 3 + dx
        r9_ref[k * cin8:(k + 1) * cin8, 0:W] = (
            row[:, dx:dx + W].astype(r9_ref.dtype))
    rhs = r9_ref[0:9 * cin8, 0:W].astype(jnp.bfloat16)
    y = jnp.dot(wmat, rhs, preferred_element_type=jnp.float32)   # (cout, W)
    y = y + bias
    y = jnp.maximum(y, 0.0)               # ReLU (before BN, as in the module)
    return y * scale + shift              # folded eval-mode BatchNorm

  def body(hp, carry):
    y0 = conv_row(2 * hp)
    y1 = conv_row(2 * hp + 1)
    avg = (0.5 * (y0 + y1)).astype(jnp.bfloat16)                 # vertical 2-avg
    # horizontal 2-avg + left/right zero halo columns in one small matmul
    pooled = jnp.dot(avg, sel, preferred_element_type=jnp.float32)
    dst_ref[hp + 1] = pooled.astype(dst_ref.dtype)
    return carry

  lax.fori_loop(0, Hp, body, 0)


def _final_conv(src_ref, out_ref, w_ref, aff_ref, r9_ref):
  """conv_6: 3x3 'valid' conv on the 3x3x24 activation -> (32, 1), bias only."""
  cin8 = 24
  for dy in range(3):
    row = src_ref[1 + dy]                 # (24, 5): halo cols at 0 and 4
    for dx in range(3):
      k = dy * 3 + dx
      r9_ref[k * cin8:(k + 1) * cin8, 0:1] = (
          row[:, 1 + dx:2 + dx].astype(r9_ref.dtype))
  rhs = r9_ref[0:9 * cin8, 0:1].astype(jnp.bfloat16)
  y = jnp.dot(w_ref[...], rhs, preferred_element_type=jnp.float32)  # (32, 1)
  out_ref[...] = y + aff_ref[:, 0:1]


def _backbone_kernel(x_ref,
                     w1_ref, w2_ref, w3_ref, w4_ref, w5_ref, w6_ref,
                     a1_ref, a2_ref, a3_ref, a4_ref, a5_ref, a6_ref,
                     s1_ref, s2_ref, s3_ref, s4_ref, s5_ref,
                     out_ref,
                     b1_ref, b2_ref, b3_ref, b4_ref, b5_ref, r9_ref):
  srcs = (x_ref, b1_ref, b2_ref, b3_ref, b4_ref)
  dsts = (b1_ref, b2_ref, b3_ref, b4_ref, b5_ref)
  ws = (w1_ref, w2_ref, w3_ref, w4_ref, w5_ref)
  affs = (a1_ref, a2_ref, a3_ref, a4_ref, a5_ref)
  sels = (s1_ref, s2_ref, s3_ref, s4_ref, s5_ref)
  for i, (W, cin8, cout, Hp, Wp) in enumerate(_POOL_LAYERS):
    _conv_pool_layer(srcs[i], dsts[i], ws[i], affs[i], sels[i], r9_ref,
                     W, cin8, cout, Hp, Wp)
  _final_conv(b5_ref, out_ref, w6_ref, a6_ref, r9_ref)


# ---------------------------------------------------------------------------
# Host-side constants / parameter packing
# ---------------------------------------------------------------------------
def _make_sel(W, Wp):
  """(W, Wp+2) matrix: pooled[:, j+1] = 0.5*(x[:, 2j] + x[:, 2j+1]); cols 0 and
  Wp+1 stay zero so the result already carries the next conv's horizontal halo."""
  sel = np.zeros((W, Wp + 2), np.float32)
  for j in range(Wp):
    sel[2 * j, j + 1] = 0.5
    sel[2 * j + 1, j + 1] = 0.5
  return jnp.asarray(sel, jnp.bfloat16)


def init_params(key):
  """Deterministic synthetic weights in the packed kernel format."""
  params = []
  for idx, (cin, cout) in enumerate(_LAYER_SPECS):
    cin8 = _CIN8[idx]
    k1, k2, k3, k4, k5, k6, key = jax.random.split(key, 7)
    w = jax.random.normal(k1, (cout, cin, 3, 3), jnp.float32) / jnp.sqrt(9.0 * cin)
    b = 0.1 * jax.random.normal(k2, (cout,), jnp.float32)
    if idx < 5:  # conv_1..conv_5 are followed by ReLU -> BatchNorm (eval mode)
      gamma = 1.0 + 0.1 * jax.random.normal(k3, (cout,), jnp.float32)
      beta = 0.1 * jax.random.normal(k4, (cout,), jnp.float32)
      rmean = 0.1 * jax.random.normal(k5, (cout,), jnp.float32)
      rvar = 1.0 + 0.1 * jnp.abs(jax.random.normal(k6, (cout,), jnp.float32))
      scale = gamma / jnp.sqrt(rvar + _BN_EPS)
      shift = beta - rmean * scale
    else:        # conv_6: bias only (bn_6 is unused in the module's forward)
      scale = jnp.ones((cout,), jnp.float32)
      shift = jnp.zeros((cout,), jnp.float32)
    # Pack weights -> (cout, 9*cin8): tap-major (dy*3+dx), channel-minor,
    # zero-padded channels for cin < cin8.
    wp = jnp.zeros((cout, 3, 3, cin8), jnp.float32)
    wp = wp.at[:, :, :, :cin].set(jnp.transpose(w, (0, 2, 3, 1)))
    wpacked = wp.reshape(cout, 9 * cin8).astype(jnp.bfloat16)
    aff = jnp.stack([b, scale, shift], axis=1)   # (cout, 3) f32
    params.append(dict(w=wpacked, aff=aff))
  return params


# ---------------------------------------------------------------------------
# Full forward pass (single fused pallas_call)
# ---------------------------------------------------------------------------
def phase1_line_backbone(x_nchw, params):
  B = x_nchw.shape[0]
  assert x_nchw.shape[1:] == (12, 100, 100)

  # NCHW -> (B, H, C, W): width on lanes, channels on sublanes.  Zero-pad the
  # spatial halo (conv 'same') and the channel dim 12 -> 16; cast to bf16.
  x = jnp.transpose(x_nchw.astype(jnp.float32), (0, 2, 1, 3))
  x = jnp.pad(x, ((0, 0), (1, 1), (0, _IN_C - 12), (1, 1))).astype(jnp.bfloat16)

  sels = [_make_sel(W, Wp) for (W, _, _, _, Wp) in _POOL_LAYERS]

  operands = [x]
  in_specs = [pl.BlockSpec((None, _IN_H, _IN_C, _IN_W), lambda b: (b, 0, 0, 0))]
  for arr in ([p["w"] for p in params] + [p["aff"] for p in params] + sels):
    operands.append(arr)
    in_specs.append(pl.BlockSpec(arr.shape, lambda b, nd=arr.ndim: (0,) * nd))

  scratch_shapes = [pltpu.VMEM(s, jnp.bfloat16) for s in _BUF_SHAPES]
  scratch_shapes.append(pltpu.VMEM((216, 128), jnp.float32))   # shared im2col buf

  out = pl.pallas_call(
      _backbone_kernel,
      out_shape=jax.ShapeDtypeStruct((B, 32, 1), jnp.float32),
      grid=(B,),
      in_specs=in_specs,
      out_specs=pl.BlockSpec((None, 32, 1), lambda b: (b, 0, 0)),
      scratch_shapes=scratch_shapes,
      compiler_params=pltpu.CompilerParams(dimension_semantics=("parallel",)),
  )(*operands)

  return out.reshape(B, 32, 1, 1)          # NCHW (B, 32, 1, 1), like the module


if __name__ == "__main__":
  key = jax.random.PRNGKey(0)
  kx, kp = jax.random.split(key)
  # Spatial size must be 100 (the module asserts it and the valid conv_6 needs
  # the 100 -> 50 -> 25 -> 12 -> 6 -> 3 -> 1 reduction chain); batch kept small.
  x = jax.random.normal(kx, (2, 12, 100, 100), jnp.float32)
  params = init_params(kp)

  fwd = jax.jit(lambda inp: phase1_line_backbone(inp, params))
  out = jax.block_until_ready(fwd(x))

  assert out.shape == (2, 32, 1, 1), out.shape
  assert out.dtype == jnp.float32
  assert bool(jnp.all(jnp.isfinite(out)))
  print("KERNEL_OK")
</pallas_src>

<mosaic_0001>
module attributes {stable_mosaic.version = 11 : i64} {
  func.func @_backbone_kernel(%arg0: i32, %arg1: memref<1x102x16x102xbf16, #tpu.memory_space<vmem>>, %arg2: memref<8x144xbf16, #tpu.memory_space<vmem>>, %arg3: memref<16x72xbf16, #tpu.memory_space<vmem>>, %arg4: memref<16x144xbf16, #tpu.memory_space<vmem>>, %arg5: memref<24x144xbf16, #tpu.memory_space<vmem>>, %arg6: memref<24x216xbf16, #tpu.memory_space<vmem>>, %arg7: memref<32x216xbf16, #tpu.memory_space<vmem>>, %arg8: memref<8x3xf32, #tpu.memory_space<vmem>>, %arg9: memref<16x3xf32, #tpu.memory_space<vmem>>, %arg10: memref<16x3xf32, #tpu.memory_space<vmem>>, %arg11: memref<24x3xf32, #tpu.memory_space<vmem>>, %arg12: memref<24x3xf32, #tpu.memory_space<vmem>>, %arg13: memref<32x3xf32, #tpu.memory_space<vmem>>, %arg14: memref<100x52xbf16, #tpu.memory_space<vmem>>, %arg15: memref<50x27xbf16, #tpu.memory_space<vmem>>, %arg16: memref<25x14xbf16, #tpu.memory_space<vmem>>, %arg17: memref<12x8xbf16, #tpu.memory_space<vmem>>, %arg18: memref<6x5xbf16, #tpu.memory_space<vmem>>, %arg19: memref<1x32x1xf32, #tpu.memory_space<vmem>>, %arg20: memref<52x8x52xbf16, #tpu.memory_space<vmem>>, %arg21: memref<27x16x27xbf16, #tpu.memory_space<vmem>>, %arg22: memref<14x16x14xbf16, #tpu.memory_space<vmem>>, %arg23: memref<8x24x8xbf16, #tpu.memory_space<vmem>>, %arg24: memref<5x24x5xbf16, #tpu.memory_space<vmem>>, %arg25: memref<216x128xf32, #tpu.memory_space<vmem>>) attributes {dimension_semantics = [#tpu.dimension_semantics<parallel>], iteration_bounds = array<i64: 2>, scalar_prefetch = 0 : i64, scratch_operands = 6 : i64, tpu.core_type = #tpu.core_type<tc>, window_params = [{transform_indices = @transform_0, window_bounds = array<i64: 1, 102, 16, 102>}, {pipeline_mode = #tpu.pipeline_mode<synchronous>, transform_indices = @transform_1, window_bounds = array<i64: 8, 144>}, {pipeline_mode = #tpu.pipeline_mode<synchronous>, transform_indices = @transform_2, window_bounds = array<i64: 16, 72>}, {pipeline_mode = #tpu.pipeline_mode<synchronous>, transform_indices = @transform_3, window_bounds = array<i64: 16, 144>}, {pipeline_mode = #tpu.pipeline_mode<synchronous>, transform_indices = @transform_4, window_bounds = array<i64: 24, 144>}, {pipeline_mode = #tpu.pipeline_mode<synchronous>, transform_indices = @transform_5, window_bounds = array<i64: 24, 216>}, {pipeline_mode = #tpu.pipeline_mode<synchronous>, transform_indices = @transform_6, window_bounds = array<i64: 32, 216>}, {pipeline_mode = #tpu.pipeline_mode<synchronous>, transform_indices = @transform_7, window_bounds = array<i64: 8, 3>}, {pipeline_mode = #tpu.pipeline_mode<synchronous>, transform_indices = @transform_8, window_bounds = array<i64: 16, 3>}, {pipeline_mode = #tpu.pipeline_mode<synchronous>, transform_indices = @transform_9, window_bounds = array<i64: 16, 3>}, {pipeline_mode = #tpu.pipeline_mode<synchronous>, transform_indices = @transform_10, window_bounds = array<i64: 24, 3>}, {pipeline_mode = #tpu.pipeline_mode<synchronous>, transform_indices = @transform_11, window_bounds = array<i64: 24, 3>}, {pipeline_mode = #tpu.pipeline_mode<synchronous>, transform_indices = @transform_12, window_bounds = array<i64: 32, 3>}, {pipeline_mode = #tpu.pipeline_mode<synchronous>, transform_indices = @transform_13, window_bounds = array<i64: 100, 52>}, {pipeline_mode = #tpu.pipeline_mode<synchronous>, transform_indices = @transform_14, window_bounds = array<i64: 50, 27>}, {pipeline_mode = #tpu.pipeline_mode<synchronous>, transform_indices = @transform_15, window_bounds = array<i64: 25, 14>}, {pipeline_mode = #tpu.pipeline_mode<synchronous>, transform_indices = @transform_16, window_bounds = array<i64: 12, 8>}, {pipeline_mode = #tpu.pipeline_mode<synchronous>, transform_indices = @transform_17, window_bounds = array<i64: 6, 5>}, {transform_indices = @transform_18, window_bounds = array<i64: 1, 32, 1>}]} {
    %c0 = arith.constant 0 : index
    %c0_0 = arith.constant 0 : index
    %0 = vector.load %arg2[%c0, %c0_0] : memref<8x144xbf16, #tpu.memory_space<vmem>>, vector<8x144xbf16>
    %c0_1 = arith.constant 0 : index
    %c0_2 = arith.constant 0 : index
    %1 = vector.load %arg8[%c0_1, %c0_2] : memref<8x3xf32, #tpu.memory_space<vmem>>, vector<8x1xf32>
    %c0_3 = arith.constant 0 : index
    %c1 = arith.constant 1 : index
    %2 = vector.load %arg8[%c0_3, %c1] : memref<8x3xf32, #tpu.memory_space<vmem>>, vector<8x1xf32>
    %c0_4 = arith.constant 0 : index
    %c2 = arith.constant 2 : index
    %3 = vector.load %arg8[%c0_4, %c2] : memref<8x3xf32, #tpu.memory_space<vmem>>, vector<8x1xf32>
    %c0_5 = arith.constant 0 : index
    %c0_6 = arith.constant 0 : index
    %4 = vector.load %arg14[%c0_5, %c0_6] : memref<100x52xbf16, #tpu.memory_space<vmem>>, vector<100x52xbf16>
    %cst = arith.constant 0.000000e+00 : bf16
    %5 = vector.broadcast %cst : bf16 to vector<8x52xbf16>
    %c0_7 = arith.constant 0 : index
    %c0_8 = arith.constant 0 : index
    %c0_9 = arith.constant 0 : index
    %6 = vector.load %arg20[%c0_7, %c0_8, %c0_9] : memref<52x8x52xbf16, #tpu.memory_space<vmem>>, vector<1x8x52xbf16>
    %7 = vector.shape_cast %6 : vector<1x8x52xbf16> to vector<8x52xbf16>
    %8 = vector.shape_cast %5 : vector<8x52xbf16> to vector<1x8x52xbf16>
    tpu.vector_store %arg20[%c0_7, %c0_8, %c0_9], %8 {strides = array<i32>} : memref<52x8x52xbf16, #tpu.memory_space<vmem>>, vector<1x8x52xbf16>,
    %c51 = arith.constant 51 : index
    %c0_10 = arith.constant 0 : index
    %c0_11 = arith.constant 0 : index
    %9 = vector.load %arg20[%c51, %c0_10, %c0_11] : memref<52x8x52xbf16, #tpu.memory_space<vmem>>, vector<1x8x52xbf16>
    %10 = vector.shape_cast %9 : vector<1x8x52xbf16> to vector<8x52xbf16>
    %11 = vector.shape_cast %5 : vector<8x52xbf16> to vector<1x8x52xbf16>
    tpu.vector_store %arg20[%c51, %c0_10, %c0_11], %11 {strides = array<i32>} : memref<52x8x52xbf16, #tpu.memory_space<vmem>>, vector<1x8x52xbf16>,
    %c0_i32 = arith.constant 0 : i32
    %c50_i32 = arith.constant 50 : i32
    %12 = arith.addi %c0_i32, %c50_i32 : i32
    %c1_i32 = arith.constant 1 : i32
    scf.for %arg26 = %c0_i32 to %12 step %c1_i32  : i32 {
      %c2_i32 = arith.constant 2 : i32
      %107 = arith.muli %c2_i32, %arg26 : i32
      %c0_i32_117 = arith.constant 0 : i32
      %108 = arith.addi %107, %c0_i32_117 : i32
      %c0_118 = arith.constant 0 : index
      %109 = arith.index_cast %108 : i32 to index
      %c0_119 = arith.constant 0 : index
      %c0_120 = arith.constant 0 : index
      %110 = vector.load %arg1[%c0_118, %109, %c0_119, %c0_120] : memref<1x102x16x102xbf16, #tpu.memory_space<vmem>>, vector<1x1x16x102xbf16>
      %111 = vector.shape_cast %110 : vector<1x1x16x102xbf16> to vector<16x102xbf16>
      %112 = vector.extract_strided_slice %111 {offsets = [0, 0], sizes = [16, 100], strides = [1, 1]} : vector<16x102xbf16> to vector<16x100xbf16>
      %113 = arith.extf %112 : vector<16x100xbf16> to vector<16x100xf32>
      %c0_121 = arith.constant 0 : index
      %c0_122 = arith.constant 0 : index
      %114 = vector.load %arg25[%c0_121, %c0_122] : memref<216x128xf32, #tpu.memory_space<vmem>>, vector<16x100xf32>
      tpu.vector_store %arg25[%c0_121, %c0_122], %113 {strides = array<i32>} : memref<216x128xf32, #tpu.memory_space<vmem>>, vector<16x100xf32>,
      %115 = vector.extract_strided_slice %111 {offsets = [0, 1], sizes = [16, 100], strides = [1, 1]} : vector<16x102xbf16> to vector<16x100xbf16>
      %116 = arith.extf %115 : vector<16x100xbf16> to vector<16x100xf32>
      %c16 = arith.constant 16 : index
      %c0_123 = arith.constant 0 : index
      %117 = vector.load %arg25[%c16, %c0_123] : memref<216x128xf32, #tpu.memory_space<vmem>>, vector<16x100xf32>
      tpu.vector_store %arg25[%c16, %c0_123], %116 {strides = array<i32>} : memref<216x128xf32, #tpu.memory_space<vmem>>, vector<16x100xf32>,
      %118 = vector.extract_strided_slice %111 {offsets = [0, 2], sizes = [16, 100], strides = [1, 1]} : vector<16x102xbf16> to vector<16x100xbf16>
      %119 = arith.extf %118 : vector<16x100xbf16> to vector<16x100xf32>
      %c32 = arith.constant 32 : index
      %c0_124 = arith.constant 0 : index
      %120 = vector.load %arg25[%c32, %c0_124] : memref<216x128xf32, #tpu.memory_space<vmem>>, vector<16x100xf32>
      tpu.vector_store %arg25[%c32, %c0_124], %119 {strides = array<i32>} : memref<216x128xf32, #tpu.memory_space<vmem>>, vector<16x100xf32>,
      %c1_i32_125 = arith.constant 1 : i32
      %121 = arith.addi %107, %c1_i32_125 : i32
      %c0_126 = arith.constant 0 : index
      %122 = arith.index_cast %121 : i32 to index
      %c0_127 = arith.constant 0 : index
      %c0_128 = arith.constant 0 : index
      %123 = vector.load %arg1[%c0_126, %122, %c0_127, %c0_128] : memref<1x102x16x102xbf16, #tpu.memory_space<vmem>>, vector<1x1x16x102xbf16>
      %124 = vector.shape_cast %123 : vector<1x1x16x102xbf16> to vector<16x102xbf16>
      %125 = vector.extract_strided_slice %124 {offsets = [0, 0], sizes = [16, 100], strides = [1, 1]} : vector<16x102xbf16> to vector<16x100xbf16>
      %126 = arith.extf %125 : vector<16x100xbf16> to vector<16x100xf32>
      %c48_129 = arith.constant 48 : index
      %c0_130 = arith.constant 0 : index
      %127 = vector.load %arg25[%c48_129, %c0_130] : memref<216x128xf32, #tpu.memory_space<vmem>>, vector<16x100xf32>
      tpu.vector_store %arg25[%c48_129, %c0_130], %126 {strides = array<i32>} : memref<216x128xf32, #tpu.memory_space<vmem>>, vector<16x100xf32>,
      %128 = vector.extract_strided_slice %124 {offsets = [0, 1], sizes = [16, 100], strides = [1, 1]} : vector<16x102xbf16> to vector<16x100xbf16>
      %129 = arith.extf %128 : vector<16x100xbf16> to vector<16x100xf32>
      %c64 = arith.constant 64 : index
      %c0_131 = arith.constant 0 : index
      %130 = vector.load %arg25[%c64, %c0_131] : memref<216x128xf32, #tpu.memory_space<vmem>>, vector<16x100xf32>
      tpu.vector_store %arg25[%c64, %c0_131], %129 {strides = array<i32>} : memref<216x128xf32, #tpu.memory_space<vmem>>, vector<16x100xf32>,
      %131 = vector.extract_strided_slice %124 {offsets = [0, 2], sizes = [16, 100], strides = [1, 1]} : vector<16x102xbf16> to vector<16x100xbf16>
      %132 = arith.extf %131 : vector<16x100xbf16> to vector<16x100xf32>
      %c80 = arith.constant 80 : index
      %c0_132 = arith.constant 0 : index
      %133 = vector.load %arg25[%c80, %c0_132] : memref<216x128xf32, #tpu.memory_space<vmem>>, vector<16x100xf32>
      tpu.vector_store %arg25[%c80, %c0_132], %132 {strides = array<i32>} : memref<216x128xf32, #tpu.memory_space<vmem>>, vector<16x100xf32>,
      %c2_i32_133 = arith.constant 2 : i32
      %134 = arith.addi %107, %c2_i32_133 : i32
      %c0_134 = arith.constant 0 : index
      %135 = arith.index_cast %134 : i32 to index
      %c0_135 = arith.constant 0 : index
      %c0_136 = arith.constant 0 : index
      %136 = vector.load %arg1[%c0_134, %135, %c0_135, %c0_136] : memref<1x102x16x102xbf16, #tpu.memory_space<vmem>>, vector<1x1x16x102xbf16>
      %137 = vector.shape_cast %136 : vector<1x1x16x102xbf16> to vector<16x102xbf16>
      %138 = vector.extract_strided_slice %137 {offsets = [0, 0], sizes = [16, 100], strides = [1, 1]} : vector<16x102xbf16> to vector<16x100xbf16>
      %139 = arith.extf %138 : vector<16x100xbf16> to vector<16x100xf32>
      %c96_137 = arith.constant 96 : index
      %c0_138 = arith.constant 0 : index
      %140 = vector.load %arg25[%c96_137, %c0_138] : memref<216x128xf32, #tpu.memory_space<vmem>>, vector<16x100xf32>
      tpu.vector_store %arg25[%c96_137, %c0_138], %139 {strides = array<i32>} : memref<216x128xf32, #tpu.memory_space<vmem>>, vector<16x100xf32>,
      %141 = vector.extract_strided_slice %137 {offsets = [0, 1], sizes = [16, 100], strides = [1, 1]} : vector<16x102xbf16> to vector<16x100xbf16>
      %142 = arith.extf %141 : vector<16x100xbf16> to vector<16x100xf32>
      %c112 = arith.constant 112 : index
      %c0_139 = arith.constant 0 : index
      %143 = vector.load %arg25[%c112, %c0_139] : memref<216x128xf32, #tpu.memory_space<vmem>>, vector<16x100xf32>
      tpu.vector_store %arg25[%c112, %c0_139], %142 {strides = array<i32>} : memref<216x128xf32, #tpu.memory_space<vmem>>, vector<16x100xf32>,
      %144 = vector.extract_strided_slice %137 {offsets = [0, 2], sizes = [16, 100], strides = [1, 1]} : vector<16x102xbf16> to vector<16x100xbf16>
      %145 = arith.extf %144 : vector<16x100xbf16> to vector<16x100xf32>
      %c128 = arith.constant 128 : index
      %c0_140 = arith.constant 0 : index
      %146 = vector.load %arg25[%c128, %c0_140] : memref<216x128xf32, #tpu.memory_space<vmem>>, vector<16x100xf32>
      tpu.vector_store %arg25[%c128, %c0_140], %145 {strides = array<i32>} : memref<216x128xf32, #tpu.memory_space<vmem>>, vector<16x100xf32>,
      %c0_141 = arith.constant 0 : index
      %c0_142 = arith.constant 0 : index
      %147 = vector.load %arg25[%c0_141, %c0_142] : memref<216x128xf32, #tpu.memory_space<vmem>>, vector<144x100xf32>
      %148 = arith.truncf %147 : vector<144x100xf32> to vector<144x100xbf16>
      %cst_143 = arith.constant dense<0.000000e+00> : vector<8x100xf32>
      %149 = tpu.matmul %0, %148, %cst_143 {dimension_numbers = #tpu.dot_dimension_numbers<[1], [0], [0], [1], [0, 0, 1, 1], [], []>} : vector<8x144xbf16>, vector<144x100xbf16>, vector<8x100xf32> -> vector<8x100xf32>
      %150 = vector.broadcast %1 : vector<8x1xf32> to vector<8x100xf32>
      %151 = arith.addf %149, %150 : vector<8x100xf32>
      %cst_144 = arith.constant 0.000000e+00 : f32
      %152 = vector.broadcast %cst_144 : f32 to vector<8x100xf32>
      %153 = arith.maximumf %151, %152 : vector<8x100xf32>
      %154 = vector.broadcast %2 : vector<8x1xf32> to vector<8x100xf32>
      %155 = arith.mulf %153, %154 : vector<8x100xf32>
      %156 = vector.broadcast %3 : vector<8x1xf32> to vector<8x100xf32>
      %157 = arith.addf %155, %156 : vector<8x100xf32>
      %c2_i32_145 = arith.constant 2 : i32
      %158 = arith.muli %c2_i32_145, %arg26 : i32
      %c1_i32_146 = arith.constant 1 : i32
      %159 = arith.addi %158, %c1_i32_146 : i32
      %c0_i32_147 = arith.constant 0 : i32
      %160 = arith.addi %159, %c0_i32_147 : i32
      %c0_148 = arith.constant 0 : index
      %161 = arith.index_cast %160 : i32 to index
      %c0_149 = arith.constant 0 : index
      %c0_150 = arith.constant 0 : index
      %162 = vector.load %arg1[%c0_148, %161, %c0_149, %c0_150] : memref<1x102x16x102xbf16, #tpu.memory_space<vmem>>, vector<1x1x16x102xbf16>
      %163 = vector.shape_cast %162 : vector<1x1x16x102xbf16> to vector<16x102xbf16>
      %164 = vector.extract_strided_slice %163 {offsets = [0, 0], sizes = [16, 100], strides = [1, 1]} : vector<16x102xbf16> to vector<16x100xbf16>
      %165 = arith.extf %164 : vector<16x100xbf16> to vector<16x100xf32>
      %c0_151 = arith.constant 0 : index
      %c0_152 = arith.constant 0 : index
      %166 = vector.load %arg25[%c0_151, %c0_152] : memref<216x128xf32, #tpu.memory_space<vmem>>, vector<16x100xf32>
      tpu.vector_store %arg25[%c0_151, %c0_152], %165 {strides = array<i32>} : memref<216x128xf32, #tpu.memory_space<vmem>>, vector<16x100xf32>,
      %167 = vector.extract_strided_slice %163 {offsets = [0, 1], sizes = [16, 100], strides = [1, 1]} : vector<16x102xbf16> to vector<16x100xbf16>
      %168 = arith.extf %167 : vector<16x100xbf16> to vector<16x100xf32>
      %c16_153 = arith.constant 16 : index
      %c0_154 = arith.constant 0 : index
      %169 = vector.load %arg25[%c16_153, %c0_154] : memref<216x128xf32, #tpu.memory_space<vmem>>, vector<16x100xf32>
      tpu.vector_store %arg25[%c16_153, %c0_154], %168 {strides = array<i32>} : memref<216x128xf32, #tpu.memory_space<vmem>>, vector<16x100xf32>,
      %170 = vector.extract_strided_slice %163 {offsets = [0, 2], sizes = [16, 100], strides = [1, 1]} : vector<16x102xbf16> to vector<16x100xbf16>
      %171 = arith.extf %170 : vector<16x100xbf16> to vector<16x100xf32>
      %c32_155 = arith.constant 32 : index
      %c0_156 = arith.constant 0 : index
      %172 = vector.load %arg25[%c32_155, %c0_156] : memref<216x128xf32, #tpu.memory_space<vmem>>, vector<16x100xf32>
      tpu.vector_store %arg25[%c32_155, %c0_156], %171 {strides = array<i32>} : memref<216x128xf32, #tpu.memory_space<vmem>>, vector<16x100xf32>,
      %c1_i32_157 = arith.constant 1 : i32
      %173 = arith.addi %159, %c1_i32_157 : i32
      %c0_158 = arith.constant 0 : index
      %174 = arith.index_cast %173 : i32 to index
      %c0_159 = arith.constant 0 : index
      %c0_160 = arith.constant 0 : index
      %175 = vector.load %arg1[%c0_158, %174, %c0_159, %c0_160] : memref<1x102x16x102xbf16, #tpu.memory_space<vmem>>, vector<1x1x16x102xbf16>
      %176 = vector.shape_cast %175 : vector<1x1x16x102xbf16> to vector<16x102xbf16>
      %177 = vector.extract_strided_slice %176 {offsets = [0, 0], sizes = [16, 100], strides = [1, 1]} : vector<16x102xbf16> to vector<16x100xbf16>
      %178 = arith.extf %177 : vector<16x100xbf16> to vector<16x100xf32>
      %c48_161 = arith.constant 48 : index
      %c0_162 = arith.constant 0 : index
      %179 = vector.load %arg25[%c48_161, %c0_162] : memref<216x128xf32, #tpu.memory_space<vmem>>, vector<16x100xf32>
      tpu.vector_store %arg25[%c48_161, %c0_162], %178 {strides = array<i32>} : memref<216x128xf32, #tpu.memory_space<vmem>>, vector<16x100xf32>,
      %180 = vector.extract_strided_slice %176 {offsets = [0, 1], sizes = [16, 100], strides = [1, 1]} : vector<16x102xbf16> to vector<16x100xbf16>
      %181 = arith.extf %180 : vector<16x100xbf16> to vector<16x100xf32>
      %c64_163 = arith.constant 64 : index
      %c0_164 = arith.constant 0 : index
      %182 = vector.load %arg25[%c64_163, %c0_164] : memref<216x128xf32, #tpu.memory_space<vmem>>, vector<16x100xf32>
      tpu.vector_store %arg25[%c64_163, %c0_164], %181 {strides = array<i32>} : memref<216x128xf32, #tpu.memory_space<vmem>>, vector<16x100xf32>,
      %183 = vector.extract_strided_slice %176 {offsets = [0, 2], sizes = [16, 100], strides = [1, 1]} : vector<16x102xbf16> to vector<16x100xbf16>
      %184 = arith.extf %183 : vector<16x100xbf16> to vector<16x100xf32>
      %c80_165 = arith.constant 80 : index
      %c0_166 = arith.constant 0 : index
      %185 = vector.load %arg25[%c80_165, %c0_166] : memref<216x128xf32, #tpu.memory_space<vmem>>, vector<16x100xf32>
      tpu.vector_store %arg25[%c80_165, %c0_166], %184 {strides = array<i32>} : memref<216x128xf32, #tpu.memory_space<vmem>>, vector<16x100xf32>,
      %c2_i32_167 = arith.constant 2 : i32
      %186 = arith.addi %159, %c2_i32_167 : i32
      %c0_168 = arith.constant 0 : index
      %187 = arith.index_cast %186 : i32 to index
      %c0_169 = arith.constant 0 : index
      %c0_170 = arith.constant 0 : index
      %188 = vector.load %arg1[%c0_168, %187, %c0_169, %c0_170] : memref<1x102x16x102xbf16, #tpu.memory_space<vmem>>, vector<1x1x16x102xbf16>
      %189 = vector.shape_cast %188 : vector<1x1x16x102xbf16> to vector<16x102xbf16>
      %190 = vector.extract_strided_slice %189 {offsets = [0, 0], sizes = [16, 100], strides = [1, 1]} : vector<16x102xbf16> to vector<16x100xbf16>
      %191 = arith.extf %190 : vector<16x100xbf16> to vector<16x100xf32>
      %c96_171 = arith.constant 96 : index
      %c0_172 = arith.constant 0 : index
      %192 = vector.load %arg25[%c96_171, %c0_172] : memref<216x128xf32, #tpu.memory_space<vmem>>, vector<16x100xf32>
      tpu.vector_store %arg25[%c96_171, %c0_172], %191 {strides = array<i32>} : memref<216x128xf32, #tpu.memory_space<vmem>>, vector<16x100xf32>,
      %193 = vector.extract_strided_slice %189 {offsets = [0, 1], sizes = [16, 100], strides = [1, 1]} : vector<16x102xbf16> to vector<16x100xbf16>
      %194 = arith.extf %193 : vector<16x100xbf16> to vector<16x100xf32>
      %c112_173 = arith.constant 112 : index
      %c0_174 = arith.constant 0 : index
      %195 = vector.load %arg25[%c112_173, %c0_174] : memref<216x128xf32, #tpu.memory_space<vmem>>, vector<16x100xf32>
      tpu.vector_store %arg25[%c112_173, %c0_174], %194 {strides = array<i32>} : memref<216x128xf32, #tpu.memory_space<vmem>>, vector<16x100xf32>,
      %196 = vector.extract_strided_slice %189 {offsets = [0, 2], sizes = [16, 100], strides = [1, 1]} : vector<16x102xbf16> to vector<16x100xbf16>
      %197 = arith.extf %196 : vector<16x100xbf16> to vector<16x100xf32>
      %c128_175 = arith.constant 128 : index
      %c0_176 = arith.constant 0 : index
      %198 = vector.load %arg25[%c128_175, %c0_176] : memref<216x128xf32, #tpu.memory_space<vmem>>, vector<16x100xf32>
      tpu.vector_store %arg25[%c128_175, %c0_176], %197 {strides = array<i32>} : memref<216x128xf32, #tpu.memory_space<vmem>>, vector<16x100xf32>,
      %c0_177 = arith.constant 0 : index
      %c0_178 = arith.constant 0 : index
      %199 = vector.load %arg25[%c0_177, %c0_178] : memref<216x128xf32, #tpu.memory_space<vmem>>, vector<144x100xf32>
      %200 = arith.truncf %199 : vector<144x100xf32> to vector<144x100xbf16>
      %cst_179 = arith.constant dense<0.000000e+00> : vector<8x100xf32>
      %201 = tpu.matmul %0, %200, %cst_179 {dimension_numbers = #tpu.dot_dimension_numbers<[1], [0], [0], [1], [0, 0, 1, 1], [], []>} : vector<8x144xbf16>, vector<144x100xbf16>, vector<8x100xf32> -> vector<8x100xf32>
      %202 = vector.broadcast %1 : vector<8x1xf32> to vector<8x100xf32>
      %203 = arith.addf %201, %202 : vector<8x100xf32>
      %cst_180 = arith.constant 0.000000e+00 : f32
      %204 = vector.broadcast %cst_180 : f32 to vector<8x100xf32>
      %205 = arith.maximumf %203, %204 : vector<8x100xf32>
      %206 = vector.broadcast %2 : vector<8x1xf32> to vector<8x100xf32>
      %207 = arith.mulf %205, %206 : vector<8x100xf32>
      %208 = vector.broadcast %3 : vector<8x1xf32> to vector<8x100xf32>
      %209 = arith.addf %207, %208 : vector<8x100xf32>
      %210 = arith.addf %157, %209 : vector<8x100xf32>
      %cst_181 = arith.constant 5.000000e-01 : f32
      %211 = vector.broadcast %cst_181 : f32 to vector<8x100xf32>
      %212 = arith.mulf %211, %210 : vector<8x100xf32>
      %213 = arith.truncf %212 : vector<8x100xf32> to vector<8x100xbf16>
      %cst_182 = arith.constant dense<0.000000e+00> : vector<8x52xf32>
      %214 = tpu.matmul %213, %4, %cst_182 {dimension_numbers = #tpu.dot_dimension_numbers<[1], [0], [0], [1], [0, 0, 1, 1], [], []>} : vector<8x100xbf16>, vector<100x52xbf16>, vector<8x52xf32> -> vector<8x52xf32>
      %215 = arith.truncf %214 : vector<8x52xf32> to vector<8x52xbf16>
      %c1_i32_183 = arith.constant 1 : i32
      %216 = arith.addi %arg26, %c1_i32_183 : i32
      %217 = arith.index_cast %216 : i32 to index
      %c0_184 = arith.constant 0 : index
      %c0_185 = arith.constant 0 : index
      %218 = vector.load %arg20[%217, %c0_184, %c0_185] : memref<52x8x52xbf16, #tpu.memory_space<vmem>>, vector<1x8x52xbf16>
      %219 = vector.shape_cast %218 : vector<1x8x52xbf16> to vector<8x52xbf16>
      %220 = vector.shape_cast %215 : vector<8x52xbf16> to vector<1x8x52xbf16>
      tpu.vector_store %arg20[%217, %c0_184, %c0_185], %220 {strides = array<i32>} : memref<52x8x52xbf16, #tpu.memory_space<vmem>>, vector<1x8x52xbf16>,
    }
    %c50_i32_12 = arith.constant 50 : i32
    %c0_13 = arith.constant 0 : index
    %c0_14 = arith.constant 0 : index
    %13 = vector.load %arg3[%c0_13, %c0_14] : memref<16x72xbf16, #tpu.memory_space<vmem>>, vector<16x72xbf16>
    %c0_15 = arith.constant 0 : index
    %c0_16 = arith.constant 0 : index
    %14 = vector.load %arg9[%c0_15, %c0_16] : memref<16x3xf32, #tpu.memory_space<vmem>>, vector<16x1xf32>
    %c0_17 = arith.constant 0 : index
    %c1_18 = arith.constant 1 : index
    %15 = vector.load %arg9[%c0_17, %c1_18] : memref<16x3xf32, #tpu.memory_space<vmem>>, vector<16x1xf32>
    %c0_19 = arith.constant 0 : index
    %c2_20 = arith.constant 2 : index
    %16 = vector.load %arg9[%c0_19, %c2_20] : memref<16x3xf32, #tpu.memory_space<vmem>>, vector<16x1xf32>
    %c0_21 = arith.constant 0 : index
    %c0_22 = arith.constant 0 : index
    %17 = vector.load %arg15[%c0_21, %c0_22] : memref<50x27xbf16, #tpu.memory_space<vmem>>, vector<50x27xbf16>
    %cst_23 = arith.constant 0.000000e+00 : bf16
    %18 = vector.broadcast %cst_23 : bf16 to vector<16x27xbf16>
    %c0_24 = arith.constant 0 : index
    %c0_25 = arith.constant 0 : index
    %c0_26 = arith.constant 0 : index
    %19 = vector.load %arg21[%c0_24, %c0_25, %c0_26] : memref<27x16x27xbf16, #tpu.memory_space<vmem>>, vector<1x16x27xbf16>
    %20 = vector.shape_cast %19 : vector<1x16x27xbf16> to vector<16x27xbf16>
    %21 = vector.shape_cast %18 : vector<16x27xbf16> to vector<1x16x27xbf16>
    tpu.vector_store %arg21[%c0_24, %c0_25, %c0_26], %21 {strides = array<i32>} : memref<27x16x27xbf16, #tpu.memory_space<vmem>>, vector<1x16x27xbf16>,
    %c26 = arith.constant 26 : index
    %c0_27 = arith.constant 0 : index
    %c0_28 = arith.constant 0 : index
    %22 = vector.load %arg21[%c26, %c0_27, %c0_28] : memref<27x16x27xbf16, #tpu.memory_space<vmem>>, vector<1x16x27xbf16>
    %23 = vector.shape_cast %22 : vector<1x16x27xbf16> to vector<16x27xbf16>
    %24 = vector.shape_cast %18 : vector<16x27xbf16> to vector<1x16x27xbf16>
    tpu.vector_store %arg21[%c26, %c0_27, %c0_28], %24 {strides = array<i32>} : memref<27x16x27xbf16, #tpu.memory_space<vmem>>, vector<1x16x27xbf16>,
    %c0_i32_29 = arith.constant 0 : i32
    %c25_i32 = arith.constant 25 : i32
    %25 = arith.addi %c0_i32_29, %c25_i32 : i32
    %c1_i32_30 = arith.constant 1 : i32
    scf.for %arg26 = %c0_i32_29 to %25 step %c1_i32_30  : i32 {
      %c2_i32 = arith.constant 2 : i32
      %107 = arith.muli %c2_i32, %arg26 : i32
      %c0_i32_117 = arith.constant 0 : i32
      %108 = arith.addi %107, %c0_i32_117 : i32
      %109 = arith.index_cast %108 : i32 to index
      %c0_118 = arith.constant 0 : index
      %c0_119 = arith.constant 0 : index
      %110 = vector.load %arg20[%109, %c0_118, %c0_119] : memref<52x8x52xbf16, #tpu.memory_space<vmem>>, vector<1x8x52xbf16>
      %111 = vector.shape_cast %110 : vector<1x8x52xbf16> to vector<8x52xbf16>
      %112 = vector.extract_strided_slice %111 {offsets = [0, 0], sizes = [8, 50], strides = [1, 1]} : vector<8x52xbf16> to vector<8x50xbf16>
      %113 = arith.extf %112 : vector<8x50xbf16> to vector<8x50xf32>
      %c0_120 = arith.constant 0 : index
      %c0_121 = arith.constant 0 : index
      %114 = vector.load %arg25[%c0_120, %c0_121] : memref<216x128xf32, #tpu.memory_space<vmem>>, vector<8x50xf32>
      tpu.vector_store %arg25[%c0_120, %c0_121], %113 {strides = array<i32>} : memref<216x128xf32, #tpu.memory_space<vmem>>, vector<8x50xf32>,
      %115 = vector.extract_strided_slice %111 {offsets = [0, 1], sizes = [8, 50], strides = [1, 1]} : vector<8x52xbf16> to vector<8x50xbf16>
      %116 = arith.extf %115 : vector<8x50xbf16> to vector<8x50xf32>
      %c8 = arith.constant 8 : index
      %c0_122 = arith.constant 0 : index
      %117 = vector.load %arg25[%c8, %c0_122] : memref<216x128xf32, #tpu.memory_space<vmem>>, vector<8x50xf32>
      tpu.vector_store %arg25[%c8, %c0_122], %116 {strides = array<i32>} : memref<216x128xf32, #tpu.memory_space<vmem>>, vector<8x50xf32>,
      %118 = vector.extract_strided_slice %111 {offsets = [0, 2], sizes = [8, 50], strides = [1, 1]} : vector<8x52xbf16> to vector<8x50xbf16>
      %119 = arith.extf %118 : vector<8x50xbf16> to vector<8x50xf32>
      %c16 = arith.constant 16 : index
      %c0_123 = arith.constant 0 : index
      %120 = vector.load %arg25[%c16, %c0_123] : memref<216x128xf32, #tpu.memory_space<vmem>>, vector<8x50xf32>
      tpu.vector_store %arg25[%c16, %c0_123], %119 {strides = array<i32>} : memref<216x128xf32, #tpu.memory_space<vmem>>, vector<8x50xf32>,
      %c1_i32_124 = arith.constant 1 : i32
      %121 = arith.addi %107, %c1_i32_124 : i32
      %122 = arith.index_cast %121 : i32 to index
      %c0_125 = arith.constant 0 : index
      %c0_126 = arith.constant 0 : index
      %123 = vector.load %arg20[%122, %c0_125, %c0_126] : memref<52x8x52xbf16, #tpu.memory_space<vmem>>, vector<1x8x52xbf16>
      %124 = vector.shape_cast %123 : vector<1x8x52xbf16> to vector<8x52xbf16>
      %125 = vector.extract_strided_slice %124 {offsets = [0, 0], sizes = [8, 50], strides = [1, 1]} : vector<8x52xbf16> to vector<8x50xbf16>
      %126 = arith.extf %125 : vector<8x50xbf16> to vector<8x50xf32>
      %c24_127 = arith.constant 24 : index
      %c0_128 = arith.constant 0 : index
      %127 = vector.load %arg25[%c24_127, %c0_128] : memref<216x128xf32, #tpu.memory_space<vmem>>, vector<8x50xf32>
      tpu.vector_store %arg25[%c24_127, %c0_128], %126 {strides = array<i32>} : memref<216x128xf32, #tpu.memory_space<vmem>>, vector<8x50xf32>,
      %128 = vector.extract_strided_slice %124 {offsets = [0, 1], sizes = [8, 50], strides = [1, 1]} : vector<8x52xbf16> to vector<8x50xbf16>
      %129 = arith.extf %128 : vector<8x50xbf16> to vector<8x50xf32>
      %c32 = arith.constant 32 : index
      %c0_129 = arith.constant 0 : index
      %130 = vector.load %arg25[%c32, %c0_129] : memref<216x128xf32, #tpu.memory_space<vmem>>, vector<8x50xf32>
      tpu.vector_store %arg25[%c32, %c0_129], %129 {strides = array<i32>} : memref<216x128xf32, #tpu.memory_space<vmem>>, vector<8x50xf32>,
      %131 = vector.extract_strided_slice %124 {offsets = [0, 2], sizes = [8, 50], strides = [1, 1]} : vector<8x52xbf16> to vector<8x50xbf16>
      %132 = arith.extf %131 : vector<8x50xbf16> to vector<8x50xf32>
      %c40 = arith.constant 40 : index
      %c0_130 = arith.constant 0 : index
      %133 = vector.load %arg25[%c40, %c0_130] : memref<216x128xf32, #tpu.memory_space<vmem>>, vector<8x50xf32>
      tpu.vector_store %arg25[%c40, %c0_130], %132 {strides = array<i32>} : memref<216x128xf32, #tpu.memory_space<vmem>>, vector<8x50xf32>,
      %c2_i32_131 = arith.constant 2 : i32
      %134 = arith.addi %107, %c2_i32_131 : i32
      %135 = arith.index_cast %134 : i32 to index
      %c0_132 = arith.constant 0 : index
      %c0_133 = arith.constant 0 : index
      %136 = vector.load %arg20[%135, %c0_132, %c0_133] : memref<52x8x52xbf16, #tpu.memory_space<vmem>>, vector<1x8x52xbf16>
      %137 = vector.shape_cast %136 : vector<1x8x52xbf16> to vector<8x52xbf16>
      %138 = vector.extract_strided_slice %137 {offsets = [0, 0], sizes = [8, 50], strides = [1, 1]} : vector<8x52xbf16> to vector<8x50xbf16>
      %139 = arith.extf %138 : vector<8x50xbf16> to vector<8x50xf32>
      %c48_134 = arith.constant 48 : index
      %c0_135 = arith.constant 0 : index
      %140 = vector.load %arg25[%c48_134, %c0_135] : memref<216x128xf32, #tpu.memory_space<vmem>>, vector<8x50xf32>
      tpu.vector_store %arg25[%c48_134, %c0_135], %139 {strides = array<i32>} : memref<216x128xf32, #tpu.memory_space<vmem>>, vector<8x50xf32>,
      %141 = vector.extract_strided_slice %137 {offsets = [0, 1], sizes = [8, 50], strides = [1, 1]} : vector<8x52xbf16> to vector<8x50xbf16>
      %142 = arith.extf %141 : vector<8x50xbf16> to vector<8x50xf32>
      %c56 = arith.constant 56 : index
      %c0_136 = arith.constant 0 : index
      %143 = vector.load %arg25[%c56, %c0_136] : memref<216x128xf32, #tpu.memory_space<vmem>>, vector<8x50xf32>
      tpu.vector_store %arg25[%c56, %c0_136], %142 {strides = array<i32>} : memref<216x128xf32, #tpu.memory_space<vmem>>, vector<8x50xf32>,
      %144 = vector.extract_strided_slice %137 {offsets = [0, 2], sizes = [8, 50], strides = [1, 1]} : vector<8x52xbf16> to vector<8x50xbf16>
      %145 = arith.extf %144 : vector<8x50xbf16> to vector<8x50xf32>
      %c64 = arith.constant 64 : index
      %c0_137 = arith.constant 0 : index
      %146 = vector.load %arg25[%c64, %c0_137] : memref<216x128xf32, #tpu.memory_space<vmem>>, vector<8x50xf32>
      tpu.vector_store %arg25[%c64, %c0_137], %145 {strides = array<i32>} : memref<216x128xf32, #tpu.memory_space<vmem>>, vector<8x50xf32>,
      %c0_138 = arith.constant 0 : index
      %c0_139 = arith.constant 0 : index
      %147 = vector.load %arg25[%c0_138, %c0_139] : memref<216x128xf32, #tpu.memory_space<vmem>>, vector<72x50xf32>
      %148 = arith.truncf %147 : vector<72x50xf32> to vector<72x50xbf16>
      %cst_140 = arith.constant dense<0.000000e+00> : vector<16x50xf32>
      %149 = tpu.matmul %13, %148, %cst_140 {dimension_numbers = #tpu.dot_dimension_numbers<[1], [0], [0], [1], [0, 0, 1, 1], [], []>} : vector<16x72xbf16>, vector<72x50xbf16>, vector<16x50xf32> -> vector<16x50xf32>
      %150 = vector.broadcast %14 : vector<16x1xf32> to vector<16x50xf32>
      %151 = arith.addf %149, %150 : vector<16x50xf32>
      %cst_141 = arith.constant 0.000000e+00 : f32
      %152 = vector.broadcast %cst_141 : f32 to vector<16x50xf32>
      %153 = arith.maximumf %151, %152 : vector<16x50xf32>
      %154 = vector.broadcast %15 : vector<16x1xf32> to vector<16x50xf32>
      %155 = arith.mulf %153, %154 : vector<16x50xf32>
      %156 = vector.broadcast %16 : vector<16x1xf32> to vector<16x50xf32>
      %157 = arith.addf %155, %156 : vector<16x50xf32>
      %c2_i32_142 = arith.constant 2 : i32
      %158 = arith.muli %c2_i32_142, %arg26 : i32
      %c1_i32_143 = arith.constant 1 : i32
      %159 = arith.addi %158, %c1_i32_143 : i32
      %c0_i32_144 = arith.constant 0 : i32
      %160 = arith.addi %159, %c0_i32_144 : i32
      %161 = arith.index_cast %160 : i32 to index
      %c0_145 = arith.constant 0 : index
      %c0_146 = arith.constant 0 : index
      %162 = vector.load %arg20[%161, %c0_145, %c0_146] : memref<52x8x52xbf16, #tpu.memory_space<vmem>>, vector<1x8x52xbf16>
      %163 = vector.shape_cast %162 : vector<1x8x52xbf16> to vector<8x52xbf16>
      %164 = vector.extract_strided_slice %163 {offsets = [0, 0], sizes = [8, 50], strides = [1, 1]} : vector<8x52xbf16> to vector<8x50xbf16>
      %165 = arith.extf %164 : vector<8x50xbf16> to vector<8x50xf32>
      %c0_147 = arith.constant 0 : index
      %c0_148 = arith.constant 0 : index
      %166 = vector.load %arg25[%c0_147, %c0_148] : memref<216x128xf32, #tpu.memory_space<vmem>>, vector<8x50xf32>
      tpu.vector_store %arg25[%c0_147, %c0_148], %165 {strides = array<i32>} : memref<216x128xf32, #tpu.memory_space<vmem>>, vector<8x50xf32>,
      %167 = vector.extract_strided_slice %163 {offsets = [0, 1], sizes = [8, 50], strides = [1, 1]} : vector<8x52xbf16> to vector<8x50xbf16>
      %168 = arith.extf %167 : vector<8x50xbf16> to vector<8x50xf32>
      %c8_149 = arith.constant 8 : index
      %c0_150 = arith.constant 0 : index
      %169 = vector.load %arg25[%c8_149, %c0_150] : memref<216x128xf32, #tpu.memory_space<vmem>>, vector<8x50xf32>
      tpu.vector_store %arg25[%c8_149, %c0_150], %168 {strides = array<i32>} : memref<216x128xf32, #tpu.memory_space<vmem>>, vector<8x50xf32>,
      %170 = vector.extract_strided_slice %163 {offsets = [0, 2], sizes = [8, 50], strides = [1, 1]} : vector<8x52xbf16> to vector<8x50xbf16>
      %171 = arith.extf %170 : vector<8x50xbf16> to vector<8x50xf32>
      %c16_151 = arith.constant 16 : index
      %c0_152 = arith.constant 0 : index
      %172 = vector.load %arg25[%c16_151, %c0_152] : memref<216x128xf32, #tpu.memory_space<vmem>>, vector<8x50xf32>
      tpu.vector_store %arg25[%c16_151, %c0_152], %171 {strides = array<i32>} : memref<216x128xf32, #tpu.memory_space<vmem>>, vector<8x50xf32>,
      %c1_i32_153 = arith.constant 1 : i32
      %173 = arith.addi %159, %c1_i32_153 : i32
      %174 = arith.index_cast %173 : i32 to index
      %c0_154 = arith.constant 0 : index
      %c0_155 = arith.constant 0 : index
      %175 = vector.load %arg20[%174, %c0_154, %c0_155] : memref<52x8x52xbf16, #tpu.memory_space<vmem>>, vector<1x8x52xbf16>
      %176 = vector.shape_cast %175 : vector<1x8x52xbf16> to vector<8x52xbf16>
      %177 = vector.extract_strided_slice %176 {offsets = [0, 0], sizes = [8, 50], strides = [1, 1]} : vector<8x52xbf16> to vector<8x50xbf16>
      %178 = arith.extf %177 : vector<8x50xbf16> to vector<8x50xf32>
      %c24_156 = arith.constant 24 : index
      %c0_157 = arith.constant 0 : index
      %179 = vector.load %arg25[%c24_156, %c0_157] : memref<216x128xf32, #tpu.memory_space<vmem>>, vector<8x50xf32>
      tpu.vector_store %arg25[%c24_156, %c0_157], %178 {strides = array<i32>} : memref<216x128xf32, #tpu.memory_space<vmem>>, vector<8x50xf32>,
      %180 = vector.extract_strided_slice %176 {offsets = [0, 1], sizes = [8, 50], strides = [1, 1]} : vector<8x52xbf16> to vector<8x50xbf16>
      %181 = arith.extf %180 : vector<8x50xbf16> to vector<8x50xf32>
      %c32_158 = arith.constant 32 : index
      %c0_159 = arith.constant 0 : index
      %182 = vector.load %arg25[%c32_158, %c0_159] : memref<216x128xf32, #tpu.memory_space<vmem>>, vector<8x50xf32>
      tpu.vector_store %arg25[%c32_158, %c0_159], %181 {strides = array<i32>} : memref<216x128xf32, #tpu.memory_space<vmem>>, vector<8x50xf32>,
      %183 = vector.extract_strided_slice %176 {offsets = [0, 2], sizes = [8, 50], strides = [1, 1]} : vector<8x52xbf16> to vector<8x50xbf16>
      %184 = arith.extf %183 : vector<8x50xbf16> to vector<8x50xf32>
      %c40_160 = arith.constant 40 : index
      %c0_161 = arith.constant 0 : index
      %185 = vector.load %arg25[%c40_160, %c0_161] : memref<216x128xf32, #tpu.memory_space<vmem>>, vector<8x50xf32>
      tpu.vector_store %arg25[%c40_160, %c0_161], %184 {strides = array<i32>} : memref<216x128xf32, #tpu.memory_space<vmem>>, vector<8x50xf32>,
      %c2_i32_162 = arith.constant 2 : i32
      %186 = arith.addi %159, %c2_i32_162 : i32
      %187 = arith.index_cast %186 : i32 to index
      %c0_163 = arith.constant 0 : index
      %c0_164 = arith.constant 0 : index
      %188 = vector.load %arg20[%187, %c0_163, %c0_164] : memref<52x8x52xbf16, #tpu.memory_space<vmem>>, vector<1x8x52xbf16>
      %189 = vector.shape_cast %188 : vector<1x8x52xbf16> to vector<8x52xbf16>
      %190 = vector.extract_strided_slice %189 {offsets = [0, 0], sizes = [8, 50], strides = [1, 1]} : vector<8x52xbf16> to vector<8x50xbf16>
      %191 = arith.extf %190 : vector<8x50xbf16> to vector<8x50xf32>
      %c48_165 = arith.constant 48 : index
      %c0_166 = arith.constant 0 : index
      %192 = vector.load %arg25[%c48_165, %c0_166] : memref<216x128xf32, #tpu.memory_space<vmem>>, vector<8x50xf32>
      tpu.vector_store %arg25[%c48_165, %c0_166], %191 {strides = array<i32>} : memref<216x128xf32, #tpu.memory_space<vmem>>, vector<8x50xf32>,
      %193 = vector.extract_strided_slice %189 {offsets = [0, 1], sizes = [8, 50], strides = [1, 1]} : vector<8x52xbf16> to vector<8x50xbf16>
      %194 = arith.extf %193 : vector<8x50xbf16> to vector<8x50xf32>
      %c56_167 = arith.constant 56 : index
      %c0_168 = arith.constant 0 : index
      %195 = vector.load %arg25[%c56_167, %c0_168] : memref<216x128xf32, #tpu.memory_space<vmem>>, vector<8x50xf32>
      tpu.vector_store %arg25[%c56_167, %c0_168], %194 {strides = array<i32>} : memref<216x128xf32, #tpu.memory_space<vmem>>, vector<8x50xf32>,
      %196 = vector.extract_strided_slice %189 {offsets = [0, 2], sizes = [8, 50], strides = [1, 1]} : vector<8x52xbf16> to vector<8x50xbf16>
      %197 = arith.extf %196 : vector<8x50xbf16> to vector<8x50xf32>
      %c64_169 = arith.constant 64 : index
      %c0_170 = arith.constant 0 : index
      %198 = vector.load %arg25[%c64_169, %c0_170] : memref<216x128xf32, #tpu.memory_space<vmem>>, vector<8x50xf32>
      tpu.vector_store %arg25[%c64_169, %c0_170], %197 {strides = array<i32>} : memref<216x128xf32, #tpu.memory_space<vmem>>, vector<8x50xf32>,
      %c0_171 = arith.constant 0 : index
      %c0_172 = arith.constant 0 : index
      %199 = vector.load %arg25[%c0_171, %c0_172] : memref<216x128xf32, #tpu.memory_space<vmem>>, vector<72x50xf32>
      %200 = arith.truncf %199 : vector<72x50xf32> to vector<72x50xbf16>
      %cst_173 = arith.constant dense<0.000000e+00> : vector<16x50xf32>
      %201 = tpu.matmul %13, %200, %cst_173 {dimension_numbers = #tpu.dot_dimension_numbers<[1], [0], [0], [1], [0, 0, 1, 1], [], []>} : vector<16x72xbf16>, vector<72x50xbf16>, vector<16x50xf32> -> vector<16x50xf32>
      %202 = vector.broadcast %14 : vector<16x1xf32> to vector<16x50xf32>
      %203 = arith.addf %201, %202 : vector<16x50xf32>
      %cst_174 = arith.constant 0.000000e+00 : f32
      %204 = vector.broadcast %cst_174 : f32 to vector<16x50xf32>
      %205 = arith.maximumf %203, %204 : vector<16x50xf32>
      %206 = vector.broadcast %15 : vector<16x1xf32> to vector<16x50xf32>
      %207 = arith.mulf %205, %206 : vector<16x50xf32>
      %208 = vector.broadcast %16 : vector<16x1xf32> to vector<16x50xf32>
      %209 = arith.addf %207, %208 : vector<16x50xf32>
      %210 = arith.addf %157, %209 : vector<16x50xf32>
      %cst_175 = arith.constant 5.000000e-01 : f32
      %211 = vector.broadcast %cst_175 : f32 to vector<16x50xf32>
      %212 = arith.mulf %211, %210 : vector<16x50xf32>
      %213 = arith.truncf %212 : vector<16x50xf32> to vector<16x50xbf16>
      %cst_176 = arith.constant dense<0.000000e+00> : vector<16x27xf32>
      %214 = tpu.matmul %213, %17, %cst_176 {dimension_numbers = #tpu.dot_dimension_numbers<[1], [0], [0], [1], [0, 0, 1, 1], [], []>} : vector<16x50xbf16>, vector<50x27xbf16>, vector<16x27xf32> -> vector<16x27xf32>
      %215 = arith.truncf %214 : vector<16x27xf32> to vector<16x27xbf16>
      %c1_i32_177 = arith.constant 1 : i32
      %216 = arith.addi %arg26, %c1_i32_177 : i32
      %217 = arith.index_cast %216 : i32 to index
      %c0_178 = arith.constant 0 : index
      %c0_179 = arith.constant 0 : index
      %218 = vector.load %arg21[%217, %c0_178, %c0_179] : memref<27x16x27xbf16, #tpu.memory_space<vmem>>, vector<1x16x27xbf16>
      %219 = vector.shape_cast %218 : vector<1x16x27xbf16> to vector<16x27xbf16>
      %220 = vector.shape_cast %215 : vector<16x27xbf16> to vector<1x16x27xbf16>
      tpu.vector_store %arg21[%217, %c0_178, %c0_179], %220 {strides = array<i32>} : memref<27x16x27xbf16, #tpu.memory_space<vmem>>, vector<1x16x27xbf16>,
    }
    %c25_i32_31 = arith.constant 25 : i32
    %c0_32 = arith.constant 0 : index
    %c0_33 = arith.constant 0 : index
    %26 = vector.load %arg4[%c0_32, %c0_33] : memref<16x144xbf16, #tpu.memory_space<vmem>>, vector<16x144xbf16>
    %c0_34 = arith.constant 0 : index
    %c0_35 = arith.constant 0 : index
    %27 = vector.load %arg10[%c0_34, %c0_35] : memref<16x3xf32, #tpu.memory_space<vmem>>, vector<16x1xf32>
    %c0_36 = arith.constant 0 : index
    %c1_37 = arith.constant 1 : index
    %28 = vector.load %arg10[%c0_36, %c1_37] : memref<16x3xf32, #tpu.memory_space<vmem>>, vector<16x1xf32>
    %c0_38 = arith.constant 0 : index
    %c2_39 = arith.constant 2 : index
    %29 = vector.load %arg10[%c0_38, %c2_39] : memref<16x3xf32, #tpu.memory_space<vmem>>, vector<16x1xf32>
    %c0_40 = arith.constant 0 : index
    %c0_41 = arith.constant 0 : index
    %30 = vector.load %arg16[%c0_40, %c0_41] : memref<25x14xbf16, #tpu.memory_space<vmem>>, vector<25x14xbf16>
    %cst_42 = arith.constant 0.000000e+00 : bf16
    %31 = vector.broadcast %cst_42 : bf16 to vector<16x14xbf16>
    %c0_43 = arith.constant 0 : index
    %c0_44 = arith.constant 0 : index
    %c0_45 = arith.constant 0 : index
    %32 = vector.load %arg22[%c0_43, %c0_44, %c0_45] : memref<14x16x14xbf16, #tpu.memory_space<vmem>>, vector<1x16x14xbf16>
    %33 = vector.shape_cast %32 : vector<1x16x14xbf16> to vector<16x14xbf16>
    %34 = vector.shape_cast %31 : vector<16x14xbf16> to vector<1x16x14xbf16>
    tpu.vector_store %arg22[%c0_43, %c0_44, %c0_45], %34 {strides = array<i32>} : memref<14x16x14xbf16, #tpu.memory_space<vmem>>, vector<1x16x14xbf16>,
    %c13 = arith.constant 13 : index
    %c0_46 = arith.constant 0 : index
    %c0_47 = arith.constant 0 : index
    %35 = vector.load %arg22[%c13, %c0_46, %c0_47] : memref<14x16x14xbf16, #tpu.memory_space<vmem>>, vector<1x16x14xbf16>
    %36 = vector.shape_cast %35 : vector<1x16x14xbf16> to vector<16x14xbf16>
    %37 = vector.shape_cast %31 : vector<16x14xbf16> to vector<1x16x14xbf16>
    tpu.vector_store %arg22[%c13, %c0_46, %c0_47], %37 {strides = array<i32>} : memref<14x16x14xbf16, #tpu.memory_space<vmem>>, vector<1x16x14xbf16>,
    %c0_i32_48 = arith.constant 0 : i32
    %c12_i32 = arith.constant 12 : i32
    %38 = arith.addi %c0_i32_48, %c12_i32 : i32
    %c1_i32_49 = arith.constant 1 : i32
    scf.for %arg26 = %c0_i32_48 to %38 step %c1_i32_49  : i32 {
      %c2_i32 = arith.constant 2 : i32
      %107 = arith.muli %c2_i32, %arg26 : i32
      %c0_i32_117 = arith.constant 0 : i32
      %108 = arith.addi %107, %c0_i32_117 : i32
      %109 = arith.index_cast %108 : i32 to index
      %c0_118 = arith.constant 0 : index
      %c0_119 = arith.constant 0 : index
      %110 = vector.load %arg21[%109, %c0_118, %c0_119] : memref<27x16x27xbf16, #tpu.memory_space<vmem>>, vector<1x16x27xbf16>
      %111 = vector.shape_cast %110 : vector<1x16x27xbf16> to vector<16x27xbf16>
      %112 = vector.extract_strided_slice %111 {offsets = [0, 0], sizes = [16, 25], strides = [1, 1]} : vector<16x27xbf16> to vector<16x25xbf16>
      %113 = arith.extf %112 : vector<16x25xbf16> to vector<16x25xf32>
      %c0_120 = arith.constant 0 : index
      %c0_121 = arith.constant 0 : index
      %114 = vector.load %arg25[%c0_120, %c0_121] : memref<216x128xf32, #tpu.memory_space<vmem>>, vector<16x25xf32>
      tpu.vector_store %arg25[%c0_120, %c0_121], %113 {strides = array<i32>} : memref<216x128xf32, #tpu.memory_space<vmem>>, vector<16x25xf32>,
      %115 = vector.extract_strided_slice %111 {offsets = [0, 1], sizes = [16, 25], strides = [1, 1]} : vector<16x27xbf16> to vector<16x25xbf16>
      %116 = arith.extf %115 : vector<16x25xbf16> to vector<16x25xf32>
      %c16 = arith.constant 16 : index
      %c0_122 = arith.constant 0 : index
      %117 = vector.load %arg25[%c16, %c0_122] : memref<216x128xf32, #tpu.memory_space<vmem>>, vector<16x25xf32>
      tpu.vector_store %arg25[%c16, %c0_122], %116 {strides = array<i32>} : memref<216x128xf32, #tpu.memory_space<vmem>>, vector<16x25xf32>,
      %118 = vector.extract_strided_slice %111 {offsets = [0, 2], sizes = [16, 25], strides = [1, 1]} : vector<16x27xbf16> to vector<16x25xbf16>
      %119 = arith.extf %118 : vector<16x25xbf16> to vector<16x25xf32>
      %c32 = arith.constant 32 : index
      %c0_123 = arith.constant 0 : index
      %120 = vector.load %arg25[%c32, %c0_123] : memref<216x128xf32, #tpu.memory_space<vmem>>, vector<16x25xf32>
      tpu.vector_store %arg25[%c32, %c0_123], %119 {strides = array<i32>} : memref<216x128xf32, #tpu.memory_space<vmem>>, vector<16x25xf32>,
      %c1_i32_124 = arith.constant 1 : i32
      %121 = arith.addi %107, %c1_i32_124 : i32
      %122 = arith.index_cast %121 : i32 to index
      %c0_125 = arith.constant 0 : index
      %c0_126 = arith.constant 0 : index
      %123 = vector.load %arg21[%122, %c0_125, %c0_126] : memref<27x16x27xbf16, #tpu.memory_space<vmem>>, vector<1x16x27xbf16>
      %124 = vector.shape_cast %123 : vector<1x16x27xbf16> to vector<16x27xbf16>
      %125 = vector.extract_strided_slice %124 {offsets = [0, 0], sizes = [16, 25], strides = [1, 1]} : vector<16x27xbf16> to vector<16x25xbf16>
      %126 = arith.extf %125 : vector<16x25xbf16> to vector<16x25xf32>
      %c48_127 = arith.constant 48 : index
      %c0_128 = arith.constant 0 : index
      %127 = vector.load %arg25[%c48_127, %c0_128] : memref<216x128xf32, #tpu.memory_space<vmem>>, vector<16x25xf32>
      tpu.vector_store %arg25[%c48_127, %c0_128], %126 {strides = array<i32>} : memref<216x128xf32, #tpu.memory_space<vmem>>, vector<16x25xf32>,
      %128 = vector.extract_strided_slice %124 {offsets = [0, 1], sizes = [16, 25], strides = [1, 1]} : vector<16x27xbf16> to vector<16x25xbf16>
      %129 = arith.extf %128 : vector<16x25xbf16> to vector<16x25xf32>
      %c64 = arith.constant 64 : index
      %c0_129 = arith.constant 0 : index
      %130 = vector.load %arg25[%c64, %c0_129] : memref<216x128xf32, #tpu.memory_space<vmem>>, vector<16x25xf32>
      tpu.vector_store %arg25[%c64, %c0_129], %129 {strides = array<i32>} : memref<216x128xf32, #tpu.memory_space<vmem>>, vector<16x25xf32>,
      %131 = vector.extract_strided_slice %124 {offsets = [0, 2], sizes = [16, 25], strides = [1, 1]} : vector<16x27xbf16> to vector<16x25xbf16>
      %132 = arith.extf %131 : vector<16x25xbf16> to vector<16x25xf32>
      %c80 = arith.constant 80 : index
      %c0_130 = arith.constant 0 : index
      %133 = vector.load %arg25[%c80, %c0_130] : memref<216x128xf32, #tpu.memory_space<vmem>>, vector<16x25xf32>
      tpu.vector_store %arg25[%c80, %c0_130], %132 {strides = array<i32>} : memref<216x128xf32, #tpu.memory_space<vmem>>, vector<16x25xf32>,
      %c2_i32_131 = arith.constant 2 : i32
      %134 = arith.addi %107, %c2_i32_131 : i32
      %135 = arith.index_cast %134 : i32 to index
      %c0_132 = arith.constant 0 : index
      %c0_133 = arith.constant 0 : index
      %136 = vector.load %arg21[%135, %c0_132, %c0_133] : memref<27x16x27xbf16, #tpu.memory_space<vmem>>, vector<1x16x27xbf16>
      %137 = vector.shape_cast %136 : vector<1x16x27xbf16> to vector<16x27xbf16>
      %138 = vector.extract_strided_slice %137 {offsets = [0, 0], sizes = [16, 25], strides = [1, 1]} : vector<16x27xbf16> to vector<16x25xbf16>
      %139 = arith.extf %138 : vector<16x25xbf16> to vector<16x25xf32>
      %c96_134 = arith.constant 96 : index
      %c0_135 = arith.constant 0 : index
      %140 = vector.load %arg25[%c96_134, %c0_135] : memref<216x128xf32, #tpu.memory_space<vmem>>, vector<16x25xf32>
      tpu.vector_store %arg25[%c96_134, %c0_135], %139 {strides = array<i32>} : memref<216x128xf32, #tpu.memory_space<vmem>>, vector<16x25xf32>,
      %141 = vector.extract_strided_slice %137 {offsets = [0, 1], sizes = [16, 25], strides = [1, 1]} : vector<16x27xbf16> to vector<16x25xbf16>
      %142 = arith.extf %141 : vector<16x25xbf16> to vector<16x25xf32>
      %c112 = arith.constant 112 : index
      %c0_136 = arith.constant 0 : index
      %143 = vector.load %arg25[%c112, %c0_136] : memref<216x128xf32, #tpu.memory_space<vmem>>, vector<16x25xf32>
      tpu.vector_store %arg25[%c112, %c0_136], %142 {strides = array<i32>} : memref<216x128xf32, #tpu.memory_space<vmem>>, vector<16x25xf32>,
      %144 = vector.extract_strided_slice %137 {offsets = [0, 2], sizes = [16, 25], strides = [1, 1]} : vector<16x27xbf16> to vector<16x25xbf16>
      %145 = arith.extf %144 : vector<16x25xbf16> to vector<16x25xf32>
      %c128 = arith.constant 128 : index
      %c0_137 = arith.constant 0 : index
      %146 = vector.load %arg25[%c128, %c0_137] : memref<216x128xf32, #tpu.memory_space<vmem>>, vector<16x25xf32>
      tpu.vector_store %arg25[%c128, %c0_137], %145 {strides = array<i32>} : memref<216x128xf32, #tpu.memory_space<vmem>>, vector<16x25xf32>,
      %c0_138 = arith.constant 0 : index
      %c0_139 = arith.constant 0 : index
      %147 = vector.load %arg25[%c0_138, %c0_139] : memref<216x128xf32, #tpu.memory_space<vmem>>, vector<144x25xf32>
      %148 = arith.truncf %147 : vector<144x25xf32> to vector<144x25xbf16>
      %cst_140 = arith.constant dense<0.000000e+00> : vector<16x25xf32>
      %149 = tpu.matmul %26, %148, %cst_140 {dimension_numbers = #tpu.dot_dimension_numbers<[1], [0], [0], [1], [0, 0, 1, 1], [], []>} : vector<16x144xbf16>, vector<144x25xbf16>, vector<16x25xf32> -> vector<16x25xf32>
      %150 = vector.broadcast %27 : vector<16x1xf32> to vector<16x25xf32>
      %151 = arith.addf %149, %150 : vector<16x25xf32>
      %cst_141 = arith.constant 0.000000e+00 : f32
      %152 = vector.broadcast %cst_141 : f32 to vector<16x25xf32>
      %153 = arith.maximumf %151, %152 : vector<16x25xf32>
      %154 = vector.broadcast %28 : vector<16x1xf32> to vector<16x25xf32>
      %155 = arith.mulf %153, %154 : vector<16x25xf32>
      %156 = vector.broadcast %29 : vector<16x1xf32> to vector<16x25xf32>
      %157 = arith.addf %155, %156 : vector<16x25xf32>
      %c2_i32_142 = arith.constant 2 : i32
      %158 = arith.muli %c2_i32_142, %arg26 : i32
      %c1_i32_143 = arith.constant 1 : i32
      %159 = arith.addi %158, %c1_i32_143 : i32
      %c0_i32_144 = arith.constant 0 : i32
      %160 = arith.addi %159, %c0_i32_144 : i32
      %161 = arith.index_cast %160 : i32 to index
      %c0_145 = arith.constant 0 : index
      %c0_146 = arith.constant 0 : index
      %162 = vector.load %arg21[%161, %c0_145, %c0_146] : memref<27x16x27xbf16, #tpu.memory_space<vmem>>, vector<1x16x27xbf16>
      %163 = vector.shape_cast %162 : vector<1x16x27xbf16> to vector<16x27xbf16>
      %164 = vector.extract_strided_slice %163 {offsets = [0, 0], sizes = [16, 25], strides = [1, 1]} : vector<16x27xbf16> to vector<16x25xbf16>
      %165 = arith.extf %164 : vector<16x25xbf16> to vector<16x25xf32>
      %c0_147 = arith.constant 0 : index
      %c0_148 = arith.constant 0 : index
      %166 = vector.load %arg25[%c0_147, %c0_148] : memref<216x128xf32, #tpu.memory_space<vmem>>, vector<16x25xf32>
      tpu.vector_store %arg25[%c0_147, %c0_148], %165 {strides = array<i32>} : memref<216x128xf32, #tpu.memory_space<vmem>>, vector<16x25xf32>,
      %167 = vector.extract_strided_slice %163 {offsets = [0, 1], sizes = [16, 25], strides = [1, 1]} : vector<16x27xbf16> to vector<16x25xbf16>
      %168 = arith.extf %167 : vector<16x25xbf16> to vector<16x25xf32>
      %c16_149 = arith.constant 16 : index
      %c0_150 = arith.constant 0 : index
      %169 = vector.load %arg25[%c16_149, %c0_150] : memref<216x128xf32, #tpu.memory_space<vmem>>, vector<16x25xf32>
      tpu.vector_store %arg25[%c16_149, %c0_150], %168 {strides = array<i32>} : memref<216x128xf32, #tpu.memory_space<vmem>>, vector<16x25xf32>,
      %170 = vector.extract_strided_slice %163 {offsets = [0, 2], sizes = [16, 25], strides = [1, 1]} : vector<16x27xbf16> to vector<16x25xbf16>
      %171 = arith.extf %170 : vector<16x25xbf16> to vector<16x25xf32>
      %c32_151 = arith.constant 32 : index
      %c0_152 = arith.constant 0 : index
      %172 = vector.load %arg25[%c32_151, %c0_152] : memref<216x128xf32, #tpu.memory_space<vmem>>, vector<16x25xf32>
      tpu.vector_store %arg25[%c32_151, %c0_152], %171 {strides = array<i32>} : memref<216x128xf32, #tpu.memory_space<vmem>>, vector<16x25xf32>,
      %c1_i32_153 = arith.constant 1 : i32
      %173 = arith.addi %159, %c1_i32_153 : i32
      %174 = arith.index_cast %173 : i32 to index
      %c0_154 = arith.constant 0 : index
      %c0_155 = arith.constant 0 : index
      %175 = vector.load %arg21[%174, %c0_154, %c0_155] : memref<27x16x27xbf16, #tpu.memory_space<vmem>>, vector<1x16x27xbf16>
      %176 = vector.shape_cast %175 : vector<1x16x27xbf16> to vector<16x27xbf16>
      %177 = vector.extract_strided_slice %176 {offsets = [0, 0], sizes = [16, 25], strides = [1, 1]} : vector<16x27xbf16> to vector<16x25xbf16>
      %178 = arith.extf %177 : vector<16x25xbf16> to vector<16x25xf32>
      %c48_156 = arith.constant 48 : index
      %c0_157 = arith.constant 0 : index
      %179 = vector.load %arg25[%c48_156, %c0_157] : memref<216x128xf32, #tpu.memory_space<vmem>>, vector<16x25xf32>
      tpu.vector_store %arg25[%c48_156, %c0_157], %178 {strides = array<i32>} : memref<216x128xf32, #tpu.memory_space<vmem>>, vector<16x25xf32>,
      %180 = vector.extract_strided_slice %176 {offsets = [0, 1], sizes = [16, 25], strides = [1, 1]} : vector<16x27xbf16> to vector<16x25xbf16>
      %181 = arith.extf %180 : vector<16x25xbf16> to vector<16x25xf32>
      %c64_158 = arith.constant 64 : index
      %c0_159 = arith.constant 0 : index
      %182 = vector.load %arg25[%c64_158, %c0_159] : memref<216x128xf32, #tpu.memory_space<vmem>>, vector<16x25xf32>
      tpu.vector_store %arg25[%c64_158, %c0_159], %181 {strides = array<i32>} : memref<216x128xf32, #tpu.memory_space<vmem>>, vector<16x25xf32>,
      %183 = vector.extract_strided_slice %176 {offsets = [0, 2], sizes = [16, 25], strides = [1, 1]} : vector<16x27xbf16> to vector<16x25xbf16>
      %184 = arith.extf %183 : vector<16x25xbf16> to vector<16x25xf32>
      %c80_160 = arith.constant 80 : index
      %c0_161 = arith.constant 0 : index
      %185 = vector.load %arg25[%c80_160, %c0_161] : memref<216x128xf32, #tpu.memory_space<vmem>>, vector<16x25xf32>
      tpu.vector_store %arg25[%c80_160, %c0_161], %184 {strides = array<i32>} : memref<216x128xf32, #tpu.memory_space<vmem>>, vector<16x25xf32>,
      %c2_i32_162 = arith.constant 2 : i32
      %186 = arith.addi %159, %c2_i32_162 : i32
      %187 = arith.index_cast %186 : i32 to index
      %c0_163 = arith.constant 0 : index
      %c0_164 = arith.constant 0 : index
      %188 = vector.load %arg21[%187, %c0_163, %c0_164] : memref<27x16x27xbf16, #tpu.memory_space<vmem>>, vector<1x16x27xbf16>
      %189 = vector.shape_cast %188 : vector<1x16x27xbf16> to vector<16x27xbf16>
      %190 = vector.extract_strided_slice %189 {offsets = [0, 0], sizes = [16, 25], strides = [1, 1]} : vector<16x27xbf16> to vector<16x25xbf16>
      %191 = arith.extf %190 : vector<16x25xbf16> to vector<16x25xf32>
      %c96_165 = arith.constant 96 : index
      %c0_166 = arith.constant 0 : index
      %192 = vector.load %arg25[%c96_165, %c0_166] : memref<216x128xf32, #tpu.memory_space<vmem>>, vector<16x25xf32>
      tpu.vector_store %arg25[%c96_165, %c0_166], %191 {strides = array<i32>} : memref<216x128xf32, #tpu.memory_space<vmem>>, vector<16x25xf32>,
      %193 = vector.extract_strided_slice %189 {offsets = [0, 1], sizes = [16, 25], strides = [1, 1]} : vector<16x27xbf16> to vector<16x25xbf16>
      %194 = arith.extf %193 : vector<16x25xbf16> to vector<16x25xf32>
      %c112_167 = arith.constant 112 : index
      %c0_168 = arith.constant 0 : index
      %195 = vector.load %arg25[%c112_167, %c0_168] : memref<216x128xf32, #tpu.memory_space<vmem>>, vector<16x25xf32>
      tpu.vector_store %arg25[%c112_167, %c0_168], %194 {strides = array<i32>} : memref<216x128xf32, #tpu.memory_space<vmem>>, vector<16x25xf32>,
      %196 = vector.extract_strided_slice %189 {offsets = [0, 2], sizes = [16, 25], strides = [1, 1]} : vector<16x27xbf16> to vector<16x25xbf16>
      %197 = arith.extf %196 : vector<16x25xbf16> to vector<16x25xf32>
      %c128_169 = arith.constant 128 : index
      %c0_170 = arith.constant 0 : index
      %198 = vector.load %arg25[%c128_169, %c0_170] : memref<216x128xf32, #tpu.memory_space<vmem>>, vector<16x25xf32>
      tpu.vector_store %arg25[%c128_169, %c0_170], %197 {strides = array<i32>} : memref<216x128xf32, #tpu.memory_space<vmem>>, vector<16x25xf32>,
      %c0_171 = arith.constant 0 : index
      %c0_172 = arith.constant 0 : index
      %199 = vector.load %arg25[%c0_171, %c0_172] : memref<216x128xf32, #tpu.memory_space<vmem>>, vector<144x25xf32>
      %200 = arith.truncf %199 : vector<144x25xf32> to vector<144x25xbf16>
      %cst_173 = arith.constant dense<0.000000e+00> : vector<16x25xf32>
      %201 = tpu.matmul %26, %200, %cst_173 {dimension_numbers = #tpu.dot_dimension_numbers<[1], [0], [0], [1], [0, 0, 1, 1], [], []>} : vector<16x144xbf16>, vector<144x25xbf16>, vector<16x25xf32> -> vector<16x25xf32>
      %202 = vector.broadcast %27 : vector<16x1xf32> to vector<16x25xf32>
      %203 = arith.addf %201, %202 : vector<16x25xf32>
      %cst_174 = arith.constant 0.000000e+00 : f32
      %204 = vector.broadcast %cst_174 : f32 to vector<16x25xf32>
      %205 = arith.maximumf %203, %204 : vector<16x25xf32>
      %206 = vector.broadcast %28 : vector<16x1xf32> to vector<16x25xf32>
      %207 = arith.mulf %205, %206 : vector<16x25xf32>
      %208 = vector.broadcast %29 : vector<16x1xf32> to vector<16x25xf32>
      %209 = arith.addf %207, %208 : vector<16x25xf32>
      %210 = arith.addf %157, %209 : vector<16x25xf32>
      %cst_175 = arith.constant 5.000000e-01 : f32
      %211 = vector.broadcast %cst_175 : f32 to vector<16x25xf32>
      %212 = arith.mulf %211, %210 : vector<16x25xf32>
      %213 = arith.truncf %212 : vector<16x25xf32> to vector<16x25xbf16>
      %cst_176 = arith.constant dense<0.000000e+00> : vector<16x14xf32>
      %214 = tpu.matmul %213, %30, %cst_176 {dimension_numbers = #tpu.dot_dimension_numbers<[1], [0], [0], [1], [0, 0, 1, 1], [], []>} : vector<16x25xbf16>, vector<25x14xbf16>, vector<16x14xf32> -> vector<16x14xf32>
      %215 = arith.truncf %214 : vector<16x14xf32> to vector<16x14xbf16>
      %c1_i32_177 = arith.constant 1 : i32
      %216 = arith.addi %arg26, %c1_i32_177 : i32
      %217 = arith.index_cast %216 : i32 to index
      %c0_178 = arith.constant 0 : index
      %c0_179 = arith.constant 0 : index
      %218 = vector.load %arg22[%217, %c0_178, %c0_179] : memref<14x16x14xbf16, #tpu.memory_space<vmem>>, vector<1x16x14xbf16>
      %219 = vector.shape_cast %218 : vector<1x16x14xbf16> to vector<16x14xbf16>
      %220 = vector.shape_cast %215 : vector<16x14xbf16> to vector<1x16x14xbf16>
      tpu.vector_store %arg22[%217, %c0_178, %c0_179], %220 {strides = array<i32>} : memref<14x16x14xbf16, #tpu.memory_space<vmem>>, vector<1x16x14xbf16>,
    }
    %c12_i32_50 = arith.constant 12 : i32
    %c0_51 = arith.constant 0 : index
    %c0_52 = arith.constant 0 : index
    %39 = vector.load %arg5[%c0_51, %c0_52] : memref<24x144xbf16, #tpu.memory_space<vmem>>, vector<24x144xbf16>
    %c0_53 = arith.constant 0 : index
    %c0_54 = arith.constant 0 : index
    %40 = vector.load %arg11[%c0_53, %c0_54] : memref<24x3xf32, #tpu.memory_space<vmem>>, vector<24x1xf32>
    %c0_55 = arith.constant 0 : index
    %c1_56 = arith.constant 1 : index
    %41 = vector.load %arg11[%c0_55, %c1_56] : memref<24x3xf32, #tpu.memory_space<vmem>>, vector<24x1xf32>
    %c0_57 = arith.constant 0 : index
    %c2_58 = arith.constant 2 : index
    %42 = vector.load %arg11[%c0_57, %c2_58] : memref<24x3xf32, #tpu.memory_space<vmem>>, vector<24x1xf32>
    %c0_59 = arith.constant 0 : index
    %c0_60 = arith.constant 0 : index
    %43 = vector.load %arg17[%c0_59, %c0_60] : memref<12x8xbf16, #tpu.memory_space<vmem>>, vector<12x8xbf16>
    %cst_61 = arith.constant 0.000000e+00 : bf16
    %44 = vector.broadcast %cst_61 : bf16 to vector<24x8xbf16>
    %c0_62 = arith.constant 0 : index
    %c0_63 = arith.constant 0 : index
    %c0_64 = arith.constant 0 : index
    %45 = vector.load %arg23[%c0_62, %c0_63, %c0_64] : memref<8x24x8xbf16, #tpu.memory_space<vmem>>, vector<1x24x8xbf16>
    %46 = vector.shape_cast %45 : vector<1x24x8xbf16> to vector<24x8xbf16>
    %47 = vector.shape_cast %44 : vector<24x8xbf16> to vector<1x24x8xbf16>
    tpu.vector_store %arg23[%c0_62, %c0_63, %c0_64], %47 {strides = array<i32>} : memref<8x24x8xbf16, #tpu.memory_space<vmem>>, vector<1x24x8xbf16>,
    %c7 = arith.constant 7 : index
    %c0_65 = arith.constant 0 : index
    %c0_66 = arith.constant 0 : index
    %48 = vector.load %arg23[%c7, %c0_65, %c0_66] : memref<8x24x8xbf16, #tpu.memory_space<vmem>>, vector<1x24x8xbf16>
    %49 = vector.shape_cast %48 : vector<1x24x8xbf16> to vector<24x8xbf16>
    %50 = vector.shape_cast %44 : vector<24x8xbf16> to vector<1x24x8xbf16>
    tpu.vector_store %arg23[%c7, %c0_65, %c0_66], %50 {strides = array<i32>} : memref<8x24x8xbf16, #tpu.memory_space<vmem>>, vector<1x24x8xbf16>,
    %c0_i32_67 = arith.constant 0 : i32
    %c6_i32 = arith.constant 6 : i32
    %51 = arith.addi %c0_i32_67, %c6_i32 : i32
    %c1_i32_68 = arith.constant 1 : i32
    scf.for %arg26 = %c0_i32_67 to %51 step %c1_i32_68  : i32 {
      %c2_i32 = arith.constant 2 : i32
      %107 = arith.muli %c2_i32, %arg26 : i32
      %c0_i32_117 = arith.constant 0 : i32
      %108 = arith.addi %107, %c0_i32_117 : i32
      %109 = arith.index_cast %108 : i32 to index
      %c0_118 = arith.constant 0 : index
      %c0_119 = arith.constant 0 : index
      %110 = vector.load %arg22[%109, %c0_118, %c0_119] : memref<14x16x14xbf16, #tpu.memory_space<vmem>>, vector<1x16x14xbf16>
      %111 = vector.shape_cast %110 : vector<1x16x14xbf16> to vector<16x14xbf16>
      %112 = vector.extract_strided_slice %111 {offsets = [0, 0], sizes = [16, 12], strides = [1, 1]} : vector<16x14xbf16> to vector<16x12xbf16>
      %113 = arith.extf %112 : vector<16x12xbf16> to vector<16x12xf32>
      %c0_120 = arith.constant 0 : index
      %c0_121 = arith.constant 0 : index
      %114 = vector.load %arg25[%c0_120, %c0_121] : memref<216x128xf32, #tpu.memory_space<vmem>>, vector<16x12xf32>
      tpu.vector_store %arg25[%c0_120, %c0_121], %113 {strides = array<i32>} : memref<216x128xf32, #tpu.memory_space<vmem>>, vector<16x12xf32>,
      %115 = vector.extract_strided_slice %111 {offsets = [0, 1], sizes = [16, 12], strides = [1, 1]} : vector<16x14xbf16> to vector<16x12xbf16>
      %116 = arith.extf %115 : vector<16x12xbf16> to vector<16x12xf32>
      %c16 = arith.constant 16 : index
      %c0_122 = arith.constant 0 : index
      %117 = vector.load %arg25[%c16, %c0_122] : memref<216x128xf32, #tpu.memory_space<vmem>>, vector<16x12xf32>
      tpu.vector_store %arg25[%c16, %c0_122], %116 {strides = array<i32>} : memref<216x128xf32, #tpu.memory_space<vmem>>, vector<16x12xf32>,
      %118 = vector.extract_strided_slice %111 {offsets = [0, 2], sizes = [16, 12], strides = [1, 1]} : vector<16x14xbf16> to vector<16x12xbf16>
      %119 = arith.extf %118 : vector<16x12xbf16> to vector<16x12xf32>
      %c32 = arith.constant 32 : index
      %c0_123 = arith.constant 0 : index
      %120 = vector.load %arg25[%c32, %c0_123] : memref<216x128xf32, #tpu.memory_space<vmem>>, vector<16x12xf32>
      tpu.vector_store %arg25[%c32, %c0_123], %119 {strides = array<i32>} : memref<216x128xf32, #tpu.memory_space<vmem>>, vector<16x12xf32>,
      %c1_i32_124 = arith.constant 1 : i32
      %121 = arith.addi %107, %c1_i32_124 : i32
      %122 = arith.index_cast %121 : i32 to index
      %c0_125 = arith.constant 0 : index
      %c0_126 = arith.constant 0 : index
      %123 = vector.load %arg22[%122, %c0_125, %c0_126] : memref<14x16x14xbf16, #tpu.memory_space<vmem>>, vector<1x16x14xbf16>
      %124 = vector.shape_cast %123 : vector<1x16x14xbf16> to vector<16x14xbf16>
      %125 = vector.extract_strided_slice %124 {offsets = [0, 0], sizes = [16, 12], strides = [1, 1]} : vector<16x14xbf16> to vector<16x12xbf16>
      %126 = arith.extf %125 : vector<16x12xbf16> to vector<16x12xf32>
      %c48_127 = arith.constant 48 : index
      %c0_128 = arith.constant 0 : index
      %127 = vector.load %arg25[%c48_127, %c0_128] : memref<216x128xf32, #tpu.memory_space<vmem>>, vector<16x12xf32>
      tpu.vector_store %arg25[%c48_127, %c0_128], %126 {strides = array<i32>} : memref<216x128xf32, #tpu.memory_space<vmem>>, vector<16x12xf32>,
      %128 = vector.extract_strided_slice %124 {offsets = [0, 1], sizes = [16, 12], strides = [1, 1]} : vector<16x14xbf16> to vector<16x12xbf16>
      %129 = arith.extf %128 : vector<16x12xbf16> to vector<16x12xf32>
      %c64 = arith.constant 64 : index
      %c0_129 = arith.constant 0 : index
      %130 = vector.load %arg25[%c64, %c0_129] : memref<216x128xf32, #tpu.memory_space<vmem>>, vector<16x12xf32>
      tpu.vector_store %arg25[%c64, %c0_129], %129 {strides = array<i32>} : memref<216x128xf32, #tpu.memory_space<vmem>>, vector<16x12xf32>,
      %131 = vector.extract_strided_slice %124 {offsets = [0, 2], sizes = [16, 12], strides = [1, 1]} : vector<16x14xbf16> to vector<16x12xbf16>
      %132 = arith.extf %131 : vector<16x12xbf16> to vector<16x12xf32>
      %c80 = arith.constant 80 : index
      %c0_130 = arith.constant 0 : index
      %133 = vector.load %arg25[%c80, %c0_130] : memref<216x128xf32, #tpu.memory_space<vmem>>, vector<16x12xf32>
      tpu.vector_store %arg25[%c80, %c0_130], %132 {strides = array<i32>} : memref<216x128xf32, #tpu.memory_space<vmem>>, vector<16x12xf32>,
      %c2_i32_131 = arith.constant 2 : i32
      %134 = arith.addi %107, %c2_i32_131 : i32
      %135 = arith.index_cast %134 : i32 to index
      %c0_132 = arith.constant 0 : index
      %c0_133 = arith.constant 0 : index
      %136 = vector.load %arg22[%135, %c0_132, %c0_133] : memref<14x16x14xbf16, #tpu.memory_space<vmem>>, vector<1x16x14xbf16>
      %137 = vector.shape_cast %136 : vector<1x16x14xbf16> to vector<16x14xbf16>
      %138 = vector.extract_strided_slice %137 {offsets = [0, 0], sizes = [16, 12], strides = [1, 1]} : vector<16x14xbf16> to vector<16x12xbf16>
      %139 = arith.extf %138 : vector<16x12xbf16> to vector<16x12xf32>
      %c96_134 = arith.constant 96 : index
      %c0_135 = arith.constant 0 : index
      %140 = vector.load %arg25[%c96_134, %c0_135] : memref<216x128xf32, #tpu.memory_space<vmem>>, vector<16x12xf32>
      tpu.vector_store %arg25[%c96_134, %c0_135], %139 {strides = array<i32>} : memref<216x128xf32, #tpu.memory_space<vmem>>, vector<16x12xf32>,
      %141 = vector.extract_strided_slice %137 {offsets = [0, 1], sizes = [16, 12], strides = [1, 1]} : vector<16x14xbf16> to vector<16x12xbf16>
      %142 = arith.extf %141 : vector<16x12xbf16> to vector<16x12xf32>
      %c112 = arith.constant 112 : index
      %c0_136 = arith.constant 0 : index
      %143 = vector.load %arg25[%c112, %c0_136] : memref<216x128xf32, #tpu.memory_space<vmem>>, vector<16x12xf32>
      tpu.vector_store %arg25[%c112, %c0_136], %142 {strides = array<i32>} : memref<216x128xf32, #tpu.memory_space<vmem>>, vector<16x12xf32>,
      %144 = vector.extract_strided_slice %137 {offsets = [0, 2], sizes = [16, 12], strides = [1, 1]} : vector<16x14xbf16> to vector<16x12xbf16>
      %145 = arith.extf %144 : vector<16x12xbf16> to vector<16x12xf32>
      %c128 = arith.constant 128 : index
      %c0_137 = arith.constant 0 : index
      %146 = vector.load %arg25[%c128, %c0_137] : memref<216x128xf32, #tpu.memory_space<vmem>>, vector<16x12xf32>
      tpu.vector_store %arg25[%c128, %c0_137], %145 {strides = array<i32>} : memref<216x128xf32, #tpu.memory_space<vmem>>, vector<16x12xf32>,
      %c0_138 = arith.constant 0 : index
      %c0_139 = arith.constant 0 : index
      %147 = vector.load %arg25[%c0_138, %c0_139] : memref<216x128xf32, #tpu.memory_space<vmem>>, vector<144x12xf32>
      %148 = arith.truncf %147 : vector<144x12xf32> to vector<144x12xbf16>
      %cst_140 = arith.constant dense<0.000000e+00> : vector<24x12xf32>
      %149 = tpu.matmul %39, %148, %cst_140 {dimension_numbers = #tpu.dot_dimension_numbers<[1], [0], [0], [1], [0, 0, 1, 1], [], []>} : vector<24x144xbf16>, vector<144x12xbf16>, vector<24x12xf32> -> vector<24x12xf32>
      %150 = vector.broadcast %40 : vector<24x1xf32> to vector<24x12xf32>
      %151 = arith.addf %149, %150 : vector<24x12xf32>
      %cst_141 = arith.constant 0.000000e+00 : f32
      %152 = vector.broadcast %cst_141 : f32 to vector<24x12xf32>
      %153 = arith.maximumf %151, %152 : vector<24x12xf32>
      %154 = vector.broadcast %41 : vector<24x1xf32> to vector<24x12xf32>
      %155 = arith.mulf %153, %154 : vector<24x12xf32>
      %156 = vector.broadcast %42 : vector<24x1xf32> to vector<24x12xf32>
      %157 = arith.addf %155, %156 : vector<24x12xf32>
      %c2_i32_142 = arith.constant 2 : i32
      %158 = arith.muli %c2_i32_142, %arg26 : i32
      %c1_i32_143 = arith.constant 1 : i32
      %159 = arith.addi %158, %c1_i32_143 : i32
      %c0_i32_144 = arith.constant 0 : i32
      %160 = arith.addi %159, %c0_i32_144 : i32
      %161 = arith.index_cast %160 : i32 to index
      %c0_145 = arith.constant 0 : index
      %c0_146 = arith.constant 0 : index
      %162 = vector.load %arg22[%161, %c0_145, %c0_146] : memref<14x16x14xbf16, #tpu.memory_space<vmem>>, vector<1x16x14xbf16>
      %163 = vector.shape_cast %162 : vector<1x16x14xbf16> to vector<16x14xbf16>
      %164 = vector.extract_strided_slice %163 {offsets = [0, 0], sizes = [16, 12], strides = [1, 1]} : vector<16x14xbf16> to vector<16x12xbf16>
      %165 = arith.extf %164 : vector<16x12xbf16> to vector<16x12xf32>
      %c0_147 = arith.constant 0 : index
      %c0_148 = arith.constant 0 : index
      %166 = vector.load %arg25[%c0_147, %c0_148] : memref<216x128xf32, #tpu.memory_space<vmem>>, vector<16x12xf32>
      tpu.vector_store %arg25[%c0_147, %c0_148], %165 {strides = array<i32>} : memref<216x128xf32, #tpu.memory_space<vmem>>, vector<16x12xf32>,
      %167 = vector.extract_strided_slice %163 {offsets = [0, 1], sizes = [16, 12], strides = [1, 1]} : vector<16x14xbf16> to vector<16x12xbf16>
      %168 = arith.extf %167 : vector<16x12xbf16> to vector<16x12xf32>
      %c16_149 = arith.constant 16 : index
      %c0_150 = arith.constant 0 : index
      %169 = vector.load %arg25[%c16_149, %c0_150] : memref<216x128xf32, #tpu.memory_space<vmem>>, vector<16x12xf32>
      tpu.vector_store %arg25[%c16_149, %c0_150], %168 {strides = array<i32>} : memref<216x128xf32, #tpu.memory_space<vmem>>, vector<16x12xf32>,
      %170 = vector.extract_strided_slice %163 {offsets = [0, 2], sizes = [16, 12], strides = [1, 1]} : vector<16x14xbf16> to vector<16x12xbf16>
      %171 = arith.extf %170 : vector<16x12xbf16> to vector<16x12xf32>
      %c32_151 = arith.constant 32 : index
      %c0_152 = arith.constant 0 : index
      %172 = vector.load %arg25[%c32_151, %c0_152] : memref<216x128xf32, #tpu.memory_space<vmem>>, vector<16x12xf32>
      tpu.vector_store %arg25[%c32_151, %c0_152], %171 {strides = array<i32>} : memref<216x128xf32, #tpu.memory_space<vmem>>, vector<16x12xf32>,
      %c1_i32_153 = arith.constant 1 : i32
      %173 = arith.addi %159, %c1_i32_153 : i32
      %174 = arith.index_cast %173 : i32 to index
      %c0_154 = arith.constant 0 : index
      %c0_155 = arith.constant 0 : index
      %175 = vector.load %arg22[%174, %c0_154, %c0_155] : memref<14x16x14xbf16, #tpu.memory_space<vmem>>, vector<1x16x14xbf16>
      %176 = vector.shape_cast %175 : vector<1x16x14xbf16> to vector<16x14xbf16>
      %177 = vector.extract_strided_slice %176 {offsets = [0, 0], sizes = [16, 12], strides = [1, 1]} : vector<16x14xbf16> to vector<16x12xbf16>
      %178 = arith.extf %177 : vector<16x12xbf16> to vector<16x12xf32>
      %c48_156 = arith.constant 48 : index
      %c0_157 = arith.constant 0 : index
      %179 = vector.load %arg25[%c48_156, %c0_157] : memref<216x128xf32, #tpu.memory_space<vmem>>, vector<16x12xf32>
      tpu.vector_store %arg25[%c48_156, %c0_157], %178 {strides = array<i32>} : memref<216x128xf32, #tpu.memory_space<vmem>>, vector<16x12xf32>,
      %180 = vector.extract_strided_slice %176 {offsets = [0, 1], sizes = [16, 12], strides = [1, 1]} : vector<16x14xbf16> to vector<16x12xbf16>
      %181 = arith.extf %180 : vector<16x12xbf16> to vector<16x12xf32>
      %c64_158 = arith.constant 64 : index
      %c0_159 = arith.constant 0 : index
      %182 = vector.load %arg25[%c64_158, %c0_159] : memref<216x128xf32, #tpu.memory_space<vmem>>, vector<16x12xf32>
      tpu.vector_store %arg25[%c64_158, %c0_159], %181 {strides = array<i32>} : memref<216x128xf32, #tpu.memory_space<vmem>>, vector<16x12xf32>,
      %183 = vector.extract_strided_slice %176 {offsets = [0, 2], sizes = [16, 12], strides = [1, 1]} : vector<16x14xbf16> to vector<16x12xbf16>
      %184 = arith.extf %183 : vector<16x12xbf16> to vector<16x12xf32>
      %c80_160 = arith.constant 80 : index
      %c0_161 = arith.constant 0 : index
      %185 = vector.load %arg25[%c80_160, %c0_161] : memref<216x128xf32, #tpu.memory_space<vmem>>, vector<16x12xf32>
      tpu.vector_store %arg25[%c80_160, %c0_161], %184 {strides = array<i32>} : memref<216x128xf32, #tpu.memory_space<vmem>>, vector<16x12xf32>,
      %c2_i32_162 = arith.constant 2 : i32
      %186 = arith.addi %159, %c2_i32_162 : i32
      %187 = arith.index_cast %186 : i32 to index
      %c0_163 = arith.constant 0 : index
      %c0_164 = arith.constant 0 : index
      %188 = vector.load %arg22[%187, %c0_163, %c0_164] : memref<14x16x14xbf16, #tpu.memory_space<vmem>>, vector<1x16x14xbf16>
      %189 = vector.shape_cast %188 : vector<1x16x14xbf16> to vector<16x14xbf16>
      %190 = vector.extract_strided_slice %189 {offsets = [0, 0], sizes = [16, 12], strides = [1, 1]} : vector<16x14xbf16> to vector<16x12xbf16>
      %191 = arith.extf %190 : vector<16x12xbf16> to vector<16x12xf32>
      %c96_165 = arith.constant 96 : index
      %c0_166 = arith.constant 0 : index
      %192 = vector.load %arg25[%c96_165, %c0_166] : memref<216x128xf32, #tpu.memory_space<vmem>>, vector<16x12xf32>
      tpu.vector_store %arg25[%c96_165, %c0_166], %191 {strides = array<i32>} : memref<216x128xf32, #tpu.memory_space<vmem>>, vector<16x12xf32>,
      %193 = vector.extract_strided_slice %189 {offsets = [0, 1], sizes = [16, 12], strides = [1, 1]} : vector<16x14xbf16> to vector<16x12xbf16>
      %194 = arith.extf %193 : vector<16x12xbf16> to vector<16x12xf32>
      %c112_167 = arith.constant 112 : index
      %c0_168 = arith.constant 0 : index
      %195 = vector.load %arg25[%c112_167, %c0_168] : memref<216x128xf32, #tpu.memory_space<vmem>>, vector<16x12xf32>
      tpu.vector_store %arg25[%c112_167, %c0_168], %194 {strides = array<i32>} : memref<216x128xf32, #tpu.memory_space<vmem>>, vector<16x12xf32>,
      %196 = vector.extract_strided_slice %189 {offsets = [0, 2], sizes = [16, 12], strides = [1, 1]} : vector<16x14xbf16> to vector<16x12xbf16>
      %197 = arith.extf %196 : vector<16x12xbf16> to vector<16x12xf32>
      %c128_169 = arith.constant 128 : index
      %c0_170 = arith.constant 0 : index
      %198 = vector.load %arg25[%c128_169, %c0_170] : memref<216x128xf32, #tpu.memory_space<vmem>>, vector<16x12xf32>
      tpu.vector_store %arg25[%c128_169, %c0_170], %197 {strides = array<i32>} : memref<216x128xf32, #tpu.memory_space<vmem>>, vector<16x12xf32>,
      %c0_171 = arith.constant 0 : index
      %c0_172 = arith.constant 0 : index
      %199 = vector.load %arg25[%c0_171, %c0_172] : memref<216x128xf32, #tpu.memory_space<vmem>>, vector<144x12xf32>
      %200 = arith.truncf %199 : vector<144x12xf32> to vector<144x12xbf16>
      %cst_173 = arith.constant dense<0.000000e+00> : vector<24x12xf32>
      %201 = tpu.matmul %39, %200, %cst_173 {dimension_numbers = #tpu.dot_dimension_numbers<[1], [0], [0], [1], [0, 0, 1, 1], [], []>} : vector<24x144xbf16>, vector<144x12xbf16>, vector<24x12xf32> -> vector<24x12xf32>
      %202 = vector.broadcast %40 : vector<24x1xf32> to vector<24x12xf32>
      %203 = arith.addf %201, %202 : vector<24x12xf32>
      %cst_174 = arith.constant 0.000000e+00 : f32
      %204 = vector.broadcast %cst_174 : f32 to vector<24x12xf32>
      %205 = arith.maximumf %203, %204 : vector<24x12xf32>
      %206 = vector.broadcast %41 : vector<24x1xf32> to vector<24x12xf32>
      %207 = arith.mulf %205, %206 : vector<24x12xf32>
      %208 = vector.broadcast %42 : vector<24x1xf32> to vector<24x12xf32>
      %209 = arith.addf %207, %208 : vector<24x12xf32>
      %210 = arith.addf %157, %209 : vector<24x12xf32>
      %cst_175 = arith.constant 5.000000e-01 : f32
      %211 = vector.broadcast %cst_175 : f32 to vector<24x12xf32>
      %212 = arith.mulf %211, %210 : vector<24x12xf32>
      %213 = arith.truncf %212 : vector<24x12xf32> to vector<24x12xbf16>
      %cst_176 = arith.constant dense<0.000000e+00> : vector<24x8xf32>
      %214 = tpu.matmul %213, %43, %cst_176 {dimension_numbers = #tpu.dot_dimension_numbers<[1], [0], [0], [1], [0, 0, 1, 1], [], []>} : vector<24x12xbf16>, vector<12x8xbf16>, vector<24x8xf32> -> vector<24x8xf32>
      %215 = arith.truncf %214 : vector<24x8xf32> to vector<24x8xbf16>
      %c1_i32_177 = arith.constant 1 : i32
      %216 = arith.addi %arg26, %c1_i32_177 : i32
      %217 = arith.index_cast %216 : i32 to index
      %c0_178 = arith.constant 0 : index
      %c0_179 = arith.constant 0 : index
      %218 = vector.load %arg23[%217, %c0_178, %c0_179] : memref<8x24x8xbf16, #tpu.memory_space<vmem>>, vector<1x24x8xbf16>
      %219 = vector.shape_cast %218 : vector<1x24x8xbf16> to vector<24x8xbf16>
      %220 = vector.shape_cast %215 : vector<24x8xbf16> to vector<1x24x8xbf16>
      tpu.vector_store %arg23[%217, %c0_178, %c0_179], %220 {strides = array<i32>} : memref<8x24x8xbf16, #tpu.memory_space<vmem>>, vector<1x24x8xbf16>,
    }
    %c6_i32_69 = arith.constant 6 : i32
    %c0_70 = arith.constant 0 : index
    %c0_71 = arith.constant 0 : index
    %52 = vector.load %arg6[%c0_70, %c0_71] : memref<24x216xbf16, #tpu.memory_space<vmem>>, vector<24x216xbf16>
    %c0_72 = arith.constant 0 : index
    %c0_73 = arith.constant 0 : index
    %53 = vector.load %arg12[%c0_72, %c0_73] : memref<24x3xf32, #tpu.memory_space<vmem>>, vector<24x1xf32>
    %c0_74 = arith.constant 0 : index
    %c1_75 = arith.constant 1 : index
    %54 = vector.load %arg12[%c0_74, %c1_75] : memref<24x3xf32, #tpu.memory_space<vmem>>, vector<24x1xf32>
    %c0_76 = arith.constant 0 : index
    %c2_77 = arith.constant 2 : index
    %55 = vector.load %arg12[%c0_76, %c2_77] : memref<24x3xf32, #tpu.memory_space<vmem>>, vector<24x1xf32>
    %c0_78 = arith.constant 0 : index
    %c0_79 = arith.constant 0 : index
    %56 = vector.load %arg18[%c0_78, %c0_79] : memref<6x5xbf16, #tpu.memory_space<vmem>>, vector<6x5xbf16>
    %cst_80 = arith.constant 0.000000e+00 : bf16
    %57 = vector.broadcast %cst_80 : bf16 to vector<24x5xbf16>
    %c0_81 = arith.constant 0 : index
    %c0_82 = arith.constant 0 : index
    %c0_83 = arith.constant 0 : index
    %58 = vector.load %arg24[%c0_81, %c0_82, %c0_83] : memref<5x24x5xbf16, #tpu.memory_space<vmem>>, vector<1x24x5xbf16>
    %59 = vector.shape_cast %58 : vector<1x24x5xbf16> to vector<24x5xbf16>
    %60 = vector.shape_cast %57 : vector<24x5xbf16> to vector<1x24x5xbf16>
    tpu.vector_store %arg24[%c0_81, %c0_82, %c0_83], %60 {strides = array<i32>} : memref<5x24x5xbf16, #tpu.memory_space<vmem>>, vector<1x24x5xbf16>,
    %c4 = arith.constant 4 : index
    %c0_84 = arith.constant 0 : index
    %c0_85 = arith.constant 0 : index
    %61 = vector.load %arg24[%c4, %c0_84, %c0_85] : memref<5x24x5xbf16, #tpu.memory_space<vmem>>, vector<1x24x5xbf16>
    %62 = vector.shape_cast %61 : vector<1x24x5xbf16> to vector<24x5xbf16>
    %63 = vector.shape_cast %57 : vector<24x5xbf16> to vector<1x24x5xbf16>
    tpu.vector_store %arg24[%c4, %c0_84, %c0_85], %63 {strides = array<i32>} : memref<5x24x5xbf16, #tpu.memory_space<vmem>>, vector<1x24x5xbf16>,
    %c0_i32_86 = arith.constant 0 : i32
    %c3_i32 = arith.constant 3 : i32
    %64 = arith.addi %c0_i32_86, %c3_i32 : i32
    %c1_i32_87 = arith.constant 1 : i32
    scf.for %arg26 = %c0_i32_86 to %64 step %c1_i32_87  : i32 {
      %c2_i32 = arith.constant 2 : i32
      %107 = arith.muli %c2_i32, %arg26 : i32
      %c0_i32_117 = arith.constant 0 : i32
      %108 = arith.addi %107, %c0_i32_117 : i32
      %109 = arith.index_cast %108 : i32 to index
      %c0_118 = arith.constant 0 : index
      %c0_119 = arith.constant 0 : index
      %110 = vector.load %arg23[%109, %c0_118, %c0_119] : memref<8x24x8xbf16, #tpu.memory_space<vmem>>, vector<1x24x8xbf16>
      %111 = vector.shape_cast %110 : vector<1x24x8xbf16> to vector<24x8xbf16>
      %112 = vector.extract_strided_slice %111 {offsets = [0, 0], sizes = [24, 6], strides = [1, 1]} : vector<24x8xbf16> to vector<24x6xbf16>
      %113 = arith.extf %112 : vector<24x6xbf16> to vector<24x6xf32>
      %c0_120 = arith.constant 0 : index
      %c0_121 = arith.constant 0 : index
      %114 = vector.load %arg25[%c0_120, %c0_121] : memref<216x128xf32, #tpu.memory_space<vmem>>, vector<24x6xf32>
      tpu.vector_store %arg25[%c0_120, %c0_121], %113 {strides = array<i32>} : memref<216x128xf32, #tpu.memory_space<vmem>>, vector<24x6xf32>,
      %115 = vector.extract_strided_slice %111 {offsets = [0, 1], sizes = [24, 6], strides = [1, 1]} : vector<24x8xbf16> to vector<24x6xbf16>
      %116 = arith.extf %115 : vector<24x6xbf16> to vector<24x6xf32>
      %c24_122 = arith.constant 24 : index
      %c0_123 = arith.constant 0 : index
      %117 = vector.load %arg25[%c24_122, %c0_123] : memref<216x128xf32, #tpu.memory_space<vmem>>, vector<24x6xf32>
      tpu.vector_store %arg25[%c24_122, %c0_123], %116 {strides = array<i32>} : memref<216x128xf32, #tpu.memory_space<vmem>>, vector<24x6xf32>,
      %118 = vector.extract_strided_slice %111 {offsets = [0, 2], sizes = [24, 6], strides = [1, 1]} : vector<24x8xbf16> to vector<24x6xbf16>
      %119 = arith.extf %118 : vector<24x6xbf16> to vector<24x6xf32>
      %c48_124 = arith.constant 48 : index
      %c0_125 = arith.constant 0 : index
      %120 = vector.load %arg25[%c48_124, %c0_125] : memref<216x128xf32, #tpu.memory_space<vmem>>, vector<24x6xf32>
      tpu.vector_store %arg25[%c48_124, %c0_125], %119 {strides = array<i32>} : memref<216x128xf32, #tpu.memory_space<vmem>>, vector<24x6xf32>,
      %c1_i32_126 = arith.constant 1 : i32
      %121 = arith.addi %107, %c1_i32_126 : i32
      %122 = arith.index_cast %121 : i32 to index
      %c0_127 = arith.constant 0 : index
      %c0_128 = arith.constant 0 : index
      %123 = vector.load %arg23[%122, %c0_127, %c0_128] : memref<8x24x8xbf16, #tpu.memory_space<vmem>>, vector<1x24x8xbf16>
      %124 = vector.shape_cast %123 : vector<1x24x8xbf16> to vector<24x8xbf16>
      %125 = vector.extract_strided_slice %124 {offsets = [0, 0], sizes = [24, 6], strides = [1, 1]} : vector<24x8xbf16> to vector<24x6xbf16>
      %126 = arith.extf %125 : vector<24x6xbf16> to vector<24x6xf32>
      %c72_129 = arith.constant 72 : index
      %c0_130 = arith.constant 0 : index
      %127 = vector.load %arg25[%c72_129, %c0_130] : memref<216x128xf32, #tpu.memory_space<vmem>>, vector<24x6xf32>
      tpu.vector_store %arg25[%c72_129, %c0_130], %126 {strides = array<i32>} : memref<216x128xf32, #tpu.memory_space<vmem>>, vector<24x6xf32>,
      %128 = vector.extract_strided_slice %124 {offsets = [0, 1], sizes = [24, 6], strides = [1, 1]} : vector<24x8xbf16> to vector<24x6xbf16>
      %129 = arith.extf %128 : vector<24x6xbf16> to vector<24x6xf32>
      %c96_131 = arith.constant 96 : index
      %c0_132 = arith.constant 0 : index
      %130 = vector.load %arg25[%c96_131, %c0_132] : memref<216x128xf32, #tpu.memory_space<vmem>>, vector<24x6xf32>
      tpu.vector_store %arg25[%c96_131, %c0_132], %129 {strides = array<i32>} : memref<216x128xf32, #tpu.memory_space<vmem>>, vector<24x6xf32>,
      %131 = vector.extract_strided_slice %124 {offsets = [0, 2], sizes = [24, 6], strides = [1, 1]} : vector<24x8xbf16> to vector<24x6xbf16>
      %132 = arith.extf %131 : vector<24x6xbf16> to vector<24x6xf32>
      %c120_133 = arith.constant 120 : index
      %c0_134 = arith.constant 0 : index
      %133 = vector.load %arg25[%c120_133, %c0_134] : memref<216x128xf32, #tpu.memory_space<vmem>>, vector<24x6xf32>
      tpu.vector_store %arg25[%c120_133, %c0_134], %132 {strides = array<i32>} : memref<216x128xf32, #tpu.memory_space<vmem>>, vector<24x6xf32>,
      %c2_i32_135 = arith.constant 2 : i32
      %134 = arith.addi %107, %c2_i32_135 : i32
      %135 = arith.index_cast %134 : i32 to index
      %c0_136 = arith.constant 0 : index
      %c0_137 = arith.constant 0 : index
      %136 = vector.load %arg23[%135, %c0_136, %c0_137] : memref<8x24x8xbf16, #tpu.memory_space<vmem>>, vector<1x24x8xbf16>
      %137 = vector.shape_cast %136 : vector<1x24x8xbf16> to vector<24x8xbf16>
      %138 = vector.extract_strided_slice %137 {offsets = [0, 0], sizes = [24, 6], strides = [1, 1]} : vector<24x8xbf16> to vector<24x6xbf16>
      %139 = arith.extf %138 : vector<24x6xbf16> to vector<24x6xf32>
      %c144_138 = arith.constant 144 : index
      %c0_139 = arith.constant 0 : index
      %140 = vector.load %arg25[%c144_138, %c0_139] : memref<216x128xf32, #tpu.memory_space<vmem>>, vector<24x6xf32>
      tpu.vector_store %arg25[%c144_138, %c0_139], %139 {strides = array<i32>} : memref<216x128xf32, #tpu.memory_space<vmem>>, vector<24x6xf32>,
      %141 = vector.extract_strided_slice %137 {offsets = [0, 1], sizes = [24, 6], strides = [1, 1]} : vector<24x8xbf16> to vector<24x6xbf16>
      %142 = arith.extf %141 : vector<24x6xbf16> to vector<24x6xf32>
      %c168_140 = arith.constant 168 : index
      %c0_141 = arith.constant 0 : index
      %143 = vector.load %arg25[%c168_140, %c0_141] : memref<216x128xf32, #tpu.memory_space<vmem>>, vector<24x6xf32>
      tpu.vector_store %arg25[%c168_140, %c0_141], %142 {strides = array<i32>} : memref<216x128xf32, #tpu.memory_space<vmem>>, vector<24x6xf32>,
      %144 = vector.extract_strided_slice %137 {offsets = [0, 2], sizes = [24, 6], strides = [1, 1]} : vector<24x8xbf16> to vector<24x6xbf16>
      %145 = arith.extf %144 : vector<24x6xbf16> to vector<24x6xf32>
      %c192_142 = arith.constant 192 : index
      %c0_143 = arith.constant 0 : index
      %146 = vector.load %arg25[%c192_142, %c0_143] : memref<216x128xf32, #tpu.memory_space<vmem>>, vector<24x6xf32>
      tpu.vector_store %arg25[%c192_142, %c0_143], %145 {strides = array<i32>} : memref<216x128xf32, #tpu.memory_space<vmem>>, vector<24x6xf32>,
      %c0_144 = arith.constant 0 : index
      %c0_145 = arith.constant 0 : index
      %147 = vector.load %arg25[%c0_144, %c0_145] : memref<216x128xf32, #tpu.memory_space<vmem>>, vector<216x6xf32>
      %148 = arith.truncf %147 : vector<216x6xf32> to vector<216x6xbf16>
      %cst_146 = arith.constant dense<0.000000e+00> : vector<24x6xf32>
      %149 = tpu.matmul %52, %148, %cst_146 {dimension_numbers = #tpu.dot_dimension_numbers<[1], [0], [0], [1], [0, 0, 1, 1], [], []>} : vector<24x216xbf16>, vector<216x6xbf16>, vector<24x6xf32> -> vector<24x6xf32>
      %150 = vector.broadcast %53 : vector<24x1xf32> to vector<24x6xf32>
      %151 = arith.addf %149, %150 : vector<24x6xf32>
      %cst_147 = arith.constant 0.000000e+00 : f32
      %152 = vector.broadcast %cst_147 : f32 to vector<24x6xf32>
      %153 = arith.maximumf %151, %152 : vector<24x6xf32>
      %154 = vector.broadcast %54 : vector<24x1xf32> to vector<24x6xf32>
      %155 = arith.mulf %153, %154 : vector<24x6xf32>
      %156 = vector.broadcast %55 : vector<24x1xf32> to vector<24x6xf32>
      %157 = arith.addf %155, %156 : vector<24x6xf32>
      %c2_i32_148 = arith.constant 2 : i32
      %158 = arith.muli %c2_i32_148, %arg26 : i32
      %c1_i32_149 = arith.constant 1 : i32
      %159 = arith.addi %158, %c1_i32_149 : i32
      %c0_i32_150 = arith.constant 0 : i32
      %160 = arith.addi %159, %c0_i32_150 : i32
      %161 = arith.index_cast %160 : i32 to index
      %c0_151 = arith.constant 0 : index
      %c0_152 = arith.constant 0 : index
      %162 = vector.load %arg23[%161, %c0_151, %c0_152] : memref<8x24x8xbf16, #tpu.memory_space<vmem>>, vector<1x24x8xbf16>
      %163 = vector.shape_cast %162 : vector<1x24x8xbf16> to vector<24x8xbf16>
      %164 = vector.extract_strided_slice %163 {offsets = [0, 0], sizes = [24, 6], strides = [1, 1]} : vector<24x8xbf16> to vector<24x6xbf16>
      %165 = arith.extf %164 : vector<24x6xbf16> to vector<24x6xf32>
      %c0_153 = arith.constant 0 : index
      %c0_154 = arith.constant 0 : index
      %166 = vector.load %arg25[%c0_153, %c0_154] : memref<216x128xf32, #tpu.memory_space<vmem>>, vector<24x6xf32>
      tpu.vector_store %arg25[%c0_153, %c0_154], %165 {strides = array<i32>} : memref<216x128xf32, #tpu.memory_space<vmem>>, vector<24x6xf32>,
      %167 = vector.extract_strided_slice %163 {offsets = [0, 1], sizes = [24, 6], strides = [1, 1]} : vector<24x8xbf16> to vector<24x6xbf16>
      %168 = arith.extf %167 : vector<24x6xbf16> to vector<24x6xf32>
      %c24_155 = arith.constant 24 : index
      %c0_156 = arith.constant 0 : index
      %169 = vector.load %arg25[%c24_155, %c0_156] : memref<216x128xf32, #tpu.memory_space<vmem>>, vector<24x6xf32>
      tpu.vector_store %arg25[%c24_155, %c0_156], %168 {strides = array<i32>} : memref<216x128xf32, #tpu.memory_space<vmem>>, vector<24x6xf32>,
      %170 = vector.extract_strided_slice %163 {offsets = [0, 2], sizes = [24, 6], strides = [1, 1]} : vector<24x8xbf16> to vector<24x6xbf16>
      %171 = arith.extf %170 : vector<24x6xbf16> to vector<24x6xf32>
      %c48_157 = arith.constant 48 : index
      %c0_158 = arith.constant 0 : index
      %172 = vector.load %arg25[%c48_157, %c0_158] : memref<216x128xf32, #tpu.memory_space<vmem>>, vector<24x6xf32>
      tpu.vector_store %arg25[%c48_157, %c0_158], %171 {strides = array<i32>} : memref<216x128xf32, #tpu.memory_space<vmem>>, vector<24x6xf32>,
      %c1_i32_159 = arith.constant 1 : i32
      %173 = arith.addi %159, %c1_i32_159 : i32
      %174 = arith.index_cast %173 : i32 to index
      %c0_160 = arith.constant 0 : index
      %c0_161 = arith.constant 0 : index
      %175 = vector.load %arg23[%174, %c0_160, %c0_161] : memref<8x24x8xbf16, #tpu.memory_space<vmem>>, vector<1x24x8xbf16>
      %176 = vector.shape_cast %175 : vector<1x24x8xbf16> to vector<24x8xbf16>
      %177 = vector.extract_strided_slice %176 {offsets = [0, 0], sizes = [24, 6], strides = [1, 1]} : vector<24x8xbf16> to vector<24x6xbf16>
      %178 = arith.extf %177 : vector<24x6xbf16> to vector<24x6xf32>
      %c72_162 = arith.constant 72 : index
      %c0_163 = arith.constant 0 : index
      %179 = vector.load %arg25[%c72_162, %c0_163] : memref<216x128xf32, #tpu.memory_space<vmem>>, vector<24x6xf32>
      tpu.vector_store %arg25[%c72_162, %c0_163], %178 {strides = array<i32>} : memref<216x128xf32, #tpu.memory_space<vmem>>, vector<24x6xf32>,
      %180 = vector.extract_strided_slice %176 {offsets = [0, 1], sizes = [24, 6], strides = [1, 1]} : vector<24x8xbf16> to vector<24x6xbf16>
      %181 = arith.extf %180 : vector<24x6xbf16> to vector<24x6xf32>
      %c96_164 = arith.constant 96 : index
      %c0_165 = arith.constant 0 : index
      %182 = vector.load %arg25[%c96_164, %c0_165] : memref<216x128xf32, #tpu.memory_space<vmem>>, vector<24x6xf32>
      tpu.vector_store %arg25[%c96_164, %c0_165], %181 {strides = array<i32>} : memref<216x128xf32, #tpu.memory_space<vmem>>, vector<24x6xf32>,
      %183 = vector.extract_strided_slice %176 {offsets = [0, 2], sizes = [24, 6], strides = [1, 1]} : vector<24x8xbf16> to vector<24x6xbf16>
      %184 = arith.extf %183 : vector<24x6xbf16> to vector<24x6xf32>
      %c120_166 = arith.constant 120 : index
      %c0_167 = arith.constant 0 : index
      %185 = vector.load %arg25[%c120_166, %c0_167] : memref<216x128xf32, #tpu.memory_space<vmem>>, vector<24x6xf32>
      tpu.vector_store %arg25[%c120_166, %c0_167], %184 {strides = array<i32>} : memref<216x128xf32, #tpu.memory_space<vmem>>, vector<24x6xf32>,
      %c2_i32_168 = arith.constant 2 : i32
      %186 = arith.addi %159, %c2_i32_168 : i32
      %187 = arith.index_cast %186 : i32 to index
      %c0_169 = arith.constant 0 : index
      %c0_170 = arith.constant 0 : index
      %188 = vector.load %arg23[%187, %c0_169, %c0_170] : memref<8x24x8xbf16, #tpu.memory_space<vmem>>, vector<1x24x8xbf16>
      %189 = vector.shape_cast %188 : vector<1x24x8xbf16> to vector<24x8xbf16>
      %190 = vector.extract_strided_slice %189 {offsets = [0, 0], sizes = [24, 6], strides = [1, 1]} : vector<24x8xbf16> to vector<24x6xbf16>
      %191 = arith.extf %190 : vector<24x6xbf16> to vector<24x6xf32>
      %c144_171 = arith.constant 144 : index
      %c0_172 = arith.constant 0 : index
      %192 = vector.load %arg25[%c144_171, %c0_172] : memref<216x128xf32, #tpu.memory_space<vmem>>, vector<24x6xf32>
      tpu.vector_store %arg25[%c144_171, %c0_172], %191 {strides = array<i32>} : memref<216x128xf32, #tpu.memory_space<vmem>>, vector<24x6xf32>,
      %193 = vector.extract_strided_slice %189 {offsets = [0, 1], sizes = [24, 6], strides = [1, 1]} : vector<24x8xbf16> to vector<24x6xbf16>
      %194 = arith.extf %193 : vector<24x6xbf16> to vector<24x6xf32>
      %c168_173 = arith.constant 168 : index
      %c0_174 = arith.constant 0 : index
      %195 = vector.load %arg25[%c168_173, %c0_174] : memref<216x128xf32, #tpu.memory_space<vmem>>, vector<24x6xf32>
      tpu.vector_store %arg25[%c168_173, %c0_174], %194 {strides = array<i32>} : memref<216x128xf32, #tpu.memory_space<vmem>>, vector<24x6xf32>,
      %196 = vector.extract_strided_slice %189 {offsets = [0, 2], sizes = [24, 6], strides = [1, 1]} : vector<24x8xbf16> to vector<24x6xbf16>
      %197 = arith.extf %196 : vector<24x6xbf16> to vector<24x6xf32>
      %c192_175 = arith.constant 192 : index
      %c0_176 = arith.constant 0 : index
      %198 = vector.load %arg25[%c192_175, %c0_176] : memref<216x128xf32, #tpu.memory_space<vmem>>, vector<24x6xf32>
      tpu.vector_store %arg25[%c192_175, %c0_176], %197 {strides = array<i32>} : memref<216x128xf32, #tpu.memory_space<vmem>>, vector<24x6xf32>,
      %c0_177 = arith.constant 0 : index
      %c0_178 = arith.constant 0 : index
      %199 = vector.load %arg25[%c0_177, %c0_178] : memref<216x128xf32, #tpu.memory_space<vmem>>, vector<216x6xf32>
      %200 = arith.truncf %199 : vector<216x6xf32> to vector<216x6xbf16>
      %cst_179 = arith.constant dense<0.000000e+00> : vector<24x6xf32>
      %201 = tpu.matmul %52, %200, %cst_179 {dimension_numbers = #tpu.dot_dimension_numbers<[1], [0], [0], [1], [0, 0, 1, 1], [], []>} : vector<24x216xbf16>, vector<216x6xbf16>, vector<24x6xf32> -> vector<24x6xf32>
      %202 = vector.broadcast %53 : vector<24x1xf32> to vector<24x6xf32>
      %203 = arith.addf %201, %202 : vector<24x6xf32>
      %cst_180 = arith.constant 0.000000e+00 : f32
      %204 = vector.broadcast %cst_180 : f32 to vector<24x6xf32>
      %205 = arith.maximumf %203, %204 : vector<24x6xf32>
      %206 = vector.broadcast %54 : vector<24x1xf32> to vector<24x6xf32>
      %207 = arith.mulf %205, %206 : vector<24x6xf32>
      %208 = vector.broadcast %55 : vector<24x1xf32> to vector<24x6xf32>
      %209 = arith.addf %207, %208 : vector<24x6xf32>
      %210 = arith.addf %157, %209 : vector<24x6xf32>
      %cst_181 = arith.constant 5.000000e-01 : f32
      %211 = vector.broadcast %cst_181 : f32 to vector<24x6xf32>
      %212 = arith.mulf %211, %210 : vector<24x6xf32>
      %213 = arith.truncf %212 : vector<24x6xf32> to vector<24x6xbf16>
      %cst_182 = arith.constant dense<0.000000e+00> : vector<24x5xf32>
      %214 = tpu.matmul %213, %56, %cst_182 {dimension_numbers = #tpu.dot_dimension_numbers<[1], [0], [0], [1], [0, 0, 1, 1], [], []>} : vector<24x6xbf16>, vector<6x5xbf16>, vector<24x5xf32> -> vector<24x5xf32>
      %215 = arith.truncf %214 : vector<24x5xf32> to vector<24x5xbf16>
      %c1_i32_183 = arith.constant 1 : i32
      %216 = arith.addi %arg26, %c1_i32_183 : i32
      %217 = arith.index_cast %216 : i32 to index
      %c0_184 = arith.constant 0 : index
      %c0_185 = arith.constant 0 : index
      %218 = vector.load %arg24[%217, %c0_184, %c0_185] : memref<5x24x5xbf16, #tpu.memory_space<vmem>>, vector<1x24x5xbf16>
      %219 = vector.shape_cast %218 : vector<1x24x5xbf16> to vector<24x5xbf16>
      %220 = vector.shape_cast %215 : vector<24x5xbf16> to vector<1x24x5xbf16>
      tpu.vector_store %arg24[%217, %c0_184, %c0_185], %220 {strides = array<i32>} : memref<5x24x5xbf16, #tpu.memory_space<vmem>>, vector<1x24x5xbf16>,
    }
    %c3_i32_88 = arith.constant 3 : i32
    %c1_89 = arith.constant 1 : index
    %c0_90 = arith.constant 0 : index
    %c0_91 = arith.constant 0 : index
    %65 = vector.load %arg24[%c1_89, %c0_90, %c0_91] : memref<5x24x5xbf16, #tpu.memory_space<vmem>>, vector<1x24x5xbf16>
    %66 = vector.shape_cast %65 : vector<1x24x5xbf16> to vector<24x5xbf16>
    %67 = vector.extract_strided_slice %66 {offsets = [0, 1], sizes = [24, 1], strides = [1, 1]} : vector<24x5xbf16> to vector<24x1xbf16>
    %68 = arith.extf %67 : vector<24x1xbf16> to vector<24x1xf32>
    %c0_92 = arith.constant 0 : index
    %c0_93 = arith.constant 0 : index
    %69 = vector.load %arg25[%c0_92, %c0_93] : memref<216x128xf32, #tpu.memory_space<vmem>>, vector<24x1xf32>
    tpu.vector_store %arg25[%c0_92, %c0_93], %68 {strides = array<i32>} : memref<216x128xf32, #tpu.memory_space<vmem>>, vector<24x1xf32>,
    %70 = vector.extract_strided_slice %66 {offsets = [0, 2], sizes = [24, 1], strides = [1, 1]} : vector<24x5xbf16> to vector<24x1xbf16>
    %71 = arith.extf %70 : vector<24x1xbf16> to vector<24x1xf32>
    %c24 = arith.constant 24 : index
    %c0_94 = arith.constant 0 : index
    %72 = vector.load %arg25[%c24, %c0_94] : memref<216x128xf32, #tpu.memory_space<vmem>>, vector<24x1xf32>
    tpu.vector_store %arg25[%c24, %c0_94], %71 {strides = array<i32>} : memref<216x128xf32, #tpu.memory_space<vmem>>, vector<24x1xf32>,
    %73 = vector.extract_strided_slice %66 {offsets = [0, 3], sizes = [24, 1], strides = [1, 1]} : vector<24x5xbf16> to vector<24x1xbf16>
    %74 = arith.extf %73 : vector<24x1xbf16> to vector<24x1xf32>
    %c48 = arith.constant 48 : index
    %c0_95 = arith.constant 0 : index
    %75 = vector.load %arg25[%c48, %c0_95] : memref<216x128xf32, #tpu.memory_space<vmem>>, vector<24x1xf32>
    tpu.vector_store %arg25[%c48, %c0_95], %74 {strides = array<i32>} : memref<216x128xf32, #tpu.memory_space<vmem>>, vector<24x1xf32>,
    %c2_96 = arith.constant 2 : index
    %c0_97 = arith.constant 0 : index
    %c0_98 = arith.constant 0 : index
    %76 = vector.load %arg24[%c2_96, %c0_97, %c0_98] : memref<5x24x5xbf16, #tpu.memory_space<vmem>>, vector<1x24x5xbf16>
    %77 = vector.shape_cast %76 : vector<1x24x5xbf16> to vector<24x5xbf16>
    %78 = vector.extract_strided_slice %77 {offsets = [0, 1], sizes = [24, 1], strides = [1, 1]} : vector<24x5xbf16> to vector<24x1xbf16>
    %79 = arith.extf %78 : vector<24x1xbf16> to vector<24x1xf32>
    %c72 = arith.constant 72 : index
    %c0_99 = arith.constant 0 : index
    %80 = vector.load %arg25[%c72, %c0_99] : memref<216x128xf32, #tpu.memory_space<vmem>>, vector<24x1xf32>
    tpu.vector_store %arg25[%c72, %c0_99], %79 {strides = array<i32>} : memref<216x128xf32, #tpu.memory_space<vmem>>, vector<24x1xf32>,
    %81 = vector.extract_strided_slice %77 {offsets = [0, 2], sizes = [24, 1], strides = [1, 1]} : vector<24x5xbf16> to vector<24x1xbf16>
    %82 = arith.extf %81 : vector<24x1xbf16> to vector<24x1xf32>
    %c96 = arith.constant 96 : index
    %c0_100 = arith.constant 0 : index
    %83 = vector.load %arg25[%c96, %c0_100] : memref<216x128xf32, #tpu.memory_space<vmem>>, vector<24x1xf32>
    tpu.vector_store %arg25[%c96, %c0_100], %82 {strides = array<i32>} : memref<216x128xf32, #tpu.memory_space<vmem>>, vector<24x1xf32>,
    %84 = vector.extract_strided_slice %77 {offsets = [0, 3], sizes = [24, 1], strides = [1, 1]} : vector<24x5xbf16> to vector<24x1xbf16>
    %85 = arith.extf %84 : vector<24x1xbf16> to vector<24x1xf32>
    %c120 = arith.constant 120 : index
    %c0_101 = arith.constant 0 : index
    %86 = vector.load %arg25[%c120, %c0_101] : memref<216x128xf32, #tpu.memory_space<vmem>>, vector<24x1xf32>
    tpu.vector_store %arg25[%c120, %c0_101], %85 {strides = array<i32>} : memref<216x128xf32, #tpu.memory_space<vmem>>, vector<24x1xf32>,
    %c3 = arith.constant 3 : index
    %c0_102 = arith.constant 0 : index
    %c0_103 = arith.constant 0 : index
    %87 = vector.load %arg24[%c3, %c0_102, %c0_103] : memref<5x24x5xbf16, #tpu.memory_space<vmem>>, vector<1x24x5xbf16>
    %88 = vector.shape_cast %87 : vector<1x24x5xbf16> to vector<24x5xbf16>
    %89 = vector.extract_strided_slice %88 {offsets = [0, 1], sizes = [24, 1], strides = [1, 1]} : vector<24x5xbf16> to vector<24x1xbf16>
    %90 = arith.extf %89 : vector<24x1xbf16> to vector<24x1xf32>
    %c144 = arith.constant 144 : index
    %c0_104 = arith.constant 0 : index
    %91 = vector.load %arg25[%c144, %c0_104] : memref<216x128xf32, #tpu.memory_space<vmem>>, vector<24x1xf32>
    tpu.vector_store %arg25[%c144, %c0_104], %90 {strides = array<i32>} : memref<216x128xf32, #tpu.memory_space<vmem>>, vector<24x1xf32>,
    %92 = vector.extract_strided_slice %88 {offsets = [0, 2], sizes = [24, 1], strides = [1, 1]} : vector<24x5xbf16> to vector<24x1xbf16>
    %93 = arith.extf %92 : vector<24x1xbf16> to vector<24x1xf32>
    %c168 = arith.constant 168 : index
    %c0_105 = arith.constant 0 : index
    %94 = vector.load %arg25[%c168, %c0_105] : memref<216x128xf32, #tpu.memory_space<vmem>>, vector<24x1xf32>
    tpu.vector_store %arg25[%c168, %c0_105], %93 {strides = array<i32>} : memref<216x128xf32, #tpu.memory_space<vmem>>, vector<24x1xf32>,
    %95 = vector.extract_strided_slice %88 {offsets = [0, 3], sizes = [24, 1], strides = [1, 1]} : vector<24x5xbf16> to vector<24x1xbf16>
    %96 = arith.extf %95 : vector<24x1xbf16> to vector<24x1xf32>
    %c192 = arith.constant 192 : index
    %c0_106 = arith.constant 0 : index
    %97 = vector.load %arg25[%c192, %c0_106] : memref<216x128xf32, #tpu.memory_space<vmem>>, vector<24x1xf32>
    tpu.vector_store %arg25[%c192, %c0_106], %96 {strides = array<i32>} : memref<216x128xf32, #tpu.memory_space<vmem>>, vector<24x1xf32>,
    %c0_107 = arith.constant 0 : index
    %c0_108 = arith.constant 0 : index
    %98 = vector.load %arg25[%c0_107, %c0_108] : memref<216x128xf32, #tpu.memory_space<vmem>>, vector<216x1xf32>
    %99 = arith.truncf %98 : vector<216x1xf32> to vector<216x1xbf16>
    %c0_109 = arith.constant 0 : index
    %c0_110 = arith.constant 0 : index
    %100 = vector.load %arg7[%c0_109, %c0_110] : memref<32x216xbf16, #tpu.memory_space<vmem>>, vector<32x216xbf16>
    %cst_111 = arith.constant dense<0.000000e+00> : vector<32x1xf32>
    %101 = tpu.matmul %100, %99, %cst_111 {dimension_numbers = #tpu.dot_dimension_numbers<[1], [0], [0], [1], [0, 0, 1, 1], [], []>} : vector<32x216xbf16>, vector<216x1xbf16>, vector<32x1xf32> -> vector<32x1xf32>
    %c0_112 = arith.constant 0 : index
    %c0_113 = arith.constant 0 : index
    %102 = vector.load %arg13[%c0_112, %c0_113] : memref<32x3xf32, #tpu.memory_space<vmem>>, vector<32x1xf32>
    %103 = arith.addf %101, %102 : vector<32x1xf32>
    %c0_114 = arith.constant 0 : index
    %c0_115 = arith.constant 0 : index
    %c0_116 = arith.constant 0 : index
    %104 = vector.load %arg19[%c0_114, %c0_115, %c0_116] : memref<1x32x1xf32, #tpu.memory_space<vmem>>, vector<1x32x1xf32>
    %105 = vector.shape_cast %104 : vector<1x32x1xf32> to vector<32x1xf32>
    %106 = vector.shape_cast %103 : vector<32x1xf32> to vector<1x32x1xf32>
    tpu.vector_store %arg19[%c0_114, %c0_115, %c0_116], %106 {strides = array<i32>} : memref<1x32x1xf32, #tpu.memory_space<vmem>>, vector<1x32x1xf32>,
    return
  }
  func.func @transform_0(%arg0: i32) -> (i32, i32, i32, i32) {
    %c0_i32 = arith.constant 0 : i32
    %c0_i32_0 = arith.constant 0 : i32
    %c0_i32_1 = arith.constant 0 : i32
    %c0_i32_2 = arith.constant 0 : i32
    return %arg0, %c0_i32, %c0_i32_0, %c0_i32_1 : i32, i32, i32, i32
  }
  func.func @transform_1(%arg0: i32) -> (i32, i32) {
    %c0_i32 = arith.constant 0 : i32
    %c0_i32_0 = arith.constant 0 : i32
    %c0_i32_1 = arith.constant 0 : i32
    return %c0_i32, %c0_i32_0 : i32, i32
  }
  func.func @transform_2(%arg0: i32) -> (i32, i32) {
    %c0_i32 = arith.constant 0 : i32
    %c0_i32_0 = arith.constant 0 : i32
    %c0_i32_1 = arith.constant 0 : i32
    return %c0_i32, %c0_i32_0 : i32, i32
  }
  func.func @transform_3(%arg0: i32) -> (i32, i32) {
    %c0_i32 = arith.constant 0 : i32
    %c0_i32_0 = arith.constant 0 : i32
    %c0_i32_1 = arith.constant 0 : i32
    return %c0_i32, %c0_i32_0 : i32, i32
  }
  func.func @transform_4(%arg0: i32) -> (i32, i32) {
    %c0_i32 = arith.constant 0 : i32
    %c0_i32_0 = arith.constant 0 : i32
    %c0_i32_1 = arith.constant 0 : i32
    return %c0_i32, %c0_i32_0 : i32, i32
  }
  func.func @transform_5(%arg0: i32) -> (i32, i32) {
    %c0_i32 = arith.constant 0 : i32
    %c0_i32_0 = arith.constant 0 : i32
    %c0_i32_1 = arith.constant 0 : i32
    return %c0_i32, %c0_i32_0 : i32, i32
  }
  func.func @transform_6(%arg0: i32) -> (i32, i32) {
    %c0_i32 = arith.constant 0 : i32
    %c0_i32_0 = arith.constant 0 : i32
    %c0_i32_1 = arith.constant 0 : i32
    return %c0_i32, %c0_i32_0 : i32, i32
  }
  func.func @transform_7(%arg0: i32) -> (i32, i32) {
    %c0_i32 = arith.constant 0 : i32
    %c0_i32_0 = arith.constant 0 : i32
    %c0_i32_1 = arith.constant 0 : i32
    return %c0_i32, %c0_i32_0 : i32, i32
  }
  func.func @transform_8(%arg0: i32) -> (i32, i32) {
    %c0_i32 = arith.constant 0 : i32
    %c0_i32_0 = arith.constant 0 : i32
    %c0_i32_1 = arith.constant 0 : i32
    return %c0_i32, %c0_i32_0 : i32, i32
  }
  func.func @transform_9(%arg0: i32) -> (i32, i32) {
    %c0_i32 = arith.constant 0 : i32
    %c0_i32_0 = arith.constant 0 : i32
    %c0_i32_1 = arith.constant 0 : i32
    return %c0_i32, %c0_i32_0 : i32, i32
  }
  func.func @transform_10(%arg0: i32) -> (i32, i32) {
    %c0_i32 = arith.constant 0 : i32
    %c0_i32_0 = arith.constant 0 : i32
    %c0_i32_1 = arith.constant 0 : i32
    return %c0_i32, %c0_i32_0 : i32, i32
  }
  func.func @transform_11(%arg0: i32) -> (i32, i32) {
    %c0_i32 = arith.constant 0 : i32
    %c0_i32_0 = arith.constant 0 : i32
    %c0_i32_1 = arith.constant 0 : i32
    return %c0_i32, %c0_i32_0 : i32, i32
  }
  func.func @transform_12(%arg0: i32) -> (i32, i32) {
    %c0_i32 = arith.constant 0 : i32
    %c0_i32_0 = arith.constant 0 : i32
    %c0_i32_1 = arith.constant 0 : i32
    return %c0_i32, %c0_i32_0 : i32, i32
  }
  func.func @transform_13(%arg0: i32) -> (i32, i32) {
    %c0_i32 = arith.constant 0 : i32
    %c0_i32_0 = arith.constant 0 : i32
    %c0_i32_1 = arith.constant 0 : i32
    return %c0_i32, %c0_i32_0 : i32, i32
  }
  func.func @transform_14(%arg0: i32) -> (i32, i32) {
    %c0_i32 = arith.constant 0 : i32
    %c0_i32_0 = arith.constant 0 : i32
    %c0_i32_1 = arith.constant 0 : i32
    return %c0_i32, %c0_i32_0 : i32, i32
  }
  func.func @transform_15(%arg0: i32) -> (i32, i32) {
    %c0_i32 = arith.constant 0 : i32
    %c0_i32_0 = arith.constant 0 : i32
    %c0_i32_1 = arith.constant 0 : i32
    return %c0_i32, %c0_i32_0 : i32, i32
  }
  func.func @transform_16(%arg0: i32) -> (i32, i32) {
    %c0_i32 = arith.constant 0 : i32
    %c0_i32_0 = arith.constant 0 : i32
    %c0_i32_1 = arith.constant 0 : i32
    return %c0_i32, %c0_i32_0 : i32, i32
  }
  func.func @transform_17(%arg0: i32) -> (i32, i32) {
    %c0_i32 = arith.constant 0 : i32
    %c0_i32_0 = arith.constant 0 : i32
    %c0_i32_1 = arith.constant 0 : i32
    return %c0_i32, %c0_i32_0 : i32, i32
  }
  func.func @transform_18(%arg0: i32) -> (i32, i32, i32) {
    %c0_i32 = arith.constant 0 : i32
    %c0_i32_0 = arith.constant 0 : i32
    %c0_i32_1 = arith.constant 0 : i32
    return %arg0, %c0_i32, %c0_i32_0 : i32, i32, i32
  }
}

</mosaic_0001>

<llo_original>
// kernel: _lambda_.1
$region0: #{_lambda_.1}
  #allocation0 [shape = 'u32[]', space=smem, size = 0x4, offset = 0x4, fixed_abs, tag = 'smem constant byte address 0x4 - core index']
  #allocation1 [shape = 'u32[72,128]{1,0:T(1,128)}', space=vmem, size = 0x9000, scoped, tag = 'internal scratch']
  #allocation2 [shape = 'bf16[52,8,52]{2,1,0:T(8,128)(2,1)}', space=vmem, size = 0x1a000, scoped, tag = 'scratch operand']
  #allocation3 [shape = 'bf16[27,16,27]{2,1,0:T(8,128)(2,1)}', space=vmem, size = 0x1b000, scoped, tag = 'scratch operand']
  #allocation4 [shape = 'bf16[14,16,14]{2,1,0:T(8,128)(2,1)}', space=vmem, size = 0xe000, scoped, tag = 'scratch operand']
  #allocation5 [shape = 'bf16[8,24,8]{2,1,0:T(8,128)(2,1)}', space=vmem, size = 0xc000, scoped, tag = 'scratch operand']
  #allocation6 [shape = 'bf16[5,24,5]{2,1,0:T(8,128)(2,1)}', space=vmem, size = 0x7800, scoped, tag = 'scratch operand']
  #allocation7 [shape = 'f32[216,128]{1,0:T(8,128)}', space=vmem, size = 0x1b000, scoped, tag = 'scratch operand']
  %s0 = inlined_call_operand.vmem [shape: bf16[2,102,16,102], index: 0, kind: input, shape index: {}]
  %s1 = inlined_call_operand.vmem [shape: bf16[8,144], index: 1, kind: input, shape index: {}]
  %s2 = inlined_call_operand.vmem [shape: bf16[16,72], index: 2, kind: input, shape index: {}]
  %s3 = inlined_call_operand.vmem [shape: bf16[16,144], index: 3, kind: input, shape index: {}]
  %s4 = inlined_call_operand.vmem [shape: bf16[24,144], index: 4, kind: input, shape index: {}]
  %s5 = inlined_call_operand.vmem [shape: bf16[24,216], index: 5, kind: input, shape index: {}]
  %s6 = inlined_call_operand.vmem [shape: bf16[32,216], index: 6, kind: input, shape index: {}]
  %s7 = inlined_call_operand.vmem [shape: f32[8,3], index: 7, kind: input, shape index: {}]
  %s8 = inlined_call_operand.vmem [shape: f32[16,3], index: 8, kind: input, shape index: {}]
  %s9 = inlined_call_operand.vmem [shape: f32[16,3], index: 9, kind: input, shape index: {}]
  %s10 = inlined_call_operand.vmem [shape: f32[24,3], index: 10, kind: input, shape index: {}]
  %s11 = inlined_call_operand.vmem [shape: f32[24,3], index: 11, kind: input, shape index: {}]
  %s12 = inlined_call_operand.vmem [shape: f32[32,3], index: 12, kind: input, shape index: {}]
  %s13 = inlined_call_operand.vmem [shape: bf16[100,52], index: 13, kind: input, shape index: {}]
  %s14 = inlined_call_operand.vmem [shape: bf16[50,27], index: 14, kind: input, shape index: {}]
  %s15 = inlined_call_operand.vmem [shape: bf16[25,14], index: 15, kind: input, shape index: {}]
  %s16 = inlined_call_operand.vmem [shape: bf16[12,8], index: 16, kind: input, shape index: {}]
  %s17 = inlined_call_operand.vmem [shape: bf16[6,5], index: 17, kind: input, shape index: {}]
  %s18 = inlined_call_operand.vmem [shape: f32[2,32,1], index: 18, kind: output, shape index: {}]
  %s19 = sld [smem:[#allocation0]]
  $region140: #{_lambda_.1} parent=0
    _
  %s21 = ssub.s32 1, %s19
  %s22 = scalar_select 0, %s21, %s19
  loop: start=0, step=1, limit=4
  $region2: #{_lambda_.1} parent=0 // loop_pre_header
    _
  $region3: #{_lambda_.1} parent=0 // loop_header
    %s24 = sphi 0, %s28
    %p25 = scmp.ge.s32.totalorder %s24, 4
    %s34 = sphi 0, %s36
    %s37 = sphi 0, %s34
    %s38 = sphi 0, %s37
    %s54 = sphi 0, %s38
    %s58 = sphi 0, %s58
    %s60 = sphi 0, %s58
    %s61 = sphi 0, %s60
    %s75 = sphi 0, %s61
    %s79 = sphi 0, %s79
    %s81 = sphi 0, %s79
    %s82 = sphi 0, %s81
    %s96 = sphi 0, %s82
    %s100 = sphi 0, %s100
    %s102 = sphi 0, %s100
    %s103 = sphi 0, %s102
    %s117 = sphi 0, %s103
    %s121 = sphi 0, %s121
    %s123 = sphi 0, %s121
    %s124 = sphi 0, %s123
    %s138 = sphi 0, %s124
    %s142 = sphi 0, %s142
    %s144 = sphi 0, %s142
    %s145 = sphi 0, %s144
    %s159 = sphi 0, %s145
    %s163 = sphi 0, %s163
    %s165 = sphi 0, %s163
    %s166 = sphi 0, %s165
    %s180 = sphi 0, %s166
    %s184 = sphi 0, %s184
    %s186 = sphi 0, %s184
    %s187 = sphi 0, %s186
    %s201 = sphi 0, %s187
    %s205 = sphi 0, %s205
    %s207 = sphi 0, %s205
    %s208 = sphi 0, %s207
    %s222 = sphi 0, %s208
    %s226 = sphi 0, %s226
    %s228 = sphi 0, %s226
    %s229 = sphi 0, %s228
    %s243 = sphi 0, %s229
    %s247 = sphi 0, %s247
    %s249 = sphi 0, %s247
    %s250 = sphi 0, %s249
    %s264 = sphi 0, %s250
    %s268 = sphi 0, %s268
    %s270 = sphi 0, %s268
    %s271 = sphi 0, %s270
    %s285 = sphi 0, %s271
    %s289 = sphi 0, %s289
    %s291 = sphi 0, %s289
    %s292 = sphi 0, %s291
    %s306 = sphi 0, %s292
    %s310 = sphi 0, %s310
    %s312 = sphi 0, %s310
    %s313 = sphi 0, %s312
    %s327 = sphi 0, %s313
    %s331 = sphi 0, %s331
    %s333 = sphi 0, %s331
    %s334 = sphi 0, %s333
    %s348 = sphi 0, %s334
    %s352 = sphi 0, %s352
    %s354 = sphi 0, %s352
    %s355 = sphi 0, %s354
    %s369 = sphi 0, %s355
    %s373 = sphi 0, %s373
    %s375 = sphi 0, %s373
    %s376 = sphi 0, %s375
    %s390 = sphi 0, %s376
    %s394 = sphi 0, %s394
    %s396 = sphi 0, %s394
    %s397 = sphi 0, %s396
    %s411 = sphi 0, %s397
    %s417 = sphi 0, %s419
    %s420 = sphi 0, %s417
    %s421 = sphi 0, %s420
    %s437 = sphi 0, %s421
  $region4: #{_lambda_.1} parent=0 // loop_header_branch
    %27 = sbr.rel (%p25) target = $region8
  $region5: #{_lambda_.1} parent=0 // loop_body
    %s29 = ssub.s32 %s24, 1
    %s30 = ssub.s32 %s24, 2
    %s31 = sadd.s32 %s24, 1
    %s32 = ssub.s32 %s24, %s31
    %p33 = scmp.eq.s32.totalorder %s32, 0
    %s35 = sadd.s32 %s34, 1
    %s36 = scalar_select %p33, %s34, %s35
    %p39 = pneg %p33
    %p40 = scmp.eq.s32.totalorder %s24, 1
    %p41 = por %p39, %p40
    %p42 = scmp.ne.s32.totalorder %s34, %s37
    %p43 = scmp.eq.s32.totalorder %s24, 0
    %p44 = por %p42, %p43
    %p45 = scmp.ne.s32.totalorder %s34, %s37
    %p46 = scmp.eq.s32.totalorder %s29, 1
    %p47 = por %p45, %p46
    %p48 = scmp.ne.s32.totalorder %s37, %s38
    %p49 = scmp.eq.s32.totalorder %s29, 0
    %p50 = por %p48, %p49
    %p51 = scmp.ne.s32.totalorder %s37, %s38
    %p52 = scmp.eq.s32.totalorder %s30, 1
    %p53 = por %p51, %p52
    %p55 = scmp.ne.s32.totalorder %s38, %s54
    %p56 = scmp.eq.s32.totalorder %s30, 0
    %p57 = por %p55, %p56
    %s59 = sadd.s32 %s58, 1
    %p62 = scmp.eq.s32.totalorder %s24, 1
    %p63 = scmp.ne.s32.totalorder %s58, %s60
    %p64 = scmp.eq.s32.totalorder %s24, 0
    %p65 = por %p63, %p64
    %p66 = scmp.ne.s32.totalorder %s58, %s60
    %p67 = scmp.eq.s32.totalorder %s29, 1
    %p68 = por %p66, %p67
    %p69 = scmp.ne.s32.totalorder %s60, %s61
    %p70 = scmp.eq.s32.totalorder %s29, 0
    %p71 = por %p69, %p70
    %p72 = scmp.ne.s32.totalorder %s60, %s61
    %p73 = scmp.eq.s32.totalorder %s30, 1
    %p74 = por %p72, %p73
    %p76 = scmp.ne.s32.totalorder %s61, %s75
    %p77 = scmp.eq.s32.totalorder %s30, 0
    %p78 = por %p76, %p77
    %s80 = sadd.s32 %s79, 1
    %p83 = scmp.eq.s32.totalorder %s24, 1
    %p84 = scmp.ne.s32.totalorder %s79, %s81
    %p85 = scmp.eq.s32.totalorder %s24, 0
    %p86 = por %p84, %p85
    %p87 = scmp.ne.s32.totalorder %s79, %s81
    %p88 = scmp.eq.s32.totalorder %s29, 1
    %p89 = por %p87, %p88
    %p90 = scmp.ne.s32.totalorder %s81, %s82
    %p91 = scmp.eq.s32.totalorder %s29, 0
    %p92 = por %p90, %p91
    %p93 = scmp.ne.s32.totalorder %s81, %s82
    %p94 = scmp.eq.s32.totalorder %s30, 1
    %p95 = por %p93, %p94
    %p97 = scmp.ne.s32.totalorder %s82, %s96
    %p98 = scmp.eq.s32.totalorder %s30, 0
    %p99 = por %p97, %p98
    %s101 = sadd.s32 %s100, 1
    %p104 = scmp.eq.s32.totalorder %s24, 1
    %p105 = scmp.ne.s32.totalorder %s100, %s102
    %p106 = scmp.eq.s32.totalorder %s24, 0
    %p107 = por %p105, %p106
    %p108 = scmp.ne.s32.totalorder %s100, %s102
    %p109 = scmp.eq.s32.totalorder %s29, 1
    %p110 = por %p108, %p109
    %p111 = scmp.ne.s32.totalorder %s102, %s103
    %p112 = scmp.eq.s32.totalorder %s29, 0
    %p113 = por %p111, %p112
    %p114 = scmp.ne.s32.totalorder %s102, %s103
    %p115 = scmp.eq.s32.totalorder %s30, 1
    %p116 = por %p114, %p115
    %p118 = scmp.ne.s32.totalorder %s103, %s117
    %p119 = scmp.eq.s32.totalorder %s30, 0
    %p120 = por %p118, %p119
    %s122 = sadd.s32 %s121, 1
    %p125 = scmp.eq.s32.totalorder %s24, 1
    %p126 = scmp.ne.s32.totalorder %s121, %s123
    %p127 = scmp.eq.s32.totalorder %s24, 0
    %p128 = por %p126, %p127
    %p129 = scmp.ne.s32.totalorder %s121, %s123
    %p130 = scmp.eq.s32.totalorder %s29, 1
    %p131 = por %p129, %p130
    %p132 = scmp.ne.s32.totalorder %s123, %s124
    %p133 = scmp.eq.s32.totalorder %s29, 0
    %p134 = por %p132, %p133
    %p135 = scmp.ne.s32.totalorder %s123, %s124
    %p136 = scmp.eq.s32.totalorder %s30, 1
    %p137 = por %p135, %p136
    %p139 = scmp.ne.s32.totalorder %s124, %s138
    %p140 = scmp.eq.s32.totalorder %s30, 0
    %p141 = por %p139, %p140
    %s143 = sadd.s32 %s142, 1
    %p146 = scmp.eq.s32.totalorder %s24, 1
    %p147 = scmp.ne.s32.totalorder %s142, %s144
    %p148 = scmp.eq.s32.totalorder %s24, 0
    %p149 = por %p147, %p148
    %p150 = scmp.ne.s32.totalorder %s142, %s144
    %p151 = scmp.eq.s32.totalorder %s29, 1
    %p152 = por %p150, %p151
    %p153 = scmp.ne.s32.totalorder %s144, %s145
    %p154 = scmp.eq.s32.totalorder %s29, 0
    %p155 = por %p153, %p154
    %p156 = scmp.ne.s32.totalorder %s144, %s145
    %p157 = scmp.eq.s32.totalorder %s30, 1
    %p158 = por %p156, %p157
    %p160 = scmp.ne.s32.totalorder %s145, %s159
    %p161 = scmp.eq.s32.totalorder %s30, 0
    %p162 = por %p160, %p161
    %s164 = sadd.s32 %s163, 1
    %p167 = scmp.eq.s32.totalorder %s24, 1
    %p168 = scmp.ne.s32.totalorder %s163, %s165
    %p169 = scmp.eq.s32.totalorder %s24, 0
    %p170 = por %p168, %p169
    %p171 = scmp.ne.s32.totalorder %s163, %s165
    %p172 = scmp.eq.s32.totalorder %s29, 1
    %p173 = por %p171, %p172
    %p174 = scmp.ne.s32.totalorder %s165, %s166
    %p175 = scmp.eq.s32.totalorder %s29, 0
    %p176 = por %p174, %p175
    %p177 = scmp.ne.s32.totalorder %s165, %s166
    %p178 = scmp.eq.s32.totalorder %s30, 1
    %p179 = por %p177, %p178
    %p181 = scmp.ne.s32.totalorder %s166, %s180
    %p182 = scmp.eq.s32.totalorder %s30, 0
    %p183 = por %p181, %p182
    %s185 = sadd.s32 %s184, 1
    %p188 = scmp.eq.s32.totalorder %s24, 1
    %p189 = scmp.ne.s32.totalorder %s184, %s186
    %p190 = scmp.eq.s32.totalorder %s24, 0
    %p191 = por %p189, %p190
    %p192 = scmp.ne.s32.totalorder %s184, %s186
    %p193 = scmp.eq.s32.totalorder %s29, 1
    %p194 = por %p192, %p193
    %p195 = scmp.ne.s32.totalorder %s186, %s187
    %p196 = scmp.eq.s32.totalorder %s29, 0
    %p197 = por %p195, %p196
    %p198 = scmp.ne.s32.totalorder %s186, %s187
    %p199 = scmp.eq.s32.totalorder %s30, 1
    %p200 = por %p198, %p199
    %p202 = scmp.ne.s32.totalorder %s187, %s201
    %p203 = scmp.eq.s32.totalorder %s30, 0
    %p204 = por %p202, %p203
    %s206 = sadd.s32 %s205, 1
    %p209 = scmp.eq.s32.totalorder %s24, 1
    %p210 = scmp.ne.s32.totalorder %s205, %s207
    %p211 = scmp.eq.s32.totalorder %s24, 0
    %p212 = por %p210, %p211
    %p213 = scmp.ne.s32.totalorder %s205, %s207
    %p214 = scmp.eq.s32.totalorder %s29, 1
    %p215 = por %p213, %p214
    %p216 = scmp.ne.s32.totalorder %s207, %s208
    %p217 = scmp.eq.s32.totalorder %s29, 0
    %p218 = por %p216, %p217
    %p219 = scmp.ne.s32.totalorder %s207, %s208
    %p220 = scmp.eq.s32.totalorder %s30, 1
    %p221 = por %p219, %p220
    %p223 = scmp.ne.s32.totalorder %s208, %s222
    %p224 = scmp.eq.s32.totalorder %s30, 0
    %p225 = por %p223, %p224
    %s227 = sadd.s32 %s226, 1
    %p230 = scmp.eq.s32.totalorder %s24, 1
    %p231 = scmp.ne.s32.totalorder %s226, %s228
    %p232 = scmp.eq.s32.totalorder %s24, 0
    %p233 = por %p231, %p232
    %p234 = scmp.ne.s32.totalorder %s226, %s228
    %p235 = scmp.eq.s32.totalorder %s29, 1
    %p236 = por %p234, %p235
    %p237 = scmp.ne.s32.totalorder %s228, %s229
    %p238 = scmp.eq.s32.totalorder %s29, 0
    %p239 = por %p237, %p238
    %p240 = scmp.ne.s32.totalorder %s228, %s229
    %p241 = scmp.eq.s32.totalorder %s30, 1
    %p242 = por %p240, %p241
    %p244 = scmp.ne.s32.totalorder %s229, %s243
    %p245 = scmp.eq.s32.totalorder %s30, 0
    %p246 = por %p244, %p245
    %s248 = sadd.s32 %s247, 1
    %p251 = scmp.eq.s32.totalorder %s24, 1
    %p252 = scmp.ne.s32.totalorder %s247, %s249
    %p253 = scmp.eq.s32.totalorder %s24, 0
    %p254 = por %p252, %p253
    %p255 = scmp.ne.s32.totalorder %s247, %s249
    %p256 = scmp.eq.s32.totalorder %s29, 1
    %p257 = por %p255, %p256
    %p258 = scmp.ne.s32.totalorder %s249, %s250
    %p259 = scmp.eq.s32.totalorder %s29, 0
    %p260 = por %p258, %p259
    %p261 = scmp.ne.s32.totalorder %s249, %s250
    %p262 = scmp.eq.s32.totalorder %s30, 1
    %p263 = por %p261, %p262
    %p265 = scmp.ne.s32.totalorder %s250, %s264
    %p266 = scmp.eq.s32.totalorder %s30, 0
    %p267 = por %p265, %p266
    %s269 = sadd.s32 %s268, 1
    %p272 = scmp.eq.s32.totalorder %s24, 1
    %p273 = scmp.ne.s32.totalorder %s268, %s270
    %p274 = scmp.eq.s32.totalorder %s24, 0
    %p275 = por %p273, %p274
    %p276 = scmp.ne.s32.totalorder %s268, %s270
    %p277 = scmp.eq.s32.totalorder %s29, 1
    %p278 = por %p276, %p277
    %p279 = scmp.ne.s32.totalorder %s270, %s271
    %p280 = scmp.eq.s32.totalorder %s29, 0
    %p281 = por %p279, %p280
    %p282 = scmp.ne.s32.totalorder %s270, %s271
    %p283 = scmp.eq.s32.totalorder %s30, 1
    %p284 = por %p282, %p283
    %p286 = scmp.ne.s32.totalorder %s271, %s285
    %p287 = scmp.eq.s32.totalorder %s30, 0
    %p288 = por %p286, %p287
    %s290 = sadd.s32 %s289, 1
    %p293 = scmp.eq.s32.totalorder %s24, 1
    %p294 = scmp.ne.s32.totalorder %s289, %s291
    %p295 = scmp.eq.s32.totalorder %s24, 0
    %p296 = por %p294, %p295
    %p297 = scmp.ne.s32.totalorder %s289, %s291
    %p298 = scmp.eq.s32.totalorder %s29, 1
    %p299 = por %p297, %p298
    %p300 = scmp.ne.s32.totalorder %s291, %s292
    %p301 = scmp.eq.s32.totalorder %s29, 0
    %p302 = por %p300, %p301
    %p303 = scmp.ne.s32.totalorder %s291, %s292
    %p304 = scmp.eq.s32.totalorder %s30, 1
    %p305 = por %p303, %p304
    %p307 = scmp.ne.s32.totalorder %s292, %s306
    %p308 = scmp.eq.s32.totalorder %s30, 0
    %p309 = por %p307, %p308
    %s311 = sadd.s32 %s310, 1
    %p314 = scmp.eq.s32.totalorder %s24, 1
    %p315 = scmp.ne.s32.totalorder %s310, %s312
    %p316 = scmp.eq.s32.totalorder %s24, 0
    %p317 = por %p315, %p316
    %p318 = scmp.ne.s32.totalorder %s310, %s312
    %p319 = scmp.eq.s32.totalorder %s29, 1
    %p320 = por %p318, %p319
    %p321 = scmp.ne.s32.totalorder %s312, %s313
    %p322 = scmp.eq.s32.totalorder %s29, 0
    %p323 = por %p321, %p322
    %p324 = scmp.ne.s32.totalorder %s312, %s313
    %p325 = scmp.eq.s32.totalorder %s30, 1
    %p326 = por %p324, %p325
    %p328 = scmp.ne.s32.totalorder %s313, %s327
    %p329 = scmp.eq.s32.totalorder %s30, 0
    %p330 = por %p328, %p329
    %s332 = sadd.s32 %s331, 1
    %p335 = scmp.eq.s32.totalorder %s24, 1
    %p336 = scmp.ne.s32.totalorder %s331, %s333
    %p337 = scmp.eq.s32.totalorder %s24, 0
    %p338 = por %p336, %p337
    %p339 = scmp.ne.s32.totalorder %s331, %s333
    %p340 = scmp.eq.s32.totalorder %s29, 1
    %p341 = por %p339, %p340
    %p342 = scmp.ne.s32.totalorder %s333, %s334
    %p343 = scmp.eq.s32.totalorder %s29, 0
    %p344 = por %p342, %p343
    %p345 = scmp.ne.s32.totalorder %s333, %s334
    %p346 = scmp.eq.s32.totalorder %s30, 1
    %p347 = por %p345, %p346
    %p349 = scmp.ne.s32.totalorder %s334, %s348
    %p350 = scmp.eq.s32.totalorder %s30, 0
    %p351 = por %p349, %p350
    %s353 = sadd.s32 %s352, 1
    %p356 = scmp.eq.s32.totalorder %s24, 1
    %p357 = scmp.ne.s32.totalorder %s352, %s354
    %p358 = scmp.eq.s32.totalorder %s24, 0
    %p359 = por %p357, %p358
    %p360 = scmp.ne.s32.totalorder %s352, %s354
    %p361 = scmp.eq.s32.totalorder %s29, 1
    %p362 = por %p360, %p361
    %p363 = scmp.ne.s32.totalorder %s354, %s355
    %p364 = scmp.eq.s32.totalorder %s29, 0
    %p365 = por %p363, %p364
    %p366 = scmp.ne.s32.totalorder %s354, %s355
    %p367 = scmp.eq.s32.totalorder %s30, 1
    %p368 = por %p366, %p367
    %p370 = scmp.ne.s32.totalorder %s355, %s369
    %p371 = scmp.eq.s32.totalorder %s30, 0
    %p372 = por %p370, %p371
    %s374 = sadd.s32 %s373, 1
    %p377 = scmp.eq.s32.totalorder %s24, 1
    %p378 = scmp.ne.s32.totalorder %s373, %s375
    %p379 = scmp.eq.s32.totalorder %s24, 0
    %p380 = por %p378, %p379
    %p381 = scmp.ne.s32.totalorder %s373, %s375
    %p382 = scmp.eq.s32.totalorder %s29, 1
    %p383 = por %p381, %p382
    %p384 = scmp.ne.s32.totalorder %s375, %s376
    %p385 = scmp.eq.s32.totalorder %s29, 0
    %p386 = por %p384, %p385
    %p387 = scmp.ne.s32.totalorder %s375, %s376
    %p388 = scmp.eq.s32.totalorder %s30, 1
    %p389 = por %p387, %p388
    %p391 = scmp.ne.s32.totalorder %s376, %s390
    %p392 = scmp.eq.s32.totalorder %s30, 0
    %p393 = por %p391, %p392
    %s395 = sadd.s32 %s394, 1
    %p398 = scmp.eq.s32.totalorder %s24, 1
    %p399 = scmp.ne.s32.totalorder %s394, %s396
    %p400 = scmp.eq.s32.totalorder %s24, 0
    %p401 = por %p399, %p400
    %p402 = scmp.ne.s32.totalorder %s394, %s396
    %p403 = scmp.eq.s32.totalorder %s29, 1
    %p404 = por %p402, %p403
    %p405 = scmp.ne.s32.totalorder %s396, %s397
    %p406 = scmp.eq.s32.totalorder %s29, 0
    %p407 = por %p405, %p406
    %p408 = scmp.ne.s32.totalorder %s396, %s397
    %p409 = scmp.eq.s32.totalorder %s30, 1
    %p410 = por %p408, %p409
    %p412 = scmp.ne.s32.totalorder %s397, %s411
    %p413 = scmp.eq.s32.totalorder %s30, 0
    %p414 = por %p412, %p413
    %s415 = ssub.s32 %s24, %s31
    %p416 = scmp.eq.s32.totalorder %s415, 0
    %s418 = sadd.s32 %s417, 1
    %s419 = scalar_select %p416, %s417, %s418
    %p422 = pneg %p416
    %p423 = scmp.eq.s32.totalorder %s24, 1
    %p424 = por %p422, %p423
    %p425 = scmp.ne.s32.totalorder %s417, %s420
    %p426 = scmp.eq.s32.totalorder %s24, 0
    %p427 = por %p425, %p426
    %p428 = scmp.ne.s32.totalorder %s417, %s420
    %p429 = scmp.eq.s32.totalorder %s29, 1
    %p430 = por %p428, %p429
    %p431 = scmp.ne.s32.totalorder %s420, %s421
    %p432 = scmp.eq.s32.totalorder %s29, 0
    %p433 = por %p431, %p432
    %p434 = scmp.ne.s32.totalorder %s420, %s421
    %p435 = scmp.eq.s32.totalorder %s30, 1
    %p436 = por %p434, %p435
    %p438 = scmp.ne.s32.totalorder %s421, %s437
    %p439 = scmp.eq.s32.totalorder %s30, 0
    %p440 = por %p438, %p439
    %p441 = scmp.le.s32.totalorder 1, %s24
    %p442 = scmp.lt.s32.totalorder %s24, 3
    %p443 = pnand %p441, %p442
    %p444 = pneg %p443
    // Predicated region
    $region9: #{_lambda_.1} parent=5 // pred_check
      _
    $region10: #{_lambda_.1} parent=5 // pred_check_branch
      %446 = sbr.rel (%p443) target = $region12
    $region11: #{_lambda_.1} parent=5 // pred_region
      %s447 = ssub.s32 %s24, 1
      // Predicated region
      $region13: #{_lambda_.1} parent=11 // pred_check
        %p448 = pneg %p71
      $region14: #{_lambda_.1} parent=11 // pred_check_branch
        %450 = sbr.rel (%p448) target = $region16
      $region15: #{_lambda_.1} parent=11 // pred_region
        _
      $region16: #{_lambda_.1} parent=11 // pred_fallthru
        _
      // Predicated region
      $region17: #{_lambda_.1} parent=11 // pred_check
        %p451 = pneg %p92
      $region18: #{_lambda_.1} parent=11 // pred_check_branch
        %453 = sbr.rel (%p451) target = $region20
      $region19: #{_lambda_.1} parent=11 // pred_region
        _
      $region20: #{_lambda_.1} parent=11 // pred_fallthru
        _
      // Predicated region
      $region21: #{_lambda_.1} parent=11 // pred_check
        %p454 = pneg %p113
      $region22: #{_lambda_.1} parent=11 // pred_check_branch
        %456 = sbr.rel (%p454) target = $region24
      $region23: #{_lambda_.1} parent=11 // pred_region
        _
      $region24: #{_lambda_.1} parent=11 // pred_fallthru
        _
      // Predicated region
      $region25: #{_lambda_.1} parent=11 // pred_check
        %p457 = pneg %p134
      $region26: #{_lambda_.1} parent=11 // pred_check_branch
        %459 = sbr.rel (%p457) target = $region28
      $region27: #{_lambda_.1} parent=11 // pred_region
        _
      $region28: #{_lambda_.1} parent=11 // pred_fallthru
        _
      // Predicated region
      $region29: #{_lambda_.1} parent=11 // pred_check
        %p460 = pneg %p155
      $region30: #{_lambda_.1} parent=11 // pred_check_branch
        %462 = sbr.rel (%p460) target = $region32
      $region31: #{_lambda_.1} parent=11 // pred_region
        _
      $region32: #{_lambda_.1} parent=11 // pred_fallthru
        _
      // Predicated region
      $region33: #{_lambda_.1} parent=11 // pred_check
        %p463 = pneg %p176
      $region34: #{_lambda_.1} parent=11 // pred_check_branch
        %465 = sbr.rel (%p463) target = $region36
      $region35: #{_lambda_.1} parent=11 // pred_region
        _
      $region36: #{_lambda_.1} parent=11 // pred_fallthru
        _
      // Predicated region
      $region37: #{_lambda_.1} parent=11 // pred_check
        %p466 = pneg %p197
      $region38: #{_lambda_.1} parent=11 // pred_check_branch
        %468 = sbr.rel (%p466) target = $region40
      $region39: #{_lambda_.1} parent=11 // pred_region
        _
      $region40: #{_lambda_.1} parent=11 // pred_fallthru
        _
      // Predicated region
      $region41: #{_lambda_.1} parent=11 // pred_check
        %p469 = pneg %p218
      $region42: #{_lambda_.1} parent=11 // pred_check_branch
        %471 = sbr.rel (%p469) target = $region44
      $region43: #{_lambda_.1} parent=11 // pred_region
        _
      $region44: #{_lambda_.1} parent=11 // pred_fallthru
        _
      // Predicated region
      $region45: #{_lambda_.1} parent=11 // pred_check
        %p472 = pneg %p239
      $region46: #{_lambda_.1} parent=11 // pred_check_branch
        %474 = sbr.rel (%p472) target = $region48
      $region47: #{_lambda_.1} parent=11 // pred_region
        _
      $region48: #{_lambda_.1} parent=11 // pred_fallthru
        _
      // Predicated region
      $region49: #{_lambda_.1} parent=11 // pred_check
        %p475 = pneg %p260
      $region50: #{_lambda_.1} parent=11 // pred_check_branch
        %477 = sbr.rel (%p475) target = $region52
      $region51: #{_lambda_.1} parent=11 // pred_region
        _
      $region52: #{_lambda_.1} parent=11 // pred_fallthru
        _
      // Predicated region
      $region53: #{_lambda_.1} parent=11 // pred_check
        %p478 = pneg %p281
      $region54: #{_lambda_.1} parent=11 // pred_check_branch
        %480 = sbr.rel (%p478) target = $region56
      $region55: #{_lambda_.1} parent=11 // pred_region
        _
      $region56: #{_lambda_.1} parent=11 // pred_fallthru
        _
      // Predicated region
      $region57: #{_lambda_.1} parent=11 // pred_check
        %p481 = pneg %p302
      $region58: #{_lambda_.1} parent=11 // pred_check_branch
        %483 = sbr.rel (%p481) target = $region60
      $region59: #{_lambda_.1} parent=11 // pred_region
        _
      $region60: #{_lambda_.1} parent=11 // pred_fallthru
        _
      // Predicated region
      $region61: #{_lambda_.1} parent=11 // pred_check
        %p484 = pneg %p323
      $region62: #{_lambda_.1} parent=11 // pred_check_branch
        %486 = sbr.rel (%p484) target = $region64
      $region63: #{_lambda_.1} parent=11 // pred_region
        _
      $region64: #{_lambda_.1} parent=11 // pred_fallthru
        _
      // Predicated region
      $region65: #{_lambda_.1} parent=11 // pred_check
        %p487 = pneg %p344
      $region66: #{_lambda_.1} parent=11 // pred_check_branch
        %489 = sbr.rel (%p487) target = $region68
      $region67: #{_lambda_.1} parent=11 // pred_region
        _
      $region68: #{_lambda_.1} parent=11 // pred_fallthru
        _
      // Predicated region
      $region69: #{_lambda_.1} parent=11 // pred_check
        %p490 = pneg %p365
      $region70: #{_lambda_.1} parent=11 // pred_check_branch
        %492 = sbr.rel (%p490) target = $region72
      $region71: #{_lambda_.1} parent=11 // pred_region
        _
      $region72: #{_lambda_.1} parent=11 // pred_fallthru
        _
      // Predicated region
      $region73: #{_lambda_.1} parent=11 // pred_check
        %p493 = pneg %p386
      $region74: #{_lambda_.1} parent=11 // pred_check_branch
        %495 = sbr.rel (%p493) target = $region76
      $region75: #{_lambda_.1} parent=11 // pred_region
        _
      $region76: #{_lambda_.1} parent=11 // pred_fallthru
        _
      // Predicated region
      $region77: #{_lambda_.1} parent=11 // pred_check
        %p496 = pneg %p407
      $region78: #{_lambda_.1} parent=11 // pred_check_branch
        %498 = sbr.rel (%p496) target = $region80
      $region79: #{_lambda_.1} parent=11 // pred_region
        _
      $region80: #{_lambda_.1} parent=11 // pred_fallthru
        _
    $region12: #{_lambda_.1} parent=5 // pred_fallthru
      _
    %p499 = scmp.lt.s32.totalorder %s24, 2
    // Predicated region
    $region81: #{_lambda_.1} parent=5 // pred_check
      %p500 = pneg %p499
    $region82: #{_lambda_.1} parent=5 // pred_check_branch
      %502 = sbr.rel (%p500) target = $region84
    $region83: #{_lambda_.1} parent=5 // pred_region
      // Predicated region
      $region85: #{_lambda_.1} parent=83 // pred_check
        %p503 = pneg %p44
      $region86: #{_lambda_.1} parent=83 // pred_check_branch
        %505 = sbr.rel (%p503) target = $region88
      $region87: #{_lambda_.1} parent=83 // pred_region
        %p506 = scmp.lt.s32.totalorder %s24, 1
        %s507 = scalar_select %p506, %s24, 1
        %s508 = smul.addr %s507, 204
        %s509 = smul.addr %s508, 4
        %s510 = scalar_lea.vmem %s0, %s509
      $region88: #{_lambda_.1} parent=83 // pred_fallthru
        _
    $region84: #{_lambda_.1} parent=5 // pred_fallthru
      _
    %p511 = scmp.le.s32.totalorder 1, %s24
    %p512 = scmp.lt.s32.totalorder %s24, 3
    %p513 = pnand %p511, %p512
    %p514 = pneg %p513
    // Predicated region
    $region89: #{_lambda_.1} parent=5 // pred_check
      _
    $region90: #{_lambda_.1} parent=5 // pred_check_branch
      %516 = sbr.rel (%p513) target = $region92
    $region91: #{_lambda_.1} parent=5 // pred_region
      %s517 = ssub.s32 %s24, 1
      %p518 = scmp.lt.s32.totalorder %s29, 1
      %s519 = scalar_select %p518, %s29, 1
      %s520 = smul.addr %s519, 204
      %s521 = smul.addr %s520, 4
      %s522 = scalar_lea.vmem %s0, %s521
      %p523 = pneg %p50
      %p524 = pneg %p47
      %p525 = pneg %p71
      %p526 = pneg %p68
      %p527 = pneg %p92
      %p528 = pneg %p89
      %p529 = pneg %p113
      %p530 = pneg %p110
      %p531 = pneg %p134
      %p532 = pneg %p131
      %p533 = pneg %p155
      %p534 = pneg %p152
      %p535 = pneg %p176
      %p536 = pneg %p173
      %p537 = pneg %p197
      %p538 = pneg %p194
      %p539 = pneg %p218
      %p540 = pneg %p215
      %p541 = pneg %p239
      %p542 = pneg %p236
      %p543 = pneg %p260
      %p544 = pneg %p257
      %p545 = pneg %p281
      %p546 = pneg %p278
      %p547 = pneg %p302
      %p548 = pneg %p299
      %p549 = pneg %p323
      %p550 = pneg %p320
      %p551 = pneg %p344
      %p552 = pneg %p341
      %p553 = pneg %p365
      %p554 = pneg %p362
      %p555 = pneg %p386
      %p556 = pneg %p383
      %p557 = pneg %p407
      %p558 = pneg %p404
      %p559 = pneg %p433
      %p560 = pneg %p430
      %p561 = scmp.lt.s32.totalorder %s29, 1
      %s562 = scalar_select %p561, %s29, 1
      %s563 = smul.addr %s562, 4
      %s564 = smul.addr %s563, 8
      %s565 = scalar_lea.vmem %s18, %s564
      %p566 = scmp.lt.s32.totalorder %s29, 1
      %s567 = scalar_select %p566, %s29, 1
      %s568 = smul.addr %s567, 204
      %s569 = smul.addr %s568, 4
      %s570 = scalar_lea.vmem %s0, %s569
      %p571 = scmp.lt.s32.totalorder %s29, 1
      %s572 = scalar_select %p571, %s29, 1
      %s573 = smul.addr %s572, 4
      %s574 = smul.addr %s573, 8
      %s575 = scalar_lea.vmem %s18, %s574
      %v577 = vld [vmem:[%s1] sm:$0xff]
      %v578 = vld [vmem:[%s7] sm:$0xff]
      %v579 = vld [vmem:[%s13] sm:$0xf]
      %v580 = vld [vmem:[%s13 + $0x4] sm:$0xf]
      %v581 = vld [vmem:[%s13 + $0x8] sm:$0xf]
      %v582 = vld [vmem:[%s13 + $0xc] sm:$0xf]
      %v583 = vld [vmem:[%s13 + $0x10] sm:$0xf]
      %v584 = vld [vmem:[%s13 + $0x14] sm:$0xf]
      %v585 = vld [vmem:[%s13 + $0x18] sm:$0xf]
      %v586 = vld [vmem:[%s13 + $0x1c] sm:$0xf]
      %v587 = vld [vmem:[%s13 + $0x20] sm:$0xf]
      %v588 = vld [vmem:[%s13 + $0x24] sm:$0xf]
      %v589 = vld [vmem:[%s13 + $0x28] sm:$0xf]
      %v590 = vld [vmem:[%s13 + $0x2c] sm:$0xf]
      %v591 = vld [vmem:[%s13 + $0x30] sm:$0x3]
      %vm592 = vcmask 420864
      %593 = vst.msk [vmem:[#allocation2] sm:$0xf] %vm592, 0
      %s594 = scalar_lea.vmem [#allocation2], 204
      %595 = vst.msk [vmem:[%s594] sm:$0xf] %vm592, 0
      loop: start=0, step=1, limit=50
      $region93: #{_lambda_.1} parent=91 // loop_pre_header
        _
      $region94: #{_lambda_.1} parent=91 // loop_header
        %s597 = sphi 0, %s601
        %p598 = scmp.ge.s32.totalorder %s597, 50
      $region95: #{_lambda_.1} parent=91 // loop_header_branch
        %600 = sbr.rel (%p598) target = $region99
      $region96: #{_lambda_.1} parent=91 // loop_body
        %s602 = smul.u32 %s597, 2
        %s603 = smul.u32 %s602, 2
        %s604 = smul.addr %s603, 4
        %s605 = scalar_lea.vmem %s570, %s604
        %v606 = vld [vmem:[%s605] sm:$0xf]
        %v607 = vld [vmem:[%s605 + $0x4] sm:$0xf]
        %v608 = vunpack.c.l.bf16 %v606
        %v609 = vunpack.c.l.bf16 %v607
        %vm610 = vcmask 818176
        %611 = vst.msk [vmem:[#allocation7] sm:$0xff] %vm610, %v608
        %612 = vst.msk [vmem:[#allocation7 + $0x8] sm:$0xff] %vm610, %v609
        %615 = vrot.lane.b32.xlu0 %v608, 127
        %v616 = vpop.permute.xlu0 %615
        %617 = vrot.lane.b32.xlu0 %v609, 127
        %v618 = vpop.permute.xlu0 %617
        %621 = vst.msk [vmem:[#allocation7 + $0x10] sm:$0xff] %vm610, %v616
        %622 = vst.msk [vmem:[#allocation7 + $0x18] sm:$0xff] %vm610, %v618
        %623 = vrot.lane.b32.xlu0 %v608, 126
        %v624 = vpop.permute.xlu0 %623
        %625 = vrot.lane.b32.xlu0 %v609, 126
        %v626 = vpop.permute.xlu0 %625
        %629 = vst.msk [vmem:[#allocation7 + $0x20] sm:$0xff] %vm610, %v624
        %630 = vst.msk [vmem:[#allocation7 + $0x28] sm:$0xff] %vm610, %v626
        %s631 = sadd.s32 %s602, 1
        %s632 = smul.u32 %s631, 2
        %s633 = smul.addr %s632, 4
        %s634 = scalar_lea.vmem %s570, %s633
        %v635 = vld [vmem:[%s634] sm:$0xf]
        %v636 = vld [vmem:[%s634 + $0x4] sm:$0xf]
        %v637 = vunpack.c.l.bf16 %v635
        %v638 = vunpack.c.l.bf16 %v636
        %639 = vst.msk [vmem:[#allocation7 + $0x30] sm:$0xff] %vm610, %v637
        %640 = vst.msk [vmem:[#allocation7 + $0x38] sm:$0xff] %vm610, %v638
        %643 = vrot.lane.b32.xlu0 %v637, 127
        %v644 = vpop.permute.xlu0 %643
        %645 = vrot.lane.b32.xlu0 %v638, 127
        %v646 = vpop.permute.xlu0 %645
        %649 = vst.msk [vmem:[#allocation7 + $0x40] sm:$0xff] %vm610, %v644
        %650 = vst.msk [vmem:[#allocation7 + $0x48] sm:$0xff] %vm610, %v646
        %651 = vrot.lane.b32.xlu0 %v637, 126
        %v652 = vpop.permute.xlu0 %651
        %653 = vrot.lane.b32.xlu0 %v638, 126
        %v654 = vpop.permute.xlu0 %653
        %657 = vst.msk [vmem:[#allocation7 + $0x50] sm:$0xff] %vm610, %v652
        %658 = vst.msk [vmem:[#allocation7 + $0x58] sm:$0xff] %vm610, %v654
        %s659 = sadd.s32 %s602, 2
        %s660 = smul.u32 %s659, 2
        %s661 = smul.addr %s660, 4
        %s662 = scalar_lea.vmem %s570, %s661
        %v663 = vld [vmem:[%s662] sm:$0xf]
        %v664 = vld [vmem:[%s662 + $0x4] sm:$0xf]
        %v665 = vunpack.c.l.bf16 %v663
        %v666 = vunpack.c.l.bf16 %v664
        %667 = vst.msk [vmem:[#allocation7 + $0x60] sm:$0xff] %vm610, %v665
        %668 = vst.msk [vmem:[#allocation7 + $0x68] sm:$0xff] %vm610, %v666
        %671 = vrot.lane.b32.xlu0 %v665, 127
        %v672 = vpop.permute.xlu0 %671
        %673 = vrot.lane.b32.xlu0 %v666, 127
        %v674 = vpop.permute.xlu0 %673
        %677 = vst.msk [vmem:[#allocation7 + $0x70] sm:$0xff] %vm610, %v672
        %678 = vst.msk [vmem:[#allocation7 + $0x78] sm:$0xff] %vm610, %v674
        %679 = vrot.lane.b32.xlu0 %v665, 126
        %v680 = vpop.permute.xlu0 %679
        %681 = vrot.lane.b32.xlu0 %v666, 126
        %v682 = vpop.permute.xlu0 %681
        %685 = vst.msk [vmem:[#allocation7 + $0x80] sm:$0xff] %vm610, %v680
        %686 = vst.msk [vmem:[#allocation7 + $0x88] sm:$0xff] %vm610, %v682
        %v687 = vld [vmem:[#allocation7] sm:$0xff]
        %v688 = vld [vmem:[#allocation7 + $0x8] sm:$0xff]
        %v689 = vld [vmem:[#allocation7 + $0x10] sm:$0xff]
        %v690 = vld [vmem:[#allocation7 + $0x18] sm:$0xff]
        %v691 = vld [vmem:[#allocation7 + $0x20] sm:$0xff]
        %v692 = vld [vmem:[#allocation7 + $0x28] sm:$0xff]
        %v693 = vld [vmem:[#allocation7 + $0x30] sm:$0xff]
        %v694 = vld [vmem:[#allocation7 + $0x38] sm:$0xff]
        %v695 = vld [vmem:[#allocation7 + $0x40] sm:$0xff]
        %v696 = vld [vmem:[#allocation7 + $0x48] sm:$0xff]
        %v697 = vld [vmem:[#allocation7 + $0x50] sm:$0xff]
        %v698 = vld [vmem:[#allocation7 + $0x58] sm:$0xff]
        %v699 = vld [vmem:[#allocation7 + $0x60] sm:$0xff]
        %v700 = vld [vmem:[#allocation7 + $0x68] sm:$0xff]
        %v701 = vld [vmem:[#allocation7 + $0x70] sm:$0xff]
        %v702 = vld [vmem:[#allocation7 + $0x78] sm:$0xff]
        %v703 = vld [vmem:[#allocation7 + $0x80] sm:$0xff]
        %v704 = vld [vmem:[#allocation7 + $0x88] sm:$0xff]
        %v705 = vpack.c.bf16 %v688, %v687
        %v706 = vpack.c.bf16 %v690, %v689
        %v707 = vpack.c.bf16 %v692, %v691
        %v708 = vpack.c.bf16 %v694, %v693
        %v709 = vpack.c.bf16 %v696, %v695
        %v710 = vpack.c.bf16 %v698, %v697
        %v711 = vpack.c.bf16 %v700, %v699
        %v712 = vpack.c.bf16 %v702, %v701
        %v713 = vpack.c.bf16 %v704, %v703
        %715 = vset.pattern.permute.xlu0 0
        %716 = vperm.xlu0 %715, %v578
        %v717 = vpop.permute.xlu0 %716
        %v720 = vunpack.c.l.b16 %v577
        %v721 = vunpack.c.h.b16 %v577
        %v722 = vpack.c.b16 %v720, %v720
        %v723 = vpack.c.b16 %v721, %v721
        %vm725 = vcmask 130048
        %v727 = vsel %vm725, %v723, 0
        %729 = vmatpush.bf16.msra.mxu0 %v712
        %730 = vmatpush.bf16.msra.mxu0 %v711
        %731 = vmatpush.bf16.msra.mxu0 %v710
        %732 = vmatpush.bf16.msra.mxu0 %v709
        %733 = vmatpush.bf16.msra.mxu0 %v708
        %734 = vmatpush.bf16.msra.mxu0 %v707
        %735 = vmatpush.bf16.msra.mxu0 %v706
        %736 = vmatpush.bf16.msra.mxu0 %v705
        %737 = vmatmul.bf16.gmra.mxu0 %v722
        %v738 = vpop.f32.mrf.mxu0
        %v739 = vadd.f32 %v717, %v738
        %v740 = vpop.f32.mrf.mxu0
        %741 = vdwg.mxu0
        %742 = vmatpush.bf16.msra.mxu0 0
        %743 = vmatpush.bf16.msra.mxu0 0
        %744 = vmatpush.bf16.msra.mxu0 0
        %745 = vmatpush.bf16.msra.mxu0 0
        %746 = vmatpush.bf16.msra.mxu0 0
        %747 = vmatpush.bf16.msra.mxu0 0
        %748 = vmatpush.bf16.msra.mxu0 0
        %749 = vmatpush.bf16.msra.mxu0 %v713
        %750 = vmatmul.bf16.gmra.mxu0 %v727
        %v751 = vpop.f32.mrf.mxu0
        %v752 = vadd.f32 %v739, %v751
        %v753 = vpop.f32.mrf.mxu0
        %754 = vdwg.mxu0
        %v755 = vmax.f32 %v752, 0.0
        %756 = vset.pattern.permute.xlu0 1
        %757 = vperm.xlu0 %756, %v578
        %v758 = vpop.permute.xlu0 %757
        %v760 = vmul.f32 %v755, %v758
        %761 = vset.pattern.permute.xlu0 2
        %762 = vperm.xlu0 %761, %v578
        %v763 = vpop.permute.xlu0 %762
        %v765 = vadd.f32 %v760, %v763
        %v766 = vld [vmem:[%s634] sm:$0xf]
        %v767 = vld [vmem:[%s634 + $0x4] sm:$0xf]
        %v768 = vunpack.c.l.bf16 %v766
        %v769 = vunpack.c.l.bf16 %v767
        %770 = vst.msk [vmem:[#allocation7] sm:$0xff] %vm610, %v768
        %771 = vst.msk [vmem:[#allocation7 + $0x8] sm:$0xff] %vm610, %v769
        %774 = vrot.lane.b32.xlu0 %v768, 127
        %v775 = vpop.permute.xlu0 %774
        %776 = vrot.lane.b32.xlu0 %v769, 127
        %v777 = vpop.permute.xlu0 %776
        %780 = vst.msk [vmem:[#allocation7 + $0x10] sm:$0xff] %vm610, %v775
        %781 = vst.msk [vmem:[#allocation7 + $0x18] sm:$0xff] %vm610, %v777
        %782 = vrot.lane.b32.xlu0 %v768, 126
        %v783 = vpop.permute.xlu0 %782
        %784 = vrot.lane.b32.xlu0 %v769, 126
        %v785 = vpop.permute.xlu0 %784
        %788 = vst.msk [vmem:[#allocation7 + $0x20] sm:$0xff] %vm610, %v783
        %789 = vst.msk [vmem:[#allocation7 + $0x28] sm:$0xff] %vm610, %v785
        %v790 = vld [vmem:[%s662] sm:$0xf]
        %v791 = vld [vmem:[%s662 + $0x4] sm:$0xf]
        %v792 = vunpack.c.l.bf16 %v790
        %v793 = vunpack.c.l.bf16 %v791
        %794 = vst.msk [vmem:[#allocation7 + $0x30] sm:$0xff] %vm610, %v792
        %795 = vst.msk [vmem:[#allocation7 + $0x38] sm:$0xff] %vm610, %v793
        %798 = vrot.lane.b32.xlu0 %v792, 127
        %v799 = vpop.permute.xlu0 %798
        %800 = vrot.lane.b32.xlu0 %v793, 127
        %v801 = vpop.permute.xlu0 %800
        %804 = vst.msk [vmem:[#allocation7 + $0x40] sm:$0xff] %vm610, %v799
        %805 = vst.msk [vmem:[#allocation7 + $0x48] sm:$0xff] %vm610, %v801
        %806 = vrot.lane.b32.xlu0 %v792, 126
        %v807 = vpop.permute.xlu0 %806
        %808 = vrot.lane.b32.xlu0 %v793, 126
        %v809 = vpop.permute.xlu0 %808
        %812 = vst.msk [vmem:[#allocation7 + $0x50] sm:$0xff] %vm610, %v807
        %813 = vst.msk [vmem:[#allocation7 + $0x58] sm:$0xff] %vm610, %v809
        %s814 = sadd.s32 %s602, 3
        %s815 = smul.u32 %s814, 2
        %s816 = smul.addr %s815, 4
        %s817 = scalar_lea.vmem %s570, %s816
        %v818 = vld [vmem:[%s817] sm:$0xf]
        %v819 = vld [vmem:[%s817 + $0x4] sm:$0xf]
        %v820 = vunpack.c.l.bf16 %v818
        %v821 = vunpack.c.l.bf16 %v819
        %822 = vst.msk [vmem:[#allocation7 + $0x60] sm:$0xff] %vm610, %v820
        %823 = vst.msk [vmem:[#allocation7 + $0x68] sm:$0xff] %vm610, %v821
        %826 = vrot.lane.b32.xlu0 %v820, 127
        %v827 = vpop.permute.xlu0 %826
        %828 = vrot.lane.b32.xlu0 %v821, 127
        %v829 = vpop.permute.xlu0 %828
        %832 = vst.msk [vmem:[#allocation7 + $0x70] sm:$0xff] %vm610, %v827
        %833 = vst.msk [vmem:[#allocation7 + $0x78] sm:$0xff] %vm610, %v829
        %834 = vrot.lane.b32.xlu0 %v820, 126
        %v835 = vpop.permute.xlu0 %834
        %836 = vrot.lane.b32.xlu0 %v821, 126
        %v837 = vpop.permute.xlu0 %836
        %840 = vst.msk [vmem:[#allocation7 + $0x80] sm:$0xff] %vm610, %v835
        %841 = vst.msk [vmem:[#allocation7 + $0x88] sm:$0xff] %vm610, %v837
        %v842 = vld [vmem:[#allocation7] sm:$0xff]
        %v843 = vld [vmem:[#allocation7 + $0x8] sm:$0xff]
        %v844 = vld [vmem:[#allocation7 + $0x10] sm:$0xff]
        %v845 = vld [vmem:[#allocation7 + $0x18] sm:$0xff]
        %v846 = vld [vmem:[#allocation7 + $0x20] sm:$0xff]
        %v847 = vld [vmem:[#allocation7 + $0x28] sm:$0xff]
        %v848 = vld [vmem:[#allocation7 + $0x30] sm:$0xff]
        %v849 = vld [vmem:[#allocation7 + $0x38] sm:$0xff]
        %v850 = vld [vmem:[#allocation7 + $0x40] sm:$0xff]
        %v851 = vld [vmem:[#allocation7 + $0x48] sm:$0xff]
        %v852 = vld [vmem:[#allocation7 + $0x50] sm:$0xff]
        %v853 = vld [vmem:[#allocation7 + $0x58] sm:$0xff]
        %v854 = vld [vmem:[#allocation7 + $0x60] sm:$0xff]
        %v855 = vld [vmem:[#allocation7 + $0x68] sm:$0xff]
        %v856 = vld [vmem:[#allocation7 + $0x70] sm:$0xff]
        %v857 = vld [vmem:[#allocation7 + $0x78] sm:$0xff]
        %v858 = vld [vmem:[#allocation7 + $0x80] sm:$0xff]
        %v859 = vld [vmem:[#allocation7 + $0x88] sm:$0xff]
        %v860 = vpack.c.bf16 %v843, %v842
        %v861 = vpack.c.bf16 %v845, %v844
        %v862 = vpack.c.bf16 %v847, %v846
        %v863 = vpack.c.bf16 %v849, %v848
        %v864 = vpack.c.bf16 %v851, %v850
        %v865 = vpack.c.bf16 %v853, %v852
        %v866 = vpack.c.bf16 %v855, %v854
        %v867 = vpack.c.bf16 %v857, %v856
        %v868 = vpack.c.bf16 %v859, %v858
        %869 = vmatpush.bf16.msra.mxu0 %v867
        %870 = vmatpush.bf16.msra.mxu0 %v866
        %871 = vmatpush.bf16.msra.mxu0 %v865
        %872 = vmatpush.bf16.msra.mxu0 %v864
        %873 = vmatpush.bf16.msra.mxu0 %v863
        %874 = vmatpush.bf16.msra.mxu0 %v862
        %875 = vmatpush.bf16.msra.mxu0 %v861
        %876 = vmatpush.bf16.msra.mxu0 %v860
        %877 = vmatmul.bf16.gmra.mxu0 %v722
        %v878 = vpop.f32.mrf.mxu0
        %v879 = vadd.f32 %v717, %v878
        %v880 = vpop.f32.mrf.mxu0
        %881 = vdwg.mxu0
        %882 = vmatpush.bf16.msra.mxu0 0
        %883 = vmatpush.bf16.msra.mxu0 0
        %884 = vmatpush.bf16.msra.mxu0 0
        %885 = vmatpush.bf16.msra.mxu0 0
        %886 = vmatpush.bf16.msra.mxu0 0
        %887 = vmatpush.bf16.msra.mxu0 0
        %888 = vmatpush.bf16.msra.mxu0 0
        %889 = vmatpush.bf16.msra.mxu0 %v868
        %890 = vmatmul.bf16.gmra.mxu0 %v727
        %v891 = vpop.f32.mrf.mxu0
        %v892 = vadd.f32 %v879, %v891
        %v893 = vpop.f32.mrf.mxu0
        %894 = vdwg.mxu0
        %v895 = vmax.f32 %v892, 0.0
        %v896 = vmul.f32 %v895, %v758
        %v897 = vadd.f32 %v896, %v763
        %v898 = vadd.f32 %v765, %v897
        %v899 = vmul.f32 %v898, 0.5
        %v900 = vpack.c.bf16 %v899, %v899
        %v914 = vunpack.c.l.b16 %v579
        %v915 = vunpack.c.l.b16 %v580
        %v916 = vunpack.c.l.b16 %v581
        %v917 = vunpack.c.l.b16 %v582
        %v918 = vunpack.c.l.b16 %v583
        %v919 = vunpack.c.l.b16 %v584
        %v920 = vunpack.c.l.b16 %v585
        %v921 = vunpack.c.l.b16 %v586
        %v922 = vunpack.c.l.b16 %v587
        %v923 = vunpack.c.l.b16 %v588
        %v924 = vunpack.c.l.b16 %v589
        %v925 = vunpack.c.l.b16 %v590
        %v926 = vunpack.c.l.b16 %v591
        %v927 = vpack.c.b16 %v915, %v914
        %v928 = vpack.c.b16 %v917, %v916
        %v929 = vpack.c.b16 %v919, %v918
        %v930 = vpack.c.b16 %v921, %v920
        %v931 = vpack.c.b16 %v923, %v922
        %v932 = vpack.c.b16 %v925, %v924
        %v933 = vpack.c.b16 %v926, %v926
        %v941 = vsel %vm610, %v900, 0
        %vm943 = vcmask 1041408
        %v945 = vsel %vm943, %v933, 0
        %947 = vmatpush.bf16.msra.mxu0 0
        %948 = vmatpush.bf16.msra.mxu0 %v945
        %949 = vmatpush.bf16.msra.mxu0 %v932
        %950 = vmatpush.bf16.msra.mxu0 %v931
        %951 = vmatpush.bf16.msra.mxu0 %v930
        %952 = vmatpush.bf16.msra.mxu0 %v929
        %953 = vmatpush.bf16.msra.mxu0 %v928
        %954 = vmatpush.bf16.msra.mxu0 %v927
        %955 = vmatmul.bf16.gmra.mxu0 %v941
        %v956 = vpop.f32.mrf.mxu0
        %v957 = vadd.f32 0.0, %v956
        %v958 = vpop.f32.mrf.mxu0
        %959 = vdwg.mxu0
        %v960 = vpack.c.bf16 %v957, %v957
        %s961 = sadd.s32 %s597, 1
        %s962 = smul.addr %s961, 4
        %s963 = scalar_lea.vmem [#allocation2], %s962
        %964 = vst.msk [vmem:[%s963] sm:$0xf] %vm592, %v960
      $region97: #{_lambda_.1} parent=91 // loop_footer
        %s601 = sadd.s32 1, %s597
      $region98: #{_lambda_.1} parent=91 // loop_footer_branch
        %596 = sbr.rel target = $region94
      $region99: #{_lambda_.1} parent=91 // loop_exit
        _
      %v965 = vld [vmem:[%s2] sm:$0xf]
      %v966 = vld [vmem:[%s2 + $0x4] sm:$0xf]
      %v967 = vld [vmem:[%s8] sm:$0xff]
      %v968 = vld [vmem:[%s8 + $0x8] sm:$0xff]
      %v969 = vld [vmem:[%s14] sm:$0xf]
      %v970 = vld [vmem:[%s14 + $0x4] sm:$0xf]
      %v971 = vld [vmem:[%s14 + $0x8] sm:$0xf]
      %v972 = vld [vmem:[%s14 + $0xc] sm:$0xf]
      %v973 = vld [vmem:[%s14 + $0x10] sm:$0xf]
      %v974 = vld [vmem:[%s14 + $0x14] sm:$0xf]
      %v975 = vld [vmem:[%s14 + $0x18] sm:$0x1]
      %vm976 = vcmask 216064
      %977 = vst.msk [vmem:[#allocation3] sm:$0xf] %vm976, 0
      %978 = vst.msk [vmem:[#allocation3 + $0x4] sm:$0xf] %vm976, 0
      %s979 = scalar_lea.vmem [#allocation3], 208
      %980 = vst.msk [vmem:[%s979] sm:$0xf] %vm976, 0
      %981 = vst.msk [vmem:[%s979 + $0x4] sm:$0xf] %vm976, 0
      loop: start=0, step=1, limit=25
      $region100: #{_lambda_.1} parent=91 // loop_pre_header
        _
      $region101: #{_lambda_.1} parent=91 // loop_header
        %s983 = sphi 0, %s987
        %p984 = scmp.ge.s32.totalorder %s983, 25
      $region102: #{_lambda_.1} parent=91 // loop_header_branch
        %986 = sbr.rel (%p984) target = $region106
      $region103: #{_lambda_.1} parent=91 // loop_body
        %s988 = smul.u32 %s983, 2
        %s989 = smul.addr %s988, 4
        %s990 = scalar_lea.vmem [#allocation2], %s989
        %v991 = vld [vmem:[%s990] sm:$0xf]
        %v992 = vunpack.c.l.bf16 %v991
        %vm993 = vcmask 408576
        %994 = vst.msk [vmem:[#allocation7] sm:$0xff] %vm993, %v992
        %996 = vrot.lane.b32.xlu0 %v992, 127
        %v997 = vpop.permute.xlu0 %996
        %999 = vst.msk [vmem:[#allocation7 + $0x8] sm:$0xff] %vm993, %v997
        %1000 = vrot.lane.b32.xlu0 %v992, 126
        %v1001 = vpop.permute.xlu0 %1000
        %1003 = vst.msk [vmem:[#allocation7 + $0x10] sm:$0xff] %vm993, %v1001
        %s1004 = sadd.s32 %s988, 1
        %s1005 = smul.addr %s1004, 4
        %s1006 = scalar_lea.vmem [#allocation2], %s1005
        %v1007 = vld [vmem:[%s1006] sm:$0xf]
        %v1008 = vunpack.c.l.bf16 %v1007
        %1009 = vst.msk [vmem:[#allocation7 + $0x18] sm:$0xff] %vm993, %v1008
        %1011 = vrot.lane.b32.xlu0 %v1008, 127
        %v1012 = vpop.permute.xlu0 %1011
        %1014 = vst.msk [vmem:[#allocation7 + $0x20] sm:$0xff] %vm993, %v1012
        %1015 = vrot.lane.b32.xlu0 %v1008, 126
        %v1016 = vpop.permute.xlu0 %1015
        %1018 = vst.msk [vmem:[#allocation7 + $0x28] sm:$0xff] %vm993, %v1016
        %s1019 = sadd.s32 %s988, 2
        %s1020 = smul.addr %s1019, 4
        %s1021 = scalar_lea.vmem [#allocation2], %s1020
        %v1022 = vld [vmem:[%s1021] sm:$0xf]
        %v1023 = vunpack.c.l.bf16 %v1022
        %1024 = vst.msk [vmem:[#allocation7 + $0x30] sm:$0xff] %vm993, %v1023
        %1026 = vrot.lane.b32.xlu0 %v1023, 127
        %v1027 = vpop.permute.xlu0 %1026
        %1029 = vst.msk [vmem:[#allocation7 + $0x38] sm:$0xff] %vm993, %v1027
        %1030 = vrot.lane.b32.xlu0 %v1023, 126
        %v1031 = vpop.permute.xlu0 %1030
        %1033 = vst.msk [vmem:[#allocation7 + $0x40] sm:$0xff] %vm993, %v1031
        %v1034 = vld [vmem:[#allocation7] sm:$0xff]
        %v1035 = vld [vmem:[#allocation7 + $0x8] sm:$0xff]
        %v1036 = vld [vmem:[#allocation7 + $0x10] sm:$0xff]
        %v1037 = vld [vmem:[#allocation7 + $0x18] sm:$0xff]
        %v1038 = vld [vmem:[#allocation7 + $0x20] sm:$0xff]
        %v1039 = vld [vmem:[#allocation7 + $0x28] sm:$0xff]
        %v1040 = vld [vmem:[#allocation7 + $0x30] sm:$0xff]
        %v1041 = vld [vmem:[#allocation7 + $0x38] sm:$0xff]
        %v1042 = vld [vmem:[#allocation7 + $0x40] sm:$0xff]
        %v1043 = vpack.c.bf16 %v1035, %v1034
        %v1044 = vpack.c.bf16 %v1037, %v1036
        %v1045 = vpack.c.bf16 %v1039, %v1038
        %v1046 = vpack.c.bf16 %v1041, %v1040
        %v1047 = vpack.c.bf16 %v1042, %v1042
        %1049 = vset.pattern.permute.xlu0 0
        %1050 = vperm.xlu0 %1049, %v967
        %v1051 = vpop.permute.xlu0 %1050
        %1054 = vset.pattern.permute.xlu0 0
        %1055 = vperm.xlu0 %1054, %v968
        %v1056 = vpop.permute.xlu0 %1055
        %v1060 = vunpack.c.l.b16 %v965
        %v1061 = vunpack.c.l.b16 %v966
        %v1062 = vpack.c.b16 %v1061, %v1060
        %vm1063 = vcmask 588800
        %v1065 = vsel %vm1063, %v1062, 0
        %vm1067 = vcmask 1043456
        %v1069 = vsel %vm1067, %v1047, 0
        %1071 = vmatpush.bf16.msra.mxu0 0
        %1072 = vmatpush.bf16.msra.mxu0 0
        %1073 = vmatpush.bf16.msra.mxu0 0
        %1074 = vmatpush.bf16.msra.mxu0 %v1069
        %1075 = vmatpush.bf16.msra.mxu0 %v1046
        %1076 = vmatpush.bf16.msra.mxu0 %v1045
        %1077 = vmatpush.bf16.msra.mxu0 %v1044
        %1078 = vmatpush.bf16.msra.mxu0 %v1043
        %1079 = vmatmul.bf16.gmra.mxu0 %v1065
        %v1080 = vpop.f32.mrf.mxu0
        %v1081 = vadd.f32 %v1051, %v1080
        %v1082 = vpop.f32.mrf.mxu0
        %v1083 = vadd.f32 %v1056, %v1082
        %1084 = vdwg.mxu0
        %v1085 = vmax.f32 %v1081, 0.0
        %v1086 = vmax.f32 %v1083, 0.0
        %1087 = vset.pattern.permute.xlu0 1
        %1088 = vperm.xlu0 %1087, %v967
        %v1089 = vpop.permute.xlu0 %1088
        %1091 = vset.pattern.permute.xlu0 1
        %1092 = vperm.xlu0 %1091, %v968
        %v1093 = vpop.permute.xlu0 %1092
        %v1095 = vmul.f32 %v1085, %v1089
        %v1096 = vmul.f32 %v1086, %v1093
        %1097 = vset.pattern.permute.xlu0 2
        %1098 = vperm.xlu0 %1097, %v967
        %v1099 = vpop.permute.xlu0 %1098
        %1101 = vset.pattern.permute.xlu0 2
        %1102 = vperm.xlu0 %1101, %v968
        %v1103 = vpop.permute.xlu0 %1102
        %v1105 = vadd.f32 %v1095, %v1099
        %v1106 = vadd.f32 %v1096, %v1103
        %v1107 = vld [vmem:[%s1006] sm:$0xf]
        %v1108 = vunpack.c.l.bf16 %v1107
        %1109 = vst.msk [vmem:[#allocation7] sm:$0xff] %vm993, %v1108
        %1111 = vrot.lane.b32.xlu0 %v1108, 127
        %v1112 = vpop.permute.xlu0 %1111
        %1114 = vst.msk [vmem:[#allocation7 + $0x8] sm:$0xff] %vm993, %v1112
        %1115 = vrot.lane.b32.xlu0 %v1108, 126
        %v1116 = vpop.permute.xlu0 %1115
        %1118 = vst.msk [vmem:[#allocation7 + $0x10] sm:$0xff] %vm993, %v1116
        %v1119 = vld [vmem:[%s1021] sm:$0xf]
        %v1120 = vunpack.c.l.bf16 %v1119
        %1121 = vst.msk [vmem:[#allocation7 + $0x18] sm:$0xff] %vm993, %v1120
        %1123 = vrot.lane.b32.xlu0 %v1120, 127
        %v1124 = vpop.permute.xlu0 %1123
        %1126 = vst.msk [vmem:[#allocation7 + $0x20] sm:$0xff] %vm993, %v1124
        %1127 = vrot.lane.b32.xlu0 %v1120, 126
        %v1128 = vpop.permute.xlu0 %1127
        %1130 = vst.msk [vmem:[#allocation7 + $0x28] sm:$0xff] %vm993, %v1128
        %s1131 = sadd.s32 %s988, 3
        %s1132 = smul.addr %s1131, 4
        %s1133 = scalar_lea.vmem [#allocation2], %s1132
        %v1134 = vld [vmem:[%s1133] sm:$0xf]
        %v1135 = vunpack.c.l.bf16 %v1134
        %1136 = vst.msk [vmem:[#allocation7 + $0x30] sm:$0xff] %vm993, %v1135
        %1138 = vrot.lane.b32.xlu0 %v1135, 127
        %v1139 = vpop.permute.xlu0 %1138
        %1141 = vst.msk [vmem:[#allocation7 + $0x38] sm:$0xff] %vm993, %v1139
        %1142 = vrot.lane.b32.xlu0 %v1135, 126
        %v1143 = vpop.permute.xlu0 %1142
        %1145 = vst.msk [vmem:[#allocation7 + $0x40] sm:$0xff] %vm993, %v1143
        %v1146 = vld [vmem:[#allocation7] sm:$0xff]
        %v1147 = vld [vmem:[#allocation7 + $0x8] sm:$0xff]
        %v1148 = vld [vmem:[#allocation7 + $0x10] sm:$0xff]
        %v1149 = vld [vmem:[#allocation7 + $0x18] sm:$0xff]
        %v1150 = vld [vmem:[#allocation7 + $0x20] sm:$0xff]
        %v1151 = vld [vmem:[#allocation7 + $0x28] sm:$0xff]
        %v1152 = vld [vmem:[#allocation7 + $0x30] sm:$0xff]
        %v1153 = vld [vmem:[#allocation7 + $0x38] sm:$0xff]
        %v1154 = vld [vmem:[#allocation7 + $0x40] sm:$0xff]
        %v1155 = vpack.c.bf16 %v1147, %v1146
        %v1156 = vpack.c.bf16 %v1149, %v1148
        %v1157 = vpack.c.bf16 %v1151, %v1150
        %v1158 = vpack.c.bf16 %v1153, %v1152
        %v1159 = vpack.c.bf16 %v1154, %v1154
        %v1161 = vsel %vm1067, %v1159, 0
        %1163 = vmatpush.bf16.msra.mxu0 0
        %1164 = vmatpush.bf16.msra.mxu0 0
        %1165 = vmatpush.bf16.msra.mxu0 0
        %1166 = vmatpush.bf16.msra.mxu0 %v1161
        %1167 = vmatpush.bf16.msra.mxu0 %v1158
        %1168 = vmatpush.bf16.msra.mxu0 %v1157
        %1169 = vmatpush.bf16.msra.mxu0 %v1156
        %1170 = vmatpush.bf16.msra.mxu0 %v1155
        %1171 = vmatmul.bf16.gmra.mxu0 %v1065
        %v1172 = vpop.f32.mrf.mxu0
        %v1173 = vadd.f32 %v1051, %v1172
        %v1174 = vpop.f32.mrf.mxu0
        %v1175 = vadd.f32 %v1056, %v1174
        %1176 = vdwg.mxu0
        %v1177 = vmax.f32 %v1173, 0.0
        %v1178 = vmax.f32 %v1175, 0.0
        %v1179 = vmul.f32 %v1177, %v1089
        %v1180 = vmul.f32 %v1178, %v1093
        %v1181 = vadd.f32 %v1179, %v1099
        %v1182 = vadd.f32 %v1180, %v1103
        %v1183 = vadd.f32 %v1105, %v1181
        %v1184 = vadd.f32 %v1106, %v1182
        %v1185 = vmul.f32 %v1183, 0.5
        %v1186 = vmul.f32 %v1184, 0.5
        %v1187 = vpack.c.bf16 %v1186, %v1185
        %v1195 = vunpack.c.l.b16 %v969
        %v1196 = vunpack.c.l.b16 %v970
        %v1197 = vunpack.c.l.b16 %v971
        %v1198 = vunpack.c.l.b16 %v972
        %v1199 = vunpack.c.l.b16 %v973
        %v1200 = vunpack.c.l.b16 %v974
        %v1201 = vunpack.c.l.b16 %v975
        %v1202 = vpack.c.b16 %v1196, %v1195
        %v1203 = vpack.c.b16 %v1198, %v1197
        %v1204 = vpack.c.b16 %v1200, %v1199
        %v1205 = vpack.c.b16 %v1201, %v1201
        %v1210 = vsel %vm993, %v1187, 0
        %vm1212 = vcmask 1040384
        %v1214 = vsel %vm1212, %v1205, 0
        %1216 = vmatpush.bf16.msra.mxu0 0
        %1217 = vmatpush.bf16.msra.mxu0 0
        %1218 = vmatpush.bf16.msra.mxu0 0
        %1219 = vmatpush.bf16.msra.mxu0 0
        %1220 = vmatpush.bf16.msra.mxu0 %v1214
        %1221 = vmatpush.bf16.msra.mxu0 %v1204
        %1222 = vmatpush.bf16.msra.mxu0 %v1203
        %1223 = vmatpush.bf16.msra.mxu0 %v1202
        %1224 = vmatmul.bf16.gmra.mxu0 %v1210
        %v1225 = vpop.f32.mrf.mxu0
        %v1226 = vadd.f32 0.0, %v1225
        %v1227 = vpop.f32.mrf.mxu0
        %v1228 = vadd.f32 0.0, %v1227
        %1229 = vdwg.mxu0
        %v1230 = vpack.c.bf16 %v1226, %v1226
        %v1231 = vpack.c.bf16 %v1228, %v1228
        %s1232 = sadd.s32 %s983, 1
        %s1233 = smul.u32 %s1232, 2
        %s1234 = smul.addr %s1233, 4
        %s1235 = scalar_lea.vmem [#allocation3], %s1234
        %1236 = vst.msk [vmem:[%s1235] sm:$0xf] %vm976, %v1230
        %1237 = vst.msk [vmem:[%s1235 + $0x4] sm:$0xf] %vm976, %v1231
      $region104: #{_lambda_.1} parent=91 // loop_footer
        %s987 = sadd.s32 1, %s983
      $region105: #{_lambda_.1} parent=91 // loop_footer_branch
        %982 = sbr.rel target = $region101
      $region106: #{_lambda_.1} parent=91 // loop_exit
        _
      %v1238 = vld [vmem:[%s3] sm:$0xff]
      %v1239 = vld [vmem:[%s3 + $0x8] sm:$0xff]
      %v1240 = vld [vmem:[%s9] sm:$0xff]
      %v1241 = vld [vmem:[%s9 + $0x8] sm:$0xff]
      %v1242 = vld [vmem:[%s15] sm:$0xf]
      %v1243 = vld [vmem:[%s15 + $0x4] sm:$0xf]
      %v1244 = vld [vmem:[%s15 + $0x8] sm:$0xf]
      %v1245 = vld [vmem:[%s15 + $0xc] sm:$0x1]
      %vm1246 = vcmask 109568
      %1247 = vst.msk [vmem:[#allocation4] sm:$0xf] %vm1246, 0
      %1248 = vst.msk [vmem:[#allocation4 + $0x4] sm:$0xf] %vm1246, 0
      %s1249 = scalar_lea.vmem [#allocation4], 104
      %1250 = vst.msk [vmem:[%s1249] sm:$0xf] %vm1246, 0
      %1251 = vst.msk [vmem:[%s1249 + $0x4] sm:$0xf] %vm1246, 0
      loop: start=0, step=1, limit=12
      $region107: #{_lambda_.1} parent=91 // loop_pre_header
        _
      $region108: #{_lambda_.1} parent=91 // loop_header
        %s1253 = sphi 0, %s1257
        %p1254 = scmp.ge.s32.totalorder %s1253, 12
      $region109: #{_lambda_.1} parent=91 // loop_header_branch
        %1256 = sbr.rel (%p1254) target = $region113
      $region110: #{_lambda_.1} parent=91 // loop_body
        %s1258 = smul.u32 %s1253, 2
        %s1259 = smul.u32 %s1258, 2
        %s1260 = smul.addr %s1259, 4
        %s1261 = scalar_lea.vmem [#allocation3], %s1260
        %v1262 = vld [vmem:[%s1261] sm:$0xf]
        %v1263 = vld [vmem:[%s1261 + $0x4] sm:$0xf]
        %v1264 = vunpack.c.l.bf16 %v1262
        %v1265 = vunpack.c.l.bf16 %v1263
        %vm1266 = vcmask 203776
        %1267 = vst.msk [vmem:[#allocation7] sm:$0xff] %vm1266, %v1264
        %1268 = vst.msk [vmem:[#allocation7 + $0x8] sm:$0xff] %vm1266, %v1265
        %1271 = vrot.lane.b32.xlu0 %v1264, 127
        %v1272 = vpop.permute.xlu0 %1271
        %1273 = vrot.lane.b32.xlu0 %v1265, 127
        %v1274 = vpop.permute.xlu0 %1273
        %1277 = vst.msk [vmem:[#allocation7 + $0x10] sm:$0xff] %vm1266, %v1272
        %1278 = vst.msk [vmem:[#allocation7 + $0x18] sm:$0xff] %vm1266, %v1274
        %1279 = vrot.lane.b32.xlu0 %v1264, 126
        %v1280 = vpop.permute.xlu0 %1279
        %1281 = vrot.lane.b32.xlu0 %v1265, 126
        %v1282 = vpop.permute.xlu0 %1281
        %1285 = vst.msk [vmem:[#allocation7 + $0x20] sm:$0xff] %vm1266, %v1280
        %1286 = vst.msk [vmem:[#allocation7 + $0x28] sm:$0xff] %vm1266, %v1282
        %s1287 = sadd.s32 %s1258, 1
        %s1288 = smul.u32 %s1287, 2
        %s1289 = smul.addr %s1288, 4
        %s1290 = scalar_lea.vmem [#allocation3], %s1289
        %v1291 = vld [vmem:[%s1290] sm:$0xf]
        %v1292 = vld [vmem:[%s1290 + $0x4] sm:$0xf]
        %v1293 = vunpack.c.l.bf16 %v1291
        %v1294 = vunpack.c.l.bf16 %v1292
        %1295 = vst.msk [vmem:[#allocation7 + $0x30] sm:$0xff] %vm1266, %v1293
        %1296 = vst.msk [vmem:[#allocation7 + $0x38] sm:$0xff] %vm1266, %v1294
        %1299 = vrot.lane.b32.xlu0 %v1293, 127
        %v1300 = vpop.permute.xlu0 %1299
        %1301 = vrot.lane.b32.xlu0 %v1294, 127
        %v1302 = vpop.permute.xlu0 %1301
        %1305 = vst.msk [vmem:[#allocation7 + $0x40] sm:$0xff] %vm1266, %v1300
        %1306 = vst.msk [vmem:[#allocation7 + $0x48] sm:$0xff] %vm1266, %v1302
        %1307 = vrot.lane.b32.xlu0 %v1293, 126
        %v1308 = vpop.permute.xlu0 %1307
        %1309 = vrot.lane.b32.xlu0 %v1294, 126
        %v1310 = vpop.permute.xlu0 %1309
        %1313 = vst.msk [vmem:[#allocation7 + $0x50] sm:$0xff] %vm1266, %v1308
        %1314 = vst.msk [vmem:[#allocation7 + $0x58] sm:$0xff] %vm1266, %v1310
        %s1315 = sadd.s32 %s1258, 2
        %s1316 = smul.u32 %s1315, 2
        %s1317 = smul.addr %s1316, 4
        %s1318 = scalar_lea.vmem [#allocation3], %s1317
        %v1319 = vld [vmem:[%s1318] sm:$0xf]
        %v1320 = vld [vmem:[%s1318 + $0x4] sm:$0xf]
        %v1321 = vunpack.c.l.bf16 %v1319
        %v1322 = vunpack.c.l.bf16 %v1320
        %1323 = vst.msk [vmem:[#allocation7 + $0x60] sm:$0xff] %vm1266, %v1321
        %1324 = vst.msk [vmem:[#allocation7 + $0x68] sm:$0xff] %vm1266, %v1322
        %1327 = vrot.lane.b32.xlu0 %v1321, 127
        %v1328 = vpop.permute.xlu0 %1327
        %1329 = vrot.lane.b32.xlu0 %v1322, 127
        %v1330 = vpop.permute.xlu0 %1329
        %1333 = vst.msk [vmem:[#allocation7 + $0x70] sm:$0xff] %vm1266, %v1328
        %1334 = vst.msk [vmem:[#allocation7 + $0x78] sm:$0xff] %vm1266, %v1330
        %1335 = vrot.lane.b32.xlu0 %v1321, 126
        %v1336 = vpop.permute.xlu0 %1335
        %1337 = vrot.lane.b32.xlu0 %v1322, 126
        %v1338 = vpop.permute.xlu0 %1337
        %1341 = vst.msk [vmem:[#allocation7 + $0x80] sm:$0xff] %vm1266, %v1336
        %1342 = vst.msk [vmem:[#allocation7 + $0x88] sm:$0xff] %vm1266, %v1338
        %v1343 = vld [vmem:[#allocation7] sm:$0xff]
        %v1344 = vld [vmem:[#allocation7 + $0x8] sm:$0xff]
        %v1345 = vld [vmem:[#allocation7 + $0x10] sm:$0xff]
        %v1346 = vld [vmem:[#allocation7 + $0x18] sm:$0xff]
        %v1347 = vld [vmem:[#allocation7 + $0x20] sm:$0xff]
        %v1348 = vld [vmem:[#allocation7 + $0x28] sm:$0xff]
        %v1349 = vld [vmem:[#allocation7 + $0x30] sm:$0xff]
        %v1350 = vld [vmem:[#allocation7 + $0x38] sm:$0xff]
        %v1351 = vld [vmem:[#allocation7 + $0x40] sm:$0xff]
        %v1352 = vld [vmem:[#allocation7 + $0x48] sm:$0xff]
        %v1353 = vld [vmem:[#allocation7 + $0x50] sm:$0xff]
        %v1354 = vld [vmem:[#allocation7 + $0x58] sm:$0xff]
        %v1355 = vld [vmem:[#allocation7 + $0x60] sm:$0xff]
        %v1356 = vld [vmem:[#allocation7 + $0x68] sm:$0xff]
        %v1357 = vld [vmem:[#allocation7 + $0x70] sm:$0xff]
        %v1358 = vld [vmem:[#allocation7 + $0x78] sm:$0xff]
        %v1359 = vld [vmem:[#allocation7 + $0x80] sm:$0xff]
        %v1360 = vld [vmem:[#allocation7 + $0x88] sm:$0xff]
        %v1361 = vpack.c.bf16 %v1344, %v1343
        %v1362 = vpack.c.bf16 %v1346, %v1345
        %v1363 = vpack.c.bf16 %v1348, %v1347
        %v1364 = vpack.c.bf16 %v1350, %v1349
        %v1365 = vpack.c.bf16 %v1352, %v1351
        %v1366 = vpack.c.bf16 %v1354, %v1353
        %v1367 = vpack.c.bf16 %v1356, %v1355
        %v1368 = vpack.c.bf16 %v1358, %v1357
        %v1369 = vpack.c.bf16 %v1360, %v1359
        %1371 = vset.pattern.permute.xlu0 0
        %1372 = vperm.xlu0 %1371, %v1240
        %v1373 = vpop.permute.xlu0 %1372
        %1376 = vset.pattern.permute.xlu0 0
        %1377 = vperm.xlu0 %1376, %v1241
        %v1378 = vpop.permute.xlu0 %1377
        %v1382 = vunpack.c.l.b16 %v1238
        %v1383 = vunpack.c.h.b16 %v1238
        %v1384 = vunpack.c.l.b16 %v1239
        %v1385 = vunpack.c.h.b16 %v1239
        %v1386 = vpack.c.b16 %v1384, %v1382
        %v1387 = vpack.c.b16 %v1385, %v1383
        %vm1389 = vcmask 130048
        %v1391 = vsel %vm1389, %v1387, 0
        %1393 = vmatpush.bf16.msra.mxu0 %v1368
        %1394 = vmatpush.bf16.msra.mxu0 %v1367
        %1395 = vmatpush.bf16.msra.mxu0 %v1366
        %1396 = vmatpush.bf16.msra.mxu0 %v1365
        %1397 = vmatpush.bf16.msra.mxu0 %v1364
        %1398 = vmatpush.bf16.msra.mxu0 %v1363
        %1399 = vmatpush.bf16.msra.mxu0 %v1362
        %1400 = vmatpush.bf16.msra.mxu0 %v1361
        %1401 = vmatmul.bf16.gmra.mxu0 %v1386
        %v1402 = vpop.f32.mrf.mxu0
        %v1403 = vadd.f32 %v1373, %v1402
        %v1404 = vpop.f32.mrf.mxu0
        %v1405 = vadd.f32 %v1378, %v1404
        %1406 = vdwg.mxu0
        %1407 = vmatpush.bf16.msra.mxu0 0
        %1408 = vmatpush.bf16.msra.mxu0 0
        %1409 = vmatpush.bf16.msra.mxu0 0
        %1410 = vmatpush.bf16.msra.mxu0 0
        %1411 = vmatpush.bf16.msra.mxu0 0
        %1412 = vmatpush.bf16.msra.mxu0 0
        %1413 = vmatpush.bf16.msra.mxu0 0
        %1414 = vmatpush.bf16.msra.mxu0 %v1369
        %1415 = vmatmul.bf16.gmra.mxu0 %v1391
        %v1416 = vpop.f32.mrf.mxu0
        %v1417 = vadd.f32 %v1403, %v1416
        %v1418 = vpop.f32.mrf.mxu0
        %v1419 = vadd.f32 %v1405, %v1418
        %1420 = vdwg.mxu0
        %v1421 = vmax.f32 %v1417, 0.0
        %v1422 = vmax.f32 %v1419, 0.0
        %1423 = vset.pattern.permute.xlu0 1
        %1424 = vperm.xlu0 %1423, %v1240
        %v1425 = vpop.permute.xlu0 %1424
        %1427 = vset.pattern.permute.xlu0 1
        %1428 = vperm.xlu0 %1427, %v1241
        %v1429 = vpop.permute.xlu0 %1428
        %v1431 = vmul.f32 %v1421, %v1425
        %v1432 = vmul.f32 %v1422, %v1429
        %1433 = vset.pattern.permute.xlu0 2
        %1434 = vperm.xlu0 %1433, %v1240
        %v1435 = vpop.permute.xlu0 %1434
        %1437 = vset.pattern.permute.xlu0 2
        %1438 = vperm.xlu0 %1437, %v1241
        %v1439 = vpop.permute.xlu0 %1438
        %v1441 = vadd.f32 %v1431, %v1435
        %v1442 = vadd.f32 %v1432, %v1439
        %v1443 = vld [vmem:[%s1290] sm:$0xf]
        %v1444 = vld [vmem:[%s1290 + $0x4] sm:$0xf]
        %v1445 = vunpack.c.l.bf16 %v1443
        %v1446 = vunpack.c.l.bf16 %v1444
        %1447 = vst.msk [vmem:[#allocation7] sm:$0xff] %vm1266, %v1445
        %1448 = vst.msk [vmem:[#allocation7 + $0x8] sm:$0xff] %vm1266, %v1446
        %1451 = vrot.lane.b32.xlu0 %v1445, 127
        %v1452 = vpop.permute.xlu0 %1451
        %1453 = vrot.lane.b32.xlu0 %v1446, 127
        %v1454 = vpop.permute.xlu0 %1453
        %1457 = vst.msk [vmem:[#allocation7 + $0x10] sm:$0xff] %vm1266, %v1452
        %1458 = vst.msk [vmem:[#allocation7 + $0x18] sm:$0xff] %vm1266, %v1454
        %1459 = vrot.lane.b32.xlu0 %v1445, 126
        %v1460 = vpop.permute.xlu0 %1459
        %1461 = vrot.lane.b32.xlu0 %v1446, 126
        %v1462 = vpop.permute.xlu0 %1461
        %1465 = vst.msk [vmem:[#allocation7 + $0x20] sm:$0xff] %vm1266, %v1460
        %1466 = vst.msk [vmem:[#allocation7 + $0x28] sm:$0xff] %vm1266, %v1462
        %v1467 = vld [vmem:[%s1318] sm:$0xf]
        %v1468 = vld [vmem:[%s1318 + $0x4] sm:$0xf]
        %v1469 = vunpack.c.l.bf16 %v1467
        %v1470 = vunpack.c.l.bf16 %v1468
        %1471 = vst.msk [vmem:[#allocation7 + $0x30] sm:$0xff] %vm1266, %v1469
        %1472 = vst.msk [vmem:[#allocation7 + $0x38] sm:$0xff] %vm1266, %v1470
        %1475 = vrot.lane.b32.xlu0 %v1469, 127
        %v1476 = vpop.permute.xlu0 %1475
        %1477 = vrot.lane.b32.xlu0 %v1470, 127
        %v1478 = vpop.permute.xlu0 %1477
        %1481 = vst.msk [vmem:[#allocation7 + $0x40] sm:$0xff] %vm1266, %v1476
        %1482 = vst.msk [vmem:[#allocation7 + $0x48] sm:$0xff] %vm1266, %v1478
        %1483 = vrot.lane.b32.xlu0 %v1469, 126
        %v1484 = vpop.permute.xlu0 %1483
        %1485 = vrot.lane.b32.xlu0 %v1470, 126
        %v1486 = vpop.permute.xlu0 %1485
        %1489 = vst.msk [vmem:[#allocation7 + $0x50] sm:$0xff] %vm1266, %v1484
        %1490 = vst.msk [vmem:[#allocation7 + $0x58] sm:$0xff] %vm1266, %v1486
        %s1491 = sadd.s32 %s1258, 3
        %s1492 = smul.u32 %s1491, 2
        %s1493 = smul.addr %s1492, 4
        %s1494 = scalar_lea.vmem [#allocation3], %s1493
        %v1495 = vld [vmem:[%s1494] sm:$0xf]
        %v1496 = vld [vmem:[%s1494 + $0x4] sm:$0xf]
        %v1497 = vunpack.c.l.bf16 %v1495
        %v1498 = vunpack.c.l.bf16 %v1496
        %1499 = vst.msk [vmem:[#allocation7 + $0x60] sm:$0xff] %vm1266, %v1497
        %1500 = vst.msk [vmem:[#allocation7 + $0x68] sm:$0xff] %vm1266, %v1498
        %1503 = vrot.lane.b32.xlu0 %v1497, 127
        %v1504 = vpop.permute.xlu0 %1503
        %1505 = vrot.lane.b32.xlu0 %v1498, 127
        %v1506 = vpop.permute.xlu0 %1505
        %1509 = vst.msk [vmem:[#allocation7 + $0x70] sm:$0xff] %vm1266, %v1504
        %1510 = vst.msk [vmem:[#allocation7 + $0x78] sm:$0xff] %vm1266, %v1506
        %1511 = vrot.lane.b32.xlu0 %v1497, 126
        %v1512 = vpop.permute.xlu0 %1511
        %1513 = vrot.lane.b32.xlu0 %v1498, 126
        %v1514 = vpop.permute.xlu0 %1513
        %1517 = vst.msk [vmem:[#allocation7 + $0x80] sm:$0xff] %vm1266, %v1512
        %1518 = vst.msk [vmem:[#allocation7 + $0x88] sm:$0xff] %vm1266, %v1514
        %v1519 = vld [vmem:[#allocation7] sm:$0xff]
        %v1520 = vld [vmem:[#allocation7 + $0x8] sm:$0xff]
        %v1521 = vld [vmem:[#allocation7 + $0x10] sm:$0xff]
        %v1522 = vld [vmem:[#allocation7 + $0x18] sm:$0xff]
        %v1523 = vld [vmem:[#allocation7 + $0x20] sm:$0xff]
        %v1524 = vld [vmem:[#allocation7 + $0x28] sm:$0xff]
        %v1525 = vld [vmem:[#allocation7 + $0x30] sm:$0xff]
        %v1526 = vld [vmem:[#allocation7 + $0x38] sm:$0xff]
        %v1527 = vld [vmem:[#allocation7 + $0x40] sm:$0xff]
        %v1528 = vld [vmem:[#allocation7 + $0x48] sm:$0xff]
        %v1529 = vld [vmem:[#allocation7 + $0x50] sm:$0xff]
        %v1530 = vld [vmem:[#allocation7 + $0x58] sm:$0xff]
        %v1531 = vld [vmem:[#allocation7 + $0x60] sm:$0xff]
        %v1532 = vld [vmem:[#allocation7 + $0x68] sm:$0xff]
        %v1533 = vld [vmem:[#allocation7 + $0x70] sm:$0xff]
        %v1534 = vld [vmem:[#allocation7 + $0x78] sm:$0xff]
        %v1535 = vld [vmem:[#allocation7 + $0x80] sm:$0xff]
        %v1536 = vld [vmem:[#allocation7 + $0x88] sm:$0xff]
        %v1537 = vpack.c.bf16 %v1520, %v1519
        %v1538 = vpack.c.bf16 %v1522, %v1521
        %v1539 = vpack.c.bf16 %v1524, %v1523
        %v1540 = vpack.c.bf16 %v1526, %v1525
        %v1541 = vpack.c.bf16 %v1528, %v1527
        %v1542 = vpack.c.bf16 %v1530, %v1529
        %v1543 = vpack.c.bf16 %v1532, %v1531
        %v1544 = vpack.c.bf16 %v1534, %v1533
        %v1545 = vpack.c.bf16 %v1536, %v1535
        %1546 = vmatpush.bf16.msra.mxu0 %v1544
        %1547 = vmatpush.bf16.msra.mxu0 %v1543
        %1548 = vmatpush.bf16.msra.mxu0 %v1542
        %1549 = vmatpush.bf16.msra.mxu0 %v1541
        %1550 = vmatpush.bf16.msra.mxu0 %v1540
        %1551 = vmatpush.bf16.msra.mxu0 %v1539
        %1552 = vmatpush.bf16.msra.mxu0 %v1538
        %1553 = vmatpush.bf16.msra.mxu0 %v1537
        %1554 = vmatmul.bf16.gmra.mxu0 %v1386
        %v1555 = vpop.f32.mrf.mxu0
        %v1556 = vadd.f32 %v1373, %v1555
        %v1557 = vpop.f32.mrf.mxu0
        %v1558 = vadd.f32 %v1378, %v1557
        %1559 = vdwg.mxu0
        %1560 = vmatpush.bf16.msra.mxu0 0
        %1561 = vmatpush.bf16.msra.mxu0 0
        %1562 = vmatpush.bf16.msra.mxu0 0
        %1563 = vmatpush.bf16.msra.mxu0 0
        %1564 = vmatpush.bf16.msra.mxu0 0
        %1565 = vmatpush.bf16.msra.mxu0 0
        %1566 = vmatpush.bf16.msra.mxu0 0
        %1567 = vmatpush.bf16.msra.mxu0 %v1545
        %1568 = vmatmul.bf16.gmra.mxu0 %v1391
        %v1569 = vpop.f32.mrf.mxu0
        %v1570 = vadd.f32 %v1556, %v1569
        %v1571 = vpop.f32.mrf.mxu0
        %v1572 = vadd.f32 %v1558, %v1571
        %1573 = vdwg.mxu0
        %v1574 = vmax.f32 %v1570, 0.0
        %v1575 = vmax.f32 %v1572, 0.0
        %v1576 = vmul.f32 %v1574, %v1425
        %v1577 = vmul.f32 %v1575, %v1429
        %v1578 = vadd.f32 %v1576, %v1435
        %v1579 = vadd.f32 %v1577, %v1439
        %v1580 = vadd.f32 %v1441, %v1578
        %v1581 = vadd.f32 %v1442, %v1579
        %v1582 = vmul.f32 %v1580, 0.5
        %v1583 = vmul.f32 %v1581, 0.5
        %v1584 = vpack.c.bf16 %v1583, %v1582
        %v1589 = vunpack.c.l.b16 %v1242
        %v1590 = vunpack.c.l.b16 %v1243
        %v1591 = vunpack.c.l.b16 %v1244
        %v1592 = vunpack.c.l.b16 %v1245
        %v1593 = vpack.c.b16 %v1590, %v1589
        %v1594 = vpack.c.b16 %v1592, %v1591
        %v1597 = vsel %vm1266, %v1584, 0
        %vm1599 = vcmask 1043456
        %vm1600 = vcmask 1044480
        %v1601 = vsel %vm1599, 4294967295, 65535
        %v1602 = vsel %vm1600, %v1601, 0
        %v1604 = vand.u32 %v1594, %v1602
        %1606 = vmatpush.bf16.msra.mxu0 0
        %1607 = vmatpush.bf16.msra.mxu0 0
        %1608 = vmatpush.bf16.msra.mxu0 0
        %1609 = vmatpush.bf16.msra.mxu0 0
        %1610 = vmatpush.bf16.msra.mxu0 0
        %1611 = vmatpush.bf16.msra.mxu0 0
        %1612 = vmatpush.bf16.msra.mxu0 %v1604
        %1613 = vmatpush.bf16.msra.mxu0 %v1593
        %1614 = vmatmul.bf16.gmra.mxu0 %v1597
        %v1615 = vpop.f32.mrf.mxu0
        %v1616 = vadd.f32 0.0, %v1615
        %v1617 = vpop.f32.mrf.mxu0
        %v1618 = vadd.f32 0.0, %v1617
        %1619 = vdwg.mxu0
        %v1620 = vpack.c.bf16 %v1616, %v1616
        %v1621 = vpack.c.bf16 %v1618, %v1618
        %s1622 = sadd.s32 %s1253, 1
        %s1623 = smul.u32 %s1622, 2
        %s1624 = smul.addr %s1623, 4
        %s1625 = scalar_lea.vmem [#allocation4], %s1624
        %1626 = vst.msk [vmem:[%s1625] sm:$0xf] %vm1246, %v1620
        %1627 = vst.msk [vmem:[%s1625 + $0x4] sm:$0xf] %vm1246, %v1621
      $region111: #{_lambda_.1} parent=91 // loop_footer
        %s1257 = sadd.s32 1, %s1253
      $region112: #{_lambda_.1} parent=91 // loop_footer_branch
        %1252 = sbr.rel target = $region108
      $region113: #{_lambda_.1} parent=91 // loop_exit
        _
      %v1628 = vld [vmem:[%s4] sm:$0xff]
      %v1629 = vld [vmem:[%s4 + $0x8] sm:$0xff]
      %v1630 = vld [vmem:[%s4 + $0x10] sm:$0xff]
      %v1631 = vld [vmem:[%s10] sm:$0xff]
      %v1632 = vld [vmem:[%s10 + $0x8] sm:$0xff]
      %v1633 = vld [vmem:[%s10 + $0x10] sm:$0xff]
      %v1634 = vld [vmem:[%s16] sm:$0xf]
      %v1635 = vld [vmem:[%s16 + $0x4] sm:$0x3]
      %vm1636 = vcmask 60416
      %1637 = vst.msk [vmem:[#allocation5] sm:$0xf] %vm1636, 0
      %1638 = vst.msk [vmem:[#allocation5 + $0x4] sm:$0xf] %vm1636, 0
      %1639 = vst.msk [vmem:[#allocation5 + $0x8] sm:$0xf] %vm1636, 0
      %s1640 = scalar_lea.vmem [#allocation5], 84
      %1641 = vst.msk [vmem:[%s1640] sm:$0xf] %vm1636, 0
      %1642 = vst.msk [vmem:[%s1640 + $0x4] sm:$0xf] %vm1636, 0
      %1643 = vst.msk [vmem:[%s1640 + $0x8] sm:$0xf] %vm1636, 0
      loop: start=0, step=1, limit=6
      $region114: #{_lambda_.1} parent=91 // loop_pre_header
        _
      $region115: #{_lambda_.1} parent=91 // loop_header
        %s1645 = sphi 0, %s1649
        %p1646 = scmp.ge.s32.totalorder %s1645, 6
      $region116: #{_lambda_.1} parent=91 // loop_header_branch
        %1648 = sbr.rel (%p1646) target = $region120
      $region117: #{_lambda_.1} parent=91 // loop_body
        %s1650 = smul.u32 %s1645, 2
        %s1651 = smul.u32 %s1650, 2
        %s1652 = smul.addr %s1651, 4
        %s1653 = scalar_lea.vmem [#allocation4], %s1652
        %v1654 = vld [vmem:[%s1653] sm:$0xf]
        %v1655 = vld [vmem:[%s1653 + $0x4] sm:$0xf]
        %v1656 = vunpack.c.l.bf16 %v1654
        %v1657 = vunpack.c.l.bf16 %v1655
        %vm1658 = vcmask 97280
        %1659 = vst.msk [vmem:[#allocation7] sm:$0xff] %vm1658, %v1656
        %1660 = vst.msk [vmem:[#allocation7 + $0x8] sm:$0xff] %vm1658, %v1657
        %1663 = vrot.lane.b32.xlu0 %v1656, 127
        %v1664 = vpop.permute.xlu0 %1663
        %1665 = vrot.lane.b32.xlu0 %v1657, 127
        %v1666 = vpop.permute.xlu0 %1665
        %1669 = vst.msk [vmem:[#allocation7 + $0x10] sm:$0xff] %vm1658, %v1664
        %1670 = vst.msk [vmem:[#allocation7 + $0x18] sm:$0xff] %vm1658, %v1666
        %1671 = vrot.lane.b32.xlu0 %v1656, 126
        %v1672 = vpop.permute.xlu0 %1671
        %1673 = vrot.lane.b32.xlu0 %v1657, 126
        %v1674 = vpop.permute.xlu0 %1673
        %1677 = vst.msk [vmem:[#allocation7 + $0x20] sm:$0xff] %vm1658, %v1672
        %1678 = vst.msk [vmem:[#allocation7 + $0x28] sm:$0xff] %vm1658, %v1674
        %s1679 = sadd.s32 %s1650, 1
        %s1680 = smul.u32 %s1679, 2
        %s1681 = smul.addr %s1680, 4
        %s1682 = scalar_lea.vmem [#allocation4], %s1681
        %v1683 = vld [vmem:[%s1682] sm:$0xf]
        %v1684 = vld [vmem:[%s1682 + $0x4] sm:$0xf]
        %v1685 = vunpack.c.l.bf16 %v1683
        %v1686 = vunpack.c.l.bf16 %v1684
        %1687 = vst.msk [vmem:[#allocation7 + $0x30] sm:$0xff] %vm1658, %v1685
        %1688 = vst.msk [vmem:[#allocation7 + $0x38] sm:$0xff] %vm1658, %v1686
        %1691 = vrot.lane.b32.xlu0 %v1685, 127
        %v1692 = vpop.permute.xlu0 %1691
        %1693 = vrot.lane.b32.xlu0 %v1686, 127
        %v1694 = vpop.permute.xlu0 %1693
        %1697 = vst.msk [vmem:[#allocation7 + $0x40] sm:$0xff] %vm1658, %v1692
        %1698 = vst.msk [vmem:[#allocation7 + $0x48] sm:$0xff] %vm1658, %v1694
        %1699 = vrot.lane.b32.xlu0 %v1685, 126
        %v1700 = vpop.permute.xlu0 %1699
        %1701 = vrot.lane.b32.xlu0 %v1686, 126
        %v1702 = vpop.permute.xlu0 %1701
        %1705 = vst.msk [vmem:[#allocation7 + $0x50] sm:$0xff] %vm1658, %v1700
        %1706 = vst.msk [vmem:[#allocation7 + $0x58] sm:$0xff] %vm1658, %v1702
        %s1707 = sadd.s32 %s1650, 2
        %s1708 = smul.u32 %s1707, 2
        %s1709 = smul.addr %s1708, 4
        %s1710 = scalar_lea.vmem [#allocation4], %s1709
        %v1711 = vld [vmem:[%s1710] sm:$0xf]
        %v1712 = vld [vmem:[%s1710 + $0x4] sm:$0xf]
        %v1713 = vunpack.c.l.bf16 %v1711
        %v1714 = vunpack.c.l.bf16 %v1712
        %1715 = vst.msk [vmem:[#allocation7 + $0x60] sm:$0xff] %vm1658, %v1713
        %1716 = vst.msk [vmem:[#allocation7 + $0x68] sm:$0xff] %vm1658, %v1714
        %1719 = vrot.lane.b32.xlu0 %v1713, 127
        %v1720 = vpop.permute.xlu0 %1719
        %1721 = vrot.lane.b32.xlu0 %v1714, 127
        %v1722 = vpop.permute.xlu0 %1721
        %1725 = vst.msk [vmem:[#allocation7 + $0x70] sm:$0xff] %vm1658, %v1720
        %1726 = vst.msk [vmem:[#allocation7 + $0x78] sm:$0xff] %vm1658, %v1722
        %1727 = vrot.lane.b32.xlu0 %v1713, 126
        %v1728 = vpop.permute.xlu0 %1727
        %1729 = vrot.lane.b32.xlu0 %v1714, 126
        %v1730 = vpop.permute.xlu0 %1729
        %1733 = vst.msk [vmem:[#allocation7 + $0x80] sm:$0xff] %vm1658, %v1728
        %1734 = vst.msk [vmem:[#allocation7 + $0x88] sm:$0xff] %vm1658, %v1730
        %v1735 = vld [vmem:[#allocation7] sm:$0xff]
        %v1736 = vld [vmem:[#allocation7 + $0x8] sm:$0xff]
        %v1737 = vld [vmem:[#allocation7 + $0x10] sm:$0xff]
        %v1738 = vld [vmem:[#allocation7 + $0x18] sm:$0xff]
        %v1739 = vld [vmem:[#allocation7 + $0x20] sm:$0xff]
        %v1740 = vld [vmem:[#allocation7 + $0x28] sm:$0xff]
        %v1741 = vld [vmem:[#allocation7 + $0x30] sm:$0xff]
        %v1742 = vld [vmem:[#allocation7 + $0x38] sm:$0xff]
        %v1743 = vld [vmem:[#allocation7 + $0x40] sm:$0xff]
        %v1744 = vld [vmem:[#allocation7 + $0x48] sm:$0xff]
        %v1745 = vld [vmem:[#allocation7 + $0x50] sm:$0xff]
        %v1746 = vld [vmem:[#allocation7 + $0x58] sm:$0xff]
        %v1747 = vld [vmem:[#allocation7 + $0x60] sm:$0xff]
        %v1748 = vld [vmem:[#allocation7 + $0x68] sm:$0xff]
        %v1749 = vld [vmem:[#allocation7 + $0x70] sm:$0xff]
        %v1750 = vld [vmem:[#allocation7 + $0x78] sm:$0xff]
        %v1751 = vld [vmem:[#allocation7 + $0x80] sm:$0xff]
        %v1752 = vld [vmem:[#allocation7 + $0x88] sm:$0xff]
        %v1753 = vpack.c.bf16 %v1736, %v1735
        %v1754 = vpack.c.bf16 %v1738, %v1737
        %v1755 = vpack.c.bf16 %v1740, %v1739
        %v1756 = vpack.c.bf16 %v1742, %v1741
        %v1757 = vpack.c.bf16 %v1744, %v1743
        %v1758 = vpack.c.bf16 %v1746, %v1745
        %v1759 = vpack.c.bf16 %v1748, %v1747
        %v1760 = vpack.c.bf16 %v1750, %v1749
        %v1761 = vpack.c.bf16 %v1752, %v1751
        %1763 = vset.pattern.permute.xlu0 0
        %1764 = vperm.xlu0 %1763, %v1631
        %v1765 = vpop.permute.xlu0 %1764
        %1768 = vset.pattern.permute.xlu0 0
        %1769 = vperm.xlu0 %1768, %v1632
        %v1770 = vpop.permute.xlu0 %1769
        %1773 = vset.pattern.permute.xlu0 0
        %1774 = vperm.xlu0 %1773, %v1633
        %v1775 = vpop.permute.xlu0 %1774
        %v1780 = vunpack.c.l.b16 %v1628
        %v1781 = vunpack.c.h.b16 %v1628
        %v1782 = vunpack.c.l.b16 %v1629
        %v1783 = vunpack.c.h.b16 %v1629
        %v1784 = vunpack.c.l.b16 %v1630
        %v1785 = vunpack.c.h.b16 %v1630
        %v1786 = vpack.c.b16 %v1782, %v1780
        %v1787 = vpack.c.b16 %v1783, %v1781
        %v1788 = vpack.c.b16 %v1784, %v1784
        %v1789 = vpack.c.b16 %v1785, %v1785
        %vm1792 = vcmask 130048
        %v1794 = vsel %vm1792, %v1787, 0
        %v1797 = vsel %vm1792, %v1789, 0
        %1799 = vmatpush.bf16.msra.mxu0 %v1760
        %1800 = vmatpush.bf16.msra.mxu0 %v1759
        %1801 = vmatpush.bf16.msra.mxu0 %v1758
        %1802 = vmatpush.bf16.msra.mxu0 %v1757
        %1803 = vmatpush.bf16.msra.mxu0 %v1756
        %1804 = vmatpush.bf16.msra.mxu0 %v1755
        %1805 = vmatpush.bf16.msra.mxu0 %v1754
        %1806 = vmatpush.bf16.msra.mxu0 %v1753
        %1807 = vmatmul.bf16.gmra.mxu0 %v1786
        %v1808 = vpop.f32.mrf.mxu0
        %v1809 = vadd.f32 %v1765, %v1808
        %v1810 = vpop.f32.mrf.mxu0
        %v1811 = vadd.f32 %v1770, %v1810
        %1812 = vmatmul.bf16.gmra.mxu0 %v1788
        %v1813 = vpop.f32.mrf.mxu0
        %v1814 = vadd.f32 %v1775, %v1813
        %v1815 = vpop.f32.mrf.mxu0
        %1816 = vdwg.mxu0
        %1817 = vmatpush.bf16.msra.mxu0 0
        %1818 = vmatpush.bf16.msra.mxu0 0
        %1819 = vmatpush.bf16.msra.mxu0 0
        %1820 = vmatpush.bf16.msra.mxu0 0
        %1821 = vmatpush.bf16.msra.mxu0 0
        %1822 = vmatpush.bf16.msra.mxu0 0
        %1823 = vmatpush.bf16.msra.mxu0 0
        %1824 = vmatpush.bf16.msra.mxu0 %v1761
        %1825 = vmatmul.bf16.gmra.mxu0 %v1794
        %v1826 = vpop.f32.mrf.mxu0
        %v1827 = vadd.f32 %v1809, %v1826
        %v1828 = vpop.f32.mrf.mxu0
        %v1829 = vadd.f32 %v1811, %v1828
        %1830 = vmatmul.bf16.gmra.mxu0 %v1797
        %v1831 = vpop.f32.mrf.mxu0
        %v1832 = vadd.f32 %v1814, %v1831
        %v1833 = vpop.f32.mrf.mxu0
        %1834 = vdwg.mxu0
        %v1835 = vmax.f32 %v1827, 0.0
        %v1836 = vmax.f32 %v1829, 0.0
        %v1837 = vmax.f32 %v1832, 0.0
        %1838 = vset.pattern.permute.xlu0 1
        %1839 = vperm.xlu0 %1838, %v1631
        %v1840 = vpop.permute.xlu0 %1839
        %1842 = vset.pattern.permute.xlu0 1
        %1843 = vperm.xlu0 %1842, %v1632
        %v1844 = vpop.permute.xlu0 %1843
        %1846 = vset.pattern.permute.xlu0 1
        %1847 = vperm.xlu0 %1846, %v1633
        %v1848 = vpop.permute.xlu0 %1847
        %v1850 = vmul.f32 %v1835, %v1840
        %v1851 = vmul.f32 %v1836, %v1844
        %v1852 = vmul.f32 %v1837, %v1848
        %1853 = vset.pattern.permute.xlu0 2
        %1854 = vperm.xlu0 %1853, %v1631
        %v1855 = vpop.permute.xlu0 %1854
        %1857 = vset.pattern.permute.xlu0 2
        %1858 = vperm.xlu0 %1857, %v1632
        %v1859 = vpop.permute.xlu0 %1858
        %1861 = vset.pattern.permute.xlu0 2
        %1862 = vperm.xlu0 %1861, %v1633
        %v1863 = vpop.permute.xlu0 %1862
        %v1865 = vadd.f32 %v1850, %v1855
        %v1866 = vadd.f32 %v1851, %v1859
        %v1867 = vadd.f32 %v1852, %v1863
        %v1868 = vld [vmem:[%s1682] sm:$0xf]
        %v1869 = vld [vmem:[%s1682 + $0x4] sm:$0xf]
        %v1870 = vunpack.c.l.bf16 %v1868
        %v1871 = vunpack.c.l.bf16 %v1869
        %1872 = vst.msk [vmem:[#allocation7] sm:$0xff] %vm1658, %v1870
        %1873 = vst.msk [vmem:[#allocation7 + $0x8] sm:$0xff] %vm1658, %v1871
        %1876 = vrot.lane.b32.xlu0 %v1870, 127
        %v1877 = vpop.permute.xlu0 %1876
        %1878 = vrot.lane.b32.xlu0 %v1871, 127
        %v1879 = vpop.permute.xlu0 %1878
        %1882 = vst.msk [vmem:[#allocation7 + $0x10] sm:$0xff] %vm1658, %v1877
        %1883 = vst.msk [vmem:[#allocation7 + $0x18] sm:$0xff] %vm1658, %v1879
        %1884 = vrot.lane.b32.xlu0 %v1870, 126
        %v1885 = vpop.permute.xlu0 %1884
        %1886 = vrot.lane.b32.xlu0 %v1871, 126
        %v1887 = vpop.permute.xlu0 %1886
        %1890 = vst.msk [vmem:[#allocation7 + $0x20] sm:$0xff] %vm1658, %v1885
        %1891 = vst.msk [vmem:[#allocation7 + $0x28] sm:$0xff] %vm1658, %v1887
        %v1892 = vld [vmem:[%s1710] sm:$0xf]
        %v1893 = vld [vmem:[%s1710 + $0x4] sm:$0xf]
        %v1894 = vunpack.c.l.bf16 %v1892
        %v1895 = vunpack.c.l.bf16 %v1893
        %1896 = vst.msk [vmem:[#allocation7 + $0x30] sm:$0xff] %vm1658, %v1894
        %1897 = vst.msk [vmem:[#allocation7 + $0x38] sm:$0xff] %vm1658, %v1895
        %1900 = vrot.lane.b32.xlu0 %v1894, 127
        %v1901 = vpop.permute.xlu0 %1900
        %1902 = vrot.lane.b32.xlu0 %v1895, 127
        %v1903 = vpop.permute.xlu0 %1902
        %1906 = vst.msk [vmem:[#allocation7 + $0x40] sm:$0xff] %vm1658, %v1901
        %1907 = vst.msk [vmem:[#allocation7 + $0x48] sm:$0xff] %vm1658, %v1903
        %1908 = vrot.lane.b32.xlu0 %v1894, 126
        %v1909 = vpop.permute.xlu0 %1908
        %1910 = vrot.lane.b32.xlu0 %v1895, 126
        %v1911 = vpop.permute.xlu0 %1910
        %1914 = vst.msk [vmem:[#allocation7 + $0x50] sm:$0xff] %vm1658, %v1909
        %1915 = vst.msk [vmem:[#allocation7 + $0x58] sm:$0xff] %vm1658, %v1911
        %s1916 = sadd.s32 %s1650, 3
        %s1917 = smul.u32 %s1916, 2
        %s1918 = smul.addr %s1917, 4
        %s1919 = scalar_lea.vmem [#allocation4], %s1918
        %v1920 = vld [vmem:[%s1919] sm:$0xf]
        %v1921 = vld [vmem:[%s1919 + $0x4] sm:$0xf]
        %v1922 = vunpack.c.l.bf16 %v1920
        %v1923 = vunpack.c.l.bf16 %v1921
        %1924 = vst.msk [vmem:[#allocation7 + $0x60] sm:$0xff] %vm1658, %v1922
        %1925 = vst.msk [vmem:[#allocation7 + $0x68] sm:$0xff] %vm1658, %v1923
        %1928 = vrot.lane.b32.xlu0 %v1922, 127
        %v1929 = vpop.permute.xlu0 %1928
        %1930 = vrot.lane.b32.xlu0 %v1923, 127
        %v1931 = vpop.permute.xlu0 %1930
        %1934 = vst.msk [vmem:[#allocation7 + $0x70] sm:$0xff] %vm1658, %v1929
        %1935 = vst.msk [vmem:[#allocation7 + $0x78] sm:$0xff] %vm1658, %v1931
        %1936 = vrot.lane.b32.xlu0 %v1922, 126
        %v1937 = vpop.permute.xlu0 %1936
        %1938 = vrot.lane.b32.xlu0 %v1923, 126
        %v1939 = vpop.permute.xlu0 %1938
        %1942 = vst.msk [vmem:[#allocation7 + $0x80] sm:$0xff] %vm1658, %v1937
        %1943 = vst.msk [vmem:[#allocation7 + $0x88] sm:$0xff] %vm1658, %v1939
        %v1944 = vld [vmem:[#allocation7] sm:$0xff]
        %v1945 = vld [vmem:[#allocation7 + $0x8] sm:$0xff]
        %v1946 = vld [vmem:[#allocation7 + $0x10] sm:$0xff]
        %v1947 = vld [vmem:[#allocation7 + $0x18] sm:$0xff]
        %v1948 = vld [vmem:[#allocation7 + $0x20] sm:$0xff]
        %v1949 = vld [vmem:[#allocation7 + $0x28] sm:$0xff]
        %v1950 = vld [vmem:[#allocation7 + $0x30] sm:$0xff]
        %v1951 = vld [vmem:[#allocation7 + $0x38] sm:$0xff]
        %v1952 = vld [vmem:[#allocation7 + $0x40] sm:$0xff]
        %v1953 = vld [vmem:[#allocation7 + $0x48] sm:$0xff]
        %v1954 = vld [vmem:[#allocation7 + $0x50] sm:$0xff]
        %v1955 = vld [vmem:[#allocation7 + $0x58] sm:$0xff]
        %v1956 = vld [vmem:[#allocation7 + $0x60] sm:$0xff]
        %v1957 = vld [vmem:[#allocation7 + $0x68] sm:$0xff]
        %v1958 = vld [vmem:[#allocation7 + $0x70] sm:$0xff]
        %v1959 = vld [vmem:[#allocation7 + $0x78] sm:$0xff]
        %v1960 = vld [vmem:[#allocation7 + $0x80] sm:$0xff]
        %v1961 = vld [vmem:[#allocation7 + $0x88] sm:$0xff]
        %v1962 = vpack.c.bf16 %v1945, %v1944
        %v1963 = vpack.c.bf16 %v1947, %v1946
        %v1964 = vpack.c.bf16 %v1949, %v1948
        %v1965 = vpack.c.bf16 %v1951, %v1950
        %v1966 = vpack.c.bf16 %v1953, %v1952
        %v1967 = vpack.c.bf16 %v1955, %v1954
        %v1968 = vpack.c.bf16 %v1957, %v1956
        %v1969 = vpack.c.bf16 %v1959, %v1958
        %v1970 = vpack.c.bf16 %v1961, %v1960
        %1971 = vmatpush.bf16.msra.mxu0 %v1969
        %1972 = vmatpush.bf16.msra.mxu0 %v1968
        %1973 = vmatpush.bf16.msra.mxu0 %v1967
        %1974 = vmatpush.bf16.msra.mxu0 %v1966
        %1975 = vmatpush.bf16.msra.mxu0 %v1965
        %1976 = vmatpush.bf16.msra.mxu0 %v1964
        %1977 = vmatpush.bf16.msra.mxu0 %v1963
        %1978 = vmatpush.bf16.msra.mxu0 %v1962
        %1979 = vmatmul.bf16.gmra.mxu0 %v1786
        %v1980 = vpop.f32.mrf.mxu0
        %v1981 = vadd.f32 %v1765, %v1980
        %v1982 = vpop.f32.mrf.mxu0
        %v1983 = vadd.f32 %v1770, %v1982
        %1984 = vmatmul.bf16.gmra.mxu0 %v1788
        %v1985 = vpop.f32.mrf.mxu0
        %v1986 = vadd.f32 %v1775, %v1985
        %v1987 = vpop.f32.mrf.mxu0
        %1988 = vdwg.mxu0
        %1989 = vmatpush.bf16.msra.mxu0 0
        %1990 = vmatpush.bf16.msra.mxu0 0
        %1991 = vmatpush.bf16.msra.mxu0 0
        %1992 = vmatpush.bf16.msra.mxu0 0
        %1993 = vmatpush.bf16.msra.mxu0 0
        %1994 = vmatpush.bf16.msra.mxu0 0
        %1995 = vmatpush.bf16.msra.mxu0 0
        %1996 = vmatpush.bf16.msra.mxu0 %v1970
        %1997 = vmatmul.bf16.gmra.mxu0 %v1794
        %v1998 = vpop.f32.mrf.mxu0
        %v1999 = vadd.f32 %v1981, %v1998
        %v2000 = vpop.f32.mrf.mxu0
        %v2001 = vadd.f32 %v1983, %v2000
        %2002 = vmatmul.bf16.gmra.mxu0 %v1797
        %v2003 = vpop.f32.mrf.mxu0
        %v2004 = vadd.f32 %v1986, %v2003
        %v2005 = vpop.f32.mrf.mxu0
        %2006 = vdwg.mxu0
        %v2007 = vmax.f32 %v1999, 0.0
        %v2008 = vmax.f32 %v2001, 0.0
        %v2009 = vmax.f32 %v2004, 0.0
        %v2010 = vmul.f32 %v2007, %v1840
        %v2011 = vmul.f32 %v2008, %v1844
        %v2012 = vmul.f32 %v2009, %v1848
        %v2013 = vadd.f32 %v2010, %v1855
        %v2014 = vadd.f32 %v2011, %v1859
        %v2015 = vadd.f32 %v2012, %v1863
        %v2016 = vadd.f32 %v1865, %v2013
        %v2017 = vadd.f32 %v1866, %v2014
        %v2018 = vadd.f32 %v1867, %v2015
        %v2019 = vmul.f32 %v2016, 0.5
        %v2020 = vmul.f32 %v2017, 0.5
        %v2021 = vmul.f32 %v2018, 0.5
        %v2022 = vpack.c.bf16 %v2020, %v2019
        %v2023 = vpack.c.bf16 %v2021, %v2021
        %v2026 = vunpack.c.l.b16 %v1634
        %v2027 = vunpack.c.l.b16 %v1635
        %v2028 = vpack.c.b16 %v2027, %v2026
        %v2030 = vsel %vm1658, %v2022, 0
        %v2033 = vsel %vm1658, %v2023, 0
        %vm2035 = vcmask 1045504
        %v2037 = vsel %vm2035, %v2028, 0
        %2039 = vmatpush.bf16.msra.mxu0 0
        %2040 = vmatpush.bf16.msra.mxu0 0
        %2041 = vmatpush.bf16.msra.mxu0 0
        %2042 = vmatpush.bf16.msra.mxu0 0
        %2043 = vmatpush.bf16.msra.mxu0 0
        %2044 = vmatpush.bf16.msra.mxu0 0
        %2045 = vmatpush.bf16.msra.mxu0 0
        %2046 = vmatpush.bf16.msra.mxu0 %v2037
        %2047 = vmatmul.bf16.gmra.mxu0 %v2030
        %v2048 = vpop.f32.mrf.mxu0
        %v2049 = vadd.f32 0.0, %v2048
        %v2050 = vpop.f32.mrf.mxu0
        %v2051 = vadd.f32 0.0, %v2050
        %2052 = vmatmul.bf16.gmra.mxu0 %v2033
        %v2053 = vpop.f32.mrf.mxu0
        %v2054 = vadd.f32 0.0, %v2053
        %v2055 = vpop.f32.mrf.mxu0
        %2056 = vdwg.mxu0
        %v2057 = vpack.c.bf16 %v2049, %v2049
        %v2058 = vpack.c.bf16 %v2051, %v2051
        %v2059 = vpack.c.bf16 %v2054, %v2054
        %s2060 = sadd.s32 %s1645, 1
        %s2061 = smul.u32 %s2060, 3
        %s2062 = smul.addr %s2061, 4
        %s2063 = scalar_lea.vmem [#allocation5], %s2062
        %2064 = vst.msk [vmem:[%s2063] sm:$0xf] %vm1636, %v2057
        %2065 = vst.msk [vmem:[%s2063 + $0x4] sm:$0xf] %vm1636, %v2058
        %2066 = vst.msk [vmem:[%s2063 + $0x8] sm:$0xf] %vm1636, %v2059
      $region118: #{_lambda_.1} parent=91 // loop_footer
        %s1649 = sadd.s32 1, %s1645
      $region119: #{_lambda_.1} parent=91 // loop_footer_branch
        %1644 = sbr.rel target = $region115
      $region120: #{_lambda_.1} parent=91 // loop_exit
        _
      %v2067 = vld [vmem:[%s5] sm:$0xff]
      %v2068 = vld [vmem:[%s5 + $0x8] sm:$0xff]
      %v2069 = vld [vmem:[%s5 + $0x10] sm:$0xff]
      %v2070 = vld [vmem:[%s11] sm:$0xff]
      %v2071 = vld [vmem:[%s11 + $0x8] sm:$0xff]
      %v2072 = vld [vmem:[%s11 + $0x10] sm:$0xff]
      %v2073 = vld [vmem:[%s17] sm:$0x7]
      %vm2074 = vcmask 35840
      %2075 = vst.msk [vmem:[#allocation6] sm:$0xf] %vm2074, 0
      %2076 = vst.msk [vmem:[#allocation6 + $0x4] sm:$0xf] %vm2074, 0
      %2077 = vst.msk [vmem:[#allocation6 + $0x8] sm:$0xf] %vm2074, 0
      %s2078 = scalar_lea.vmem [#allocation6], 48
      %2079 = vst.msk [vmem:[%s2078] sm:$0xf] %vm2074, 0
      %2080 = vst.msk [vmem:[%s2078 + $0x4] sm:$0xf] %vm2074, 0
      %2081 = vst.msk [vmem:[%s2078 + $0x8] sm:$0xf] %vm2074, 0
      loop: start=0, step=1, limit=3
      $region121: #{_lambda_.1} parent=91 // loop_pre_header
        _
      $region122: #{_lambda_.1} parent=91 // loop_header
        %s2083 = sphi 0, %s2087
        %p2084 = scmp.ge.s32.totalorder %s2083, 3
      $region123: #{_lambda_.1} parent=91 // loop_header_branch
        %2086 = sbr.rel (%p2084) target = $region127
      $region124: #{_lambda_.1} parent=91 // loop_body
        %s2088 = smul.u32 %s2083, 2
        %s2089 = smul.u32 %s2088, 3
        %s2090 = smul.addr %s2089, 4
        %s2091 = scalar_lea.vmem [#allocation5], %s2090
        %v2092 = vld [vmem:[%s2091] sm:$0xf]
        %v2093 = vld [vmem:[%s2091 + $0x4] sm:$0xf]
        %v2094 = vld [vmem:[%s2091 + $0x8] sm:$0xf]
        %v2095 = vunpack.c.l.bf16 %v2092
        %v2096 = vunpack.c.l.bf16 %v2093
        %v2097 = vunpack.c.l.bf16 %v2094
        %vm2098 = vcmask 48128
        %2099 = vst.msk [vmem:[#allocation7] sm:$0xff] %vm2098, %v2095
        %2100 = vst.msk [vmem:[#allocation7 + $0x8] sm:$0xff] %vm2098, %v2096
        %2101 = vst.msk [vmem:[#allocation7 + $0x10] sm:$0xff] %vm2098, %v2097
        %2105 = vrot.lane.b32.xlu0 %v2095, 127
        %v2106 = vpop.permute.xlu0 %2105
        %2107 = vrot.lane.b32.xlu0 %v2096, 127
        %v2108 = vpop.permute.xlu0 %2107
        %2109 = vrot.lane.b32.xlu0 %v2097, 127
        %v2110 = vpop.permute.xlu0 %2109
        %2114 = vst.msk [vmem:[#allocation7 + $0x18] sm:$0xff] %vm2098, %v2106
        %2115 = vst.msk [vmem:[#allocation7 + $0x20] sm:$0xff] %vm2098, %v2108
        %2116 = vst.msk [vmem:[#allocation7 + $0x28] sm:$0xff] %vm2098, %v2110
        %2117 = vrot.lane.b32.xlu0 %v2095, 126
        %v2118 = vpop.permute.xlu0 %2117
        %2119 = vrot.lane.b32.xlu0 %v2096, 126
        %v2120 = vpop.permute.xlu0 %2119
        %2121 = vrot.lane.b32.xlu0 %v2097, 126
        %v2122 = vpop.permute.xlu0 %2121
        %2126 = vst.msk [vmem:[#allocation7 + $0x30] sm:$0xff] %vm2098, %v2118
        %2127 = vst.msk [vmem:[#allocation7 + $0x38] sm:$0xff] %vm2098, %v2120
        %2128 = vst.msk [vmem:[#allocation7 + $0x40] sm:$0xff] %vm2098, %v2122
        %s2129 = sadd.s32 %s2088, 1
        %s2130 = smul.u32 %s2129, 3
        %s2131 = smul.addr %s2130, 4
        %s2132 = scalar_lea.vmem [#allocation5], %s2131
        %v2133 = vld [vmem:[%s2132] sm:$0xf]
        %v2134 = vld [vmem:[%s2132 + $0x4] sm:$0xf]
        %v2135 = vld [vmem:[%s2132 + $0x8] sm:$0xf]
        %v2136 = vunpack.c.l.bf16 %v2133
        %v2137 = vunpack.c.l.bf16 %v2134
        %v2138 = vunpack.c.l.bf16 %v2135
        %2139 = vst.msk [vmem:[#allocation7 + $0x48] sm:$0xff] %vm2098, %v2136
        %2140 = vst.msk [vmem:[#allocation7 + $0x50] sm:$0xff] %vm2098, %v2137
        %2141 = vst.msk [vmem:[#allocation7 + $0x58] sm:$0xff] %vm2098, %v2138
        %2145 = vrot.lane.b32.xlu0 %v2136, 127
        %v2146 = vpop.permute.xlu0 %2145
        %2147 = vrot.lane.b32.xlu0 %v2137, 127
        %v2148 = vpop.permute.xlu0 %2147
        %2149 = vrot.lane.b32.xlu0 %v2138, 127
        %v2150 = vpop.permute.xlu0 %2149
        %2154 = vst.msk [vmem:[#allocation7 + $0x60] sm:$0xff] %vm2098, %v2146
        %2155 = vst.msk [vmem:[#allocation7 + $0x68] sm:$0xff] %vm2098, %v2148
        %2156 = vst.msk [vmem:[#allocation7 + $0x70] sm:$0xff] %vm2098, %v2150
        %2157 = vrot.lane.b32.xlu0 %v2136, 126
        %v2158 = vpop.permute.xlu0 %2157
        %2159 = vrot.lane.b32.xlu0 %v2137, 126
        %v2160 = vpop.permute.xlu0 %2159
        %2161 = vrot.lane.b32.xlu0 %v2138, 126
        %v2162 = vpop.permute.xlu0 %2161
        %2166 = vst.msk [vmem:[#allocation7 + $0x78] sm:$0xff] %vm2098, %v2158
        %2167 = vst.msk [vmem:[#allocation7 + $0x80] sm:$0xff] %vm2098, %v2160
        %2168 = vst.msk [vmem:[#allocation7 + $0x88] sm:$0xff] %vm2098, %v2162
        %s2169 = sadd.s32 %s2088, 2
        %s2170 = smul.u32 %s2169, 3
        %s2171 = smul.addr %s2170, 4
        %s2172 = scalar_lea.vmem [#allocation5], %s2171
        %v2173 = vld [vmem:[%s2172] sm:$0xf]
        %v2174 = vld [vmem:[%s2172 + $0x4] sm:$0xf]
        %v2175 = vld [vmem:[%s2172 + $0x8] sm:$0xf]
        %v2176 = vunpack.c.l.bf16 %v2173
        %v2177 = vunpack.c.l.bf16 %v2174
        %v2178 = vunpack.c.l.bf16 %v2175
        %2179 = vst.msk [vmem:[#allocation7 + $0x90] sm:$0xff] %vm2098, %v2176
        %2180 = vst.msk [vmem:[#allocation7 + $0x98] sm:$0xff] %vm2098, %v2177
        %2181 = vst.msk [vmem:[#allocation7 + $0xa0] sm:$0xff] %vm2098, %v2178
        %2185 = vrot.lane.b32.xlu0 %v2176, 127
        %v2186 = vpop.permute.xlu0 %2185
        %2187 = vrot.lane.b32.xlu0 %v2177, 127
        %v2188 = vpop.permute.xlu0 %2187
        %2189 = vrot.lane.b32.xlu0 %v2178, 127
        %v2190 = vpop.permute.xlu0 %2189
        %2194 = vst.msk [vmem:[#allocation7 + $0xa8] sm:$0xff] %vm2098, %v2186
        %2195 = vst.msk [vmem:[#allocation7 + $0xb0] sm:$0xff] %vm2098, %v2188
        %2196 = vst.msk [vmem:[#allocation7 + $0xb8] sm:$0xff] %vm2098, %v2190
        %2197 = vrot.lane.b32.xlu0 %v2176, 126
        %v2198 = vpop.permute.xlu0 %2197
        %2199 = vrot.lane.b32.xlu0 %v2177, 126
        %v2200 = vpop.permute.xlu0 %2199
        %2201 = vrot.lane.b32.xlu0 %v2178, 126
        %v2202 = vpop.permute.xlu0 %2201
        %2206 = vst.msk [vmem:[#allocation7 + $0xc0] sm:$0xff] %vm2098, %v2198
        %2207 = vst.msk [vmem:[#allocation7 + $0xc8] sm:$0xff] %vm2098, %v2200
        %2208 = vst.msk [vmem:[#allocation7 + $0xd0] sm:$0xff] %vm2098, %v2202
        %v2209 = vld [vmem:[#allocation7] sm:$0xff]
        %v2210 = vld [vmem:[#allocation7 + $0x8] sm:$0xff]
        %v2211 = vld [vmem:[#allocation7 + $0x10] sm:$0xff]
        %v2212 = vld [vmem:[#allocation7 + $0x18] sm:$0xff]
        %v2213 = vld [vmem:[#allocation7 + $0x20] sm:$0xff]
        %v2214 = vld [vmem:[#allocation7 + $0x28] sm:$0xff]
        %v2215 = vld [vmem:[#allocation7 + $0x30] sm:$0xff]
        %v2216 = vld [vmem:[#allocation7 + $0x38] sm:$0xff]
        %v2217 = vld [vmem:[#allocation7 + $0x40] sm:$0xff]
        %v2218 = vld [vmem:[#allocation7 + $0x48] sm:$0xff]
        %v2219 = vld [vmem:[#allocation7 + $0x50] sm:$0xff]
        %v2220 = vld [vmem:[#allocation7 + $0x58] sm:$0xff]
        %v2221 = vld [vmem:[#allocation7 + $0x60] sm:$0xff]
        %v2222 = vld [vmem:[#allocation7 + $0x68] sm:$0xff]
        %v2223 = vld [vmem:[#allocation7 + $0x70] sm:$0xff]
        %v2224 = vld [vmem:[#allocation7 + $0x78] sm:$0xff]
        %v2225 = vld [vmem:[#allocation7 + $0x80] sm:$0xff]
        %v2226 = vld [vmem:[#allocation7 + $0x88] sm:$0xff]
        %v2227 = vld [vmem:[#allocation7 + $0x90] sm:$0xff]
        %v2228 = vld [vmem:[#allocation7 + $0x98] sm:$0xff]
        %v2229 = vld [vmem:[#allocation7 + $0xa0] sm:$0xff]
        %v2230 = vld [vmem:[#allocation7 + $0xa8] sm:$0xff]
        %v2231 = vld [vmem:[#allocation7 + $0xb0] sm:$0xff]
        %v2232 = vld [vmem:[#allocation7 + $0xb8] sm:$0xff]
        %v2233 = vld [vmem:[#allocation7 + $0xc0] sm:$0xff]
        %v2234 = vld [vmem:[#allocation7 + $0xc8] sm:$0xff]
        %v2235 = vld [vmem:[#allocation7 + $0xd0] sm:$0xff]
        %v2236 = vpack.c.bf16 %v2210, %v2209
        %v2237 = vpack.c.bf16 %v2212, %v2211
        %v2238 = vpack.c.bf16 %v2214, %v2213
        %v2239 = vpack.c.bf16 %v2216, %v2215
        %v2240 = vpack.c.bf16 %v2218, %v2217
        %v2241 = vpack.c.bf16 %v2220, %v2219
        %v2242 = vpack.c.bf16 %v2222, %v2221
        %v2243 = vpack.c.bf16 %v2224, %v2223
        %v2244 = vpack.c.bf16 %v2226, %v2225
        %v2245 = vpack.c.bf16 %v2228, %v2227
        %v2246 = vpack.c.bf16 %v2230, %v2229
        %v2247 = vpack.c.bf16 %v2232, %v2231
        %v2248 = vpack.c.bf16 %v2234, %v2233
        %v2249 = vpack.c.bf16 %v2235, %v2235
        %2251 = vset.pattern.permute.xlu0 0
        %2252 = vperm.xlu0 %2251, %v2070
        %v2253 = vpop.permute.xlu0 %2252
        %2256 = vset.pattern.permute.xlu0 0
        %2257 = vperm.xlu0 %2256, %v2071
        %v2258 = vpop.permute.xlu0 %2257
        %2261 = vset.pattern.permute.xlu0 0
        %2262 = vperm.xlu0 %2261, %v2072
        %v2263 = vpop.permute.xlu0 %2262
        %v2268 = vunpack.c.l.b16 %v2067
        %v2269 = vunpack.c.h.b16 %v2067
        %v2270 = vunpack.c.l.b16 %v2068
        %v2271 = vunpack.c.h.b16 %v2068
        %v2272 = vunpack.c.l.b16 %v2069
        %v2273 = vunpack.c.h.b16 %v2069
        %v2274 = vpack.c.b16 %v2270, %v2268
        %v2275 = vpack.c.b16 %v2271, %v2269
        %v2276 = vpack.c.b16 %v2272, %v2272
        %v2277 = vpack.c.b16 %v2273, %v2273
        %vm2280 = vcmask 719872
        %v2282 = vsel %vm2280, %v2275, 0
        %v2285 = vsel %vm2280, %v2277, 0
        %vm2287 = vcmask 1043456
        %v2289 = vsel %vm2287, %v2249, 0
        %2291 = vmatpush.bf16.msra.mxu0 %v2243
        %2292 = vmatpush.bf16.msra.mxu0 %v2242
        %2293 = vmatpush.bf16.msra.mxu0 %v2241
        %2294 = vmatpush.bf16.msra.mxu0 %v2240
        %2295 = vmatpush.bf16.msra.mxu0 %v2239
        %2296 = vmatpush.bf16.msra.mxu0 %v2238
        %2297 = vmatpush.bf16.msra.mxu0 %v2237
        %2298 = vmatpush.bf16.msra.mxu0 %v2236
        %2299 = vmatmul.bf16.gmra.mxu0 %v2274
        %v2300 = vpop.f32.mrf.mxu0
        %v2301 = vadd.f32 %v2253, %v2300
        %v2302 = vpop.f32.mrf.mxu0
        %v2303 = vadd.f32 %v2258, %v2302
        %2304 = vmatmul.bf16.gmra.mxu0 %v2276
        %v2305 = vpop.f32.mrf.mxu0
        %v2306 = vadd.f32 %v2263, %v2305
        %v2307 = vpop.f32.mrf.mxu0
        %2308 = vdwg.mxu0
        %2309 = vmatpush.bf16.msra.mxu0 0
        %2310 = vmatpush.bf16.msra.mxu0 0
        %2311 = vmatpush.bf16.msra.mxu0 %v2289
        %2312 = vmatpush.bf16.msra.mxu0 %v2248
        %2313 = vmatpush.bf16.msra.mxu0 %v2247
        %2314 = vmatpush.bf16.msra.mxu0 %v2246
        %2315 = vmatpush.bf16.msra.mxu0 %v2245
        %2316 = vmatpush.bf16.msra.mxu0 %v2244
        %2317 = vmatmul.bf16.gmra.mxu0 %v2282
        %v2318 = vpop.f32.mrf.mxu0
        %v2319 = vadd.f32 %v2301, %v2318
        %v2320 = vpop.f32.mrf.mxu0
        %v2321 = vadd.f32 %v2303, %v2320
        %2322 = vmatmul.bf16.gmra.mxu0 %v2285
        %v2323 = vpop.f32.mrf.mxu0
        %v2324 = vadd.f32 %v2306, %v2323
        %v2325 = vpop.f32.mrf.mxu0
        %2326 = vdwg.mxu0
        %v2327 = vmax.f32 %v2319, 0.0
        %v2328 = vmax.f32 %v2321, 0.0
        %v2329 = vmax.f32 %v2324, 0.0
        %2330 = vset.pattern.permute.xlu0 1
        %2331 = vperm.xlu0 %2330, %v2070
        %v2332 = vpop.permute.xlu0 %2331
        %2334 = vset.pattern.permute.xlu0 1
        %2335 = vperm.xlu0 %2334, %v2071
        %v2336 = vpop.permute.xlu0 %2335
        %2338 = vset.pattern.permute.xlu0 1
        %2339 = vperm.xlu0 %2338, %v2072
        %v2340 = vpop.permute.xlu0 %2339
        %v2342 = vmul.f32 %v2327, %v2332
        %v2343 = vmul.f32 %v2328, %v2336
        %v2344 = vmul.f32 %v2329, %v2340
        %2345 = vset.pattern.permute.xlu0 2
        %2346 = vperm.xlu0 %2345, %v2070
        %v2347 = vpop.permute.xlu0 %2346
        %2349 = vset.pattern.permute.xlu0 2
        %2350 = vperm.xlu0 %2349, %v2071
        %v2351 = vpop.permute.xlu0 %2350
        %2353 = vset.pattern.permute.xlu0 2
        %2354 = vperm.xlu0 %2353, %v2072
        %v2355 = vpop.permute.xlu0 %2354
        %v2357 = vadd.f32 %v2342, %v2347
        %v2358 = vadd.f32 %v2343, %v2351
        %v2359 = vadd.f32 %v2344, %v2355
        %v2360 = vld [vmem:[%s2132] sm:$0xf]
        %v2361 = vld [vmem:[%s2132 + $0x4] sm:$0xf]
        %v2362 = vld [vmem:[%s2132 + $0x8] sm:$0xf]
        %v2363 = vunpack.c.l.bf16 %v2360
        %v2364 = vunpack.c.l.bf16 %v2361
        %v2365 = vunpack.c.l.bf16 %v2362
        %2366 = vst.msk [vmem:[#allocation7] sm:$0xff] %vm2098, %v2363
        %2367 = vst.msk [vmem:[#allocation7 + $0x8] sm:$0xff] %vm2098, %v2364
        %2368 = vst.msk [vmem:[#allocation7 + $0x10] sm:$0xff] %vm2098, %v2365
        %2372 = vrot.lane.b32.xlu0 %v2363, 127
        %v2373 = vpop.permute.xlu0 %2372
        %2374 = vrot.lane.b32.xlu0 %v2364, 127
        %v2375 = vpop.permute.xlu0 %2374
        %2376 = vrot.lane.b32.xlu0 %v2365, 127
        %v2377 = vpop.permute.xlu0 %2376
        %2381 = vst.msk [vmem:[#allocation7 + $0x18] sm:$0xff] %vm2098, %v2373
        %2382 = vst.msk [vmem:[#allocation7 + $0x20] sm:$0xff] %vm2098, %v2375
        %2383 = vst.msk [vmem:[#allocation7 + $0x28] sm:$0xff] %vm2098, %v2377
        %2384 = vrot.lane.b32.xlu0 %v2363, 126
        %v2385 = vpop.permute.xlu0 %2384
        %2386 = vrot.lane.b32.xlu0 %v2364, 126
        %v2387 = vpop.permute.xlu0 %2386
        %2388 = vrot.lane.b32.xlu0 %v2365, 126
        %v2389 = vpop.permute.xlu0 %2388
        %2393 = vst.msk [vmem:[#allocation7 + $0x30] sm:$0xff] %vm2098, %v2385
        %2394 = vst.msk [vmem:[#allocation7 + $0x38] sm:$0xff] %vm2098, %v2387
        %2395 = vst.msk [vmem:[#allocation7 + $0x40] sm:$0xff] %vm2098, %v2389
        %v2396 = vld [vmem:[%s2172] sm:$0xf]
        %v2397 = vld [vmem:[%s2172 + $0x4] sm:$0xf]
        %v2398 = vld [vmem:[%s2172 + $0x8] sm:$0xf]
        %v2399 = vunpack.c.l.bf16 %v2396
        %v2400 = vunpack.c.l.bf16 %v2397
        %v2401 = vunpack.c.l.bf16 %v2398
        %2402 = vst.msk [vmem:[#allocation7 + $0x48] sm:$0xff] %vm2098, %v2399
        %2403 = vst.msk [vmem:[#allocation7 + $0x50] sm:$0xff] %vm2098, %v2400
        %2404 = vst.msk [vmem:[#allocation7 + $0x58] sm:$0xff] %vm2098, %v2401
        %2408 = vrot.lane.b32.xlu0 %v2399, 127
        %v2409 = vpop.permute.xlu0 %2408
        %2410 = vrot.lane.b32.xlu0 %v2400, 127
        %v2411 = vpop.permute.xlu0 %2410
        %2412 = vrot.lane.b32.xlu0 %v2401, 127
        %v2413 = vpop.permute.xlu0 %2412
        %2417 = vst.msk [vmem:[#allocation7 + $0x60] sm:$0xff] %vm2098, %v2409
        %2418 = vst.msk [vmem:[#allocation7 + $0x68] sm:$0xff] %vm2098, %v2411
        %2419 = vst.msk [vmem:[#allocation7 + $0x70] sm:$0xff] %vm2098, %v2413
        %2420 = vrot.lane.b32.xlu0 %v2399, 126
        %v2421 = vpop.permute.xlu0 %2420
        %2422 = vrot.lane.b32.xlu0 %v2400, 126
        %v2423 = vpop.permute.xlu0 %2422
        %2424 = vrot.lane.b32.xlu0 %v2401, 126
        %v2425 = vpop.permute.xlu0 %2424
        %2429 = vst.msk [vmem:[#allocation7 + $0x78] sm:$0xff] %vm2098, %v2421
        %2430 = vst.msk [vmem:[#allocation7 + $0x80] sm:$0xff] %vm2098, %v2423
        %2431 = vst.msk [vmem:[#allocation7 + $0x88] sm:$0xff] %vm2098, %v2425
        %s2432 = sadd.s32 %s2088, 3
        %s2433 = smul.u32 %s2432, 3
        %s2434 = smul.addr %s2433, 4
        %s2435 = scalar_lea.vmem [#allocation5], %s2434
        %v2436 = vld [vmem:[%s2435] sm:$0xf]
        %v2437 = vld [vmem:[%s2435 + $0x4] sm:$0xf]
        %v2438 = vld [vmem:[%s2435 + $0x8] sm:$0xf]
        %v2439 = vunpack.c.l.bf16 %v2436
        %v2440 = vunpack.c.l.bf16 %v2437
        %v2441 = vunpack.c.l.bf16 %v2438
        %2442 = vst.msk [vmem:[#allocation7 + $0x90] sm:$0xff] %vm2098, %v2439
        %2443 = vst.msk [vmem:[#allocation7 + $0x98] sm:$0xff] %vm2098, %v2440
        %2444 = vst.msk [vmem:[#allocation7 + $0xa0] sm:$0xff] %vm2098, %v2441
        %2448 = vrot.lane.b32.xlu0 %v2439, 127
        %v2449 = vpop.permute.xlu0 %2448
        %2450 = vrot.lane.b32.xlu0 %v2440, 127
        %v2451 = vpop.permute.xlu0 %2450
        %2452 = vrot.lane.b32.xlu0 %v2441, 127
        %v2453 = vpop.permute.xlu0 %2452
        %2457 = vst.msk [vmem:[#allocation7 + $0xa8] sm:$0xff] %vm2098, %v2449
        %2458 = vst.msk [vmem:[#allocation7 + $0xb0] sm:$0xff] %vm2098, %v2451
        %2459 = vst.msk [vmem:[#allocation7 + $0xb8] sm:$0xff] %vm2098, %v2453
        %2460 = vrot.lane.b32.xlu0 %v2439, 126
        %v2461 = vpop.permute.xlu0 %2460
        %2462 = vrot.lane.b32.xlu0 %v2440, 126
        %v2463 = vpop.permute.xlu0 %2462
        %2464 = vrot.lane.b32.xlu0 %v2441, 126
        %v2465 = vpop.permute.xlu0 %2464
        %2469 = vst.msk [vmem:[#allocation7 + $0xc0] sm:$0xff] %vm2098, %v2461
        %2470 = vst.msk [vmem:[#allocation7 + $0xc8] sm:$0xff] %vm2098, %v2463
        %2471 = vst.msk [vmem:[#allocation7 + $0xd0] sm:$0xff] %vm2098, %v2465
        %v2472 = vld [vmem:[#allocation7] sm:$0xff]
        %v2473 = vld [vmem:[#allocation7 + $0x8] sm:$0xff]
        %v2474 = vld [vmem:[#allocation7 + $0x10] sm:$0xff]
        %v2475 = vld [vmem:[#allocation7 + $0x18] sm:$0xff]
        %v2476 = vld [vmem:[#allocation7 + $0x20] sm:$0xff]
        %v2477 = vld [vmem:[#allocation7 + $0x28] sm:$0xff]
        %v2478 = vld [vmem:[#allocation7 + $0x30] sm:$0xff]
        %v2479 = vld [vmem:[#allocation7 + $0x38] sm:$0xff]
        %v2480 = vld [vmem:[#allocation7 + $0x40] sm:$0xff]
        %v2481 = vld [vmem:[#allocation7 + $0x48] sm:$0xff]
        %v2482 = vld [vmem:[#allocation7 + $0x50] sm:$0xff]
        %v2483 = vld [vmem:[#allocation7 + $0x58] sm:$0xff]
        %v2484 = vld [vmem:[#allocation7 + $0x60] sm:$0xff]
        %v2485 = vld [vmem:[#allocation7 + $0x68] sm:$0xff]
        %v2486 = vld [vmem:[#allocation7 + $0x70] sm:$0xff]
        %v2487 = vld [vmem:[#allocation7 + $0x78] sm:$0xff]
        %v2488 = vld [vmem:[#allocation7 + $0x80] sm:$0xff]
        %v2489 = vld [vmem:[#allocation7 + $0x88] sm:$0xff]
        %v2490 = vld [vmem:[#allocation7 + $0x90] sm:$0xff]
        %v2491 = vld [vmem:[#allocation7 + $0x98] sm:$0xff]
        %v2492 = vld [vmem:[#allocation7 + $0xa0] sm:$0xff]
        %v2493 = vld [vmem:[#allocation7 + $0xa8] sm:$0xff]
        %v2494 = vld [vmem:[#allocation7 + $0xb0] sm:$0xff]
        %v2495 = vld [vmem:[#allocation7 + $0xb8] sm:$0xff]
        %v2496 = vld [vmem:[#allocation7 + $0xc0] sm:$0xff]
        %v2497 = vld [vmem:[#allocation7 + $0xc8] sm:$0xff]
        %v2498 = vld [vmem:[#allocation7 + $0xd0] sm:$0xff]
        %v2499 = vpack.c.bf16 %v2473, %v2472
        %v2500 = vpack.c.bf16 %v2475, %v2474
        %v2501 = vpack.c.bf16 %v2477, %v2476
        %v2502 = vpack.c.bf16 %v2479, %v2478
        %v2503 = vpack.c.bf16 %v2481, %v2480
        %v2504 = vpack.c.bf16 %v2483, %v2482
        %v2505 = vpack.c.bf16 %v2485, %v2484
        %v2506 = vpack.c.bf16 %v2487, %v2486
        %v2507 = vpack.c.bf16 %v2489, %v2488
        %v2508 = vpack.c.bf16 %v2491, %v2490
        %v2509 = vpack.c.bf16 %v2493, %v2492
        %v2510 = vpack.c.bf16 %v2495, %v2494
        %v2511 = vpack.c.bf16 %v2497, %v2496
        %v2512 = vpack.c.bf16 %v2498, %v2498
        %v2514 = vsel %vm2287, %v2512, 0
        %2516 = vmatpush.bf16.msra.mxu0 %v2506
        %2517 = vmatpush.bf16.msra.mxu0 %v2505
        %2518 = vmatpush.bf16.msra.mxu0 %v2504
        %2519 = vmatpush.bf16.msra.mxu0 %v2503
        %2520 = vmatpush.bf16.msra.mxu0 %v2502
        %2521 = vmatpush.bf16.msra.mxu0 %v2501
        %2522 = vmatpush.bf16.msra.mxu0 %v2500
        %2523 = vmatpush.bf16.msra.mxu0 %v2499
        %2524 = vmatmul.bf16.gmra.mxu0 %v2274
        %v2525 = vpop.f32.mrf.mxu0
        %v2526 = vadd.f32 %v2253, %v2525
        %v2527 = vpop.f32.mrf.mxu0
        %v2528 = vadd.f32 %v2258, %v2527
        %2529 = vmatmul.bf16.gmra.mxu0 %v2276
        %v2530 = vpop.f32.mrf.mxu0
        %v2531 = vadd.f32 %v2263, %v2530
        %v2532 = vpop.f32.mrf.mxu0
        %2533 = vdwg.mxu0
        %2534 = vmatpush.bf16.msra.mxu0 0
        %2535 = vmatpush.bf16.msra.mxu0 0
        %2536 = vmatpush.bf16.msra.mxu0 %v2514
        %2537 = vmatpush.bf16.msra.mxu0 %v2511
        %2538 = vmatpush.bf16.msra.mxu0 %v2510
        %2539 = vmatpush.bf16.msra.mxu0 %v2509
        %2540 = vmatpush.bf16.msra.mxu0 %v2508
        %2541 = vmatpush.bf16.msra.mxu0 %v2507
        %2542 = vmatmul.bf16.gmra.mxu0 %v2282
        %v2543 = vpop.f32.mrf.mxu0
        %v2544 = vadd.f32 %v2526, %v2543
        %v2545 = vpop.f32.mrf.mxu0
        %v2546 = vadd.f32 %v2528, %v2545
        %2547 = vmatmul.bf16.gmra.mxu0 %v2285
        %v2548 = vpop.f32.mrf.mxu0
        %v2549 = vadd.f32 %v2531, %v2548
        %v2550 = vpop.f32.mrf.mxu0
        %2551 = vdwg.mxu0
        %v2552 = vmax.f32 %v2544, 0.0
        %v2553 = vmax.f32 %v2546, 0.0
        %v2554 = vmax.f32 %v2549, 0.0
        %v2555 = vmul.f32 %v2552, %v2332
        %v2556 = vmul.f32 %v2553, %v2336
        %v2557 = vmul.f32 %v2554, %v2340
        %v2558 = vadd.f32 %v2555, %v2347
        %v2559 = vadd.f32 %v2556, %v2351
        %v2560 = vadd.f32 %v2557, %v2355
        %v2561 = vadd.f32 %v2357, %v2558
        %v2562 = vadd.f32 %v2358, %v2559
        %v2563 = vadd.f32 %v2359, %v2560
        %v2564 = vmul.f32 %v2561, 0.5
        %v2565 = vmul.f32 %v2562, 0.5
        %v2566 = vmul.f32 %v2563, 0.5
        %v2567 = vpack.c.bf16 %v2565, %v2564
        %v2568 = vpack.c.bf16 %v2566, %v2566
        %v2570 = vsel %vm2098, %v2567, 0
        %v2573 = vsel %vm2098, %v2568, 0
        %vm2575 = vcmask 1042432
        %v2577 = vsel %vm2575, %v2073, 0
        %2579 = vmatpush.bf16.msra.mxu0 0
        %2580 = vmatpush.bf16.msra.mxu0 0
        %2581 = vmatpush.bf16.msra.mxu0 0
        %2582 = vmatpush.bf16.msra.mxu0 0
        %2583 = vmatpush.bf16.msra.mxu0 0
        %2584 = vmatpush.bf16.msra.mxu0 0
        %2585 = vmatpush.bf16.msra.mxu0 0
        %2586 = vmatpush.bf16.msra.mxu0 %v2577
        %2587 = vmatmul.bf16.gmra.mxu0 %v2570
        %v2588 = vpop.f32.mrf.mxu0
        %v2589 = vadd.f32 0.0, %v2588
        %v2590 = vpop.f32.mrf.mxu0
        %v2591 = vadd.f32 0.0, %v2590
        %2592 = vmatmul.bf16.gmra.mxu0 %v2573
        %v2593 = vpop.f32.mrf.mxu0
        %v2594 = vadd.f32 0.0, %v2593
        %v2595 = vpop.f32.mrf.mxu0
        %2596 = vdwg.mxu0
        %v2597 = vpack.c.bf16 %v2589, %v2589
        %v2598 = vpack.c.bf16 %v2591, %v2591
        %v2599 = vpack.c.bf16 %v2594, %v2594
        %s2600 = sadd.s32 %s2083, 1
        %s2601 = smul.u32 %s2600, 3
        %s2602 = smul.addr %s2601, 4
        %s2603 = scalar_lea.vmem [#allocation6], %s2602
        %2604 = vst.msk [vmem:[%s2603] sm:$0xf] %vm2074, %v2597
        %2605 = vst.msk [vmem:[%s2603 + $0x4] sm:$0xf] %vm2074, %v2598
        %2606 = vst.msk [vmem:[%s2603 + $0x8] sm:$0xf] %vm2074, %v2599
      $region125: #{_lambda_.1} parent=91 // loop_footer
        %s2087 = sadd.s32 1, %s2083
      $region126: #{_lambda_.1} parent=91 // loop_footer_branch
        %2082 = sbr.rel target = $region122
      $region127: #{_lambda_.1} parent=91 // loop_exit
        _
      %s2607 = scalar_lea.vmem [#allocation6], 12
      %v2608 = vld [vmem:[%s2607] sm:$0xf]
      %v2609 = vld [vmem:[%s2607 + $0x4] sm:$0xf]
      %v2610 = vld [vmem:[%s2607 + $0x8] sm:$0xf]
      %v2611 = vunpack.c.l.bf16 %v2608
      %v2612 = vunpack.c.l.bf16 %v2609
      %v2613 = vunpack.c.l.bf16 %v2610
      %2617 = vrot.lane.b32.xlu0 %v2611, 127
      %v2618 = vpop.permute.xlu0 %2617
      %2619 = vrot.lane.b32.xlu0 %v2612, 127
      %v2620 = vpop.permute.xlu0 %2619
      %2621 = vrot.lane.b32.xlu0 %v2613, 127
      %v2622 = vpop.permute.xlu0 %2621
      %vm2626 = vcmask 7168
      %2627 = vst.msk [vmem:[#allocation7] sm:$0xff] %vm2626, %v2618
      %2628 = vst.msk [vmem:[#allocation7 + $0x8] sm:$0xff] %vm2626, %v2620
      %2629 = vst.msk [vmem:[#allocation7 + $0x10] sm:$0xff] %vm2626, %v2622
      %2630 = vrot.lane.b32.xlu0 %v2611, 126
      %v2631 = vpop.permute.xlu0 %2630
      %2632 = vrot.lane.b32.xlu0 %v2612, 126
      %v2633 = vpop.permute.xlu0 %2632
      %2634 = vrot.lane.b32.xlu0 %v2613, 126
      %v2635 = vpop.permute.xlu0 %2634
      %2639 = vst.msk [vmem:[#allocation7 + $0x18] sm:$0xff] %vm2626, %v2631
      %2640 = vst.msk [vmem:[#allocation7 + $0x20] sm:$0xff] %vm2626, %v2633
      %2641 = vst.msk [vmem:[#allocation7 + $0x28] sm:$0xff] %vm2626, %v2635
      %2642 = vrot.lane.b32.xlu0 %v2611, 125
      %v2643 = vpop.permute.xlu0 %2642
      %2644 = vrot.lane.b32.xlu0 %v2612, 125
      %v2645 = vpop.permute.xlu0 %2644
      %2646 = vrot.lane.b32.xlu0 %v2613, 125
      %v2647 = vpop.permute.xlu0 %2646
      %2651 = vst.msk [vmem:[#allocation7 + $0x30] sm:$0xff] %vm2626, %v2643
      %2652 = vst.msk [vmem:[#allocation7 + $0x38] sm:$0xff] %vm2626, %v2645
      %2653 = vst.msk [vmem:[#allocation7 + $0x40] sm:$0xff] %vm2626, %v2647
      %s2654 = scalar_lea.vmem [#allocation6], 24
      %v2655 = vld [vmem:[%s2654] sm:$0xf]
      %v2656 = vld [vmem:[%s2654 + $0x4] sm:$0xf]
      %v2657 = vld [vmem:[%s2654 + $0x8] sm:$0xf]
      %v2658 = vunpack.c.l.bf16 %v2655
      %v2659 = vunpack.c.l.bf16 %v2656
      %v2660 = vunpack.c.l.bf16 %v2657
      %2664 = vrot.lane.b32.xlu0 %v2658, 127
      %v2665 = vpop.permute.xlu0 %2664
      %2666 = vrot.lane.b32.xlu0 %v2659, 127
      %v2667 = vpop.permute.xlu0 %2666
      %2668 = vrot.lane.b32.xlu0 %v2660, 127
      %v2669 = vpop.permute.xlu0 %2668
      %2673 = vst.msk [vmem:[#allocation7 + $0x48] sm:$0xff] %vm2626, %v2665
      %2674 = vst.msk [vmem:[#allocation7 + $0x50] sm:$0xff] %vm2626, %v2667
      %2675 = vst.msk [vmem:[#allocation7 + $0x58] sm:$0xff] %vm2626, %v2669
      %2676 = vrot.lane.b32.xlu0 %v2658, 126
      %v2677 = vpop.permute.xlu0 %2676
      %2678 = vrot.lane.b32.xlu0 %v2659, 126
      %v2679 = vpop.permute.xlu0 %2678
      %2680 = vrot.lane.b32.xlu0 %v2660, 126
      %v2681 = vpop.permute.xlu0 %2680
      %2685 = vst.msk [vmem:[#allocation7 + $0x60] sm:$0xff] %vm2626, %v2677
      %2686 = vst.msk [vmem:[#allocation7 + $0x68] sm:$0xff] %vm2626, %v2679
      %2687 = vst.msk [vmem:[#allocation7 + $0x70] sm:$0xff] %vm2626, %v2681
      %2688 = vrot.lane.b32.xlu0 %v2658, 125
      %v2689 = vpop.permute.xlu0 %2688
      %2690 = vrot.lane.b32.xlu0 %v2659, 125
      %v2691 = vpop.permute.xlu0 %2690
      %2692 = vrot.lane.b32.xlu0 %v2660, 125
      %v2693 = vpop.permute.xlu0 %2692
      %2697 = vst.msk [vmem:[#allocation7 + $0x78] sm:$0xff] %vm2626, %v2689
      %2698 = vst.msk [vmem:[#allocation7 + $0x80] sm:$0xff] %vm2626, %v2691
      %2699 = vst.msk [vmem:[#allocation7 + $0x88] sm:$0xff] %vm2626, %v2693
      %s2700 = scalar_lea.vmem [#allocation6], 36
      %v2701 = vld [vmem:[%s2700] sm:$0xf]
      %v2702 = vld [vmem:[%s2700 + $0x4] sm:$0xf]
      %v2703 = vld [vmem:[%s2700 + $0x8] sm:$0xf]
      %v2704 = vunpack.c.l.bf16 %v2701
      %v2705 = vunpack.c.l.bf16 %v2702
      %v2706 = vunpack.c.l.bf16 %v2703
      %2710 = vrot.lane.b32.xlu0 %v2704, 127
      %v2711 = vpop.permute.xlu0 %2710
      %2712 = vrot.lane.b32.xlu0 %v2705, 127
      %v2713 = vpop.permute.xlu0 %2712
      %2714 = vrot.lane.b32.xlu0 %v2706, 127
      %v2715 = vpop.permute.xlu0 %2714
      %2719 = vst.msk [vmem:[#allocation7 + $0x90] sm:$0xff] %vm2626, %v2711
      %2720 = vst.msk [vmem:[#allocation7 + $0x98] sm:$0xff] %vm2626, %v2713
      %2721 = vst.msk [vmem:[#allocation7 + $0xa0] sm:$0xff] %vm2626, %v2715
      %2722 = vrot.lane.b32.xlu0 %v2704, 126
      %v2723 = vpop.permute.xlu0 %2722
      %2724 = vrot.lane.b32.xlu0 %v2705, 126
      %v2725 = vpop.permute.xlu0 %2724
      %2726 = vrot.lane.b32.xlu0 %v2706, 126
      %v2727 = vpop.permute.xlu0 %2726
      %2731 = vst.msk [vmem:[#allocation7 + $0xa8] sm:$0xff] %vm2626, %v2723
      %2732 = vst.msk [vmem:[#allocation7 + $0xb0] sm:$0xff] %vm2626, %v2725
      %2733 = vst.msk [vmem:[#allocation7 + $0xb8] sm:$0xff] %vm2626, %v2727
      %2734 = vrot.lane.b32.xlu0 %v2704, 125
      %v2735 = vpop.permute.xlu0 %2734
      %2736 = vrot.lane.b32.xlu0 %v2705, 125
      %v2737 = vpop.permute.xlu0 %2736
      %2738 = vrot.lane.b32.xlu0 %v2706, 125
      %v2739 = vpop.permute.xlu0 %2738
      %2743 = vst.msk [vmem:[#allocation7 + $0xc0] sm:$0xff] %vm2626, %v2735
      %2744 = vst.msk [vmem:[#allocation7 + $0xc8] sm:$0xff] %vm2626, %v2737
      %2745 = vst.msk [vmem:[#allocation7 + $0xd0] sm:$0xff] %vm2626, %v2739
      %v2746 = vld [vmem:[#allocation7] sm:$0xff]
      %v2747 = vld [vmem:[#allocation7 + $0x8] sm:$0xff]
      %v2748 = vld [vmem:[#allocation7 + $0x10] sm:$0xff]
      %v2749 = vld [vmem:[#allocation7 + $0x18] sm:$0xff]
      %v2750 = vld [vmem:[#allocation7 + $0x20] sm:$0xff]
      %v2751 = vld [vmem:[#allocation7 + $0x28] sm:$0xff]
      %v2752 = vld [vmem:[#allocation7 + $0x30] sm:$0xff]
      %v2753 = vld [vmem:[#allocation7 + $0x38] sm:$0xff]
      %v2754 = vld [vmem:[#allocation7 + $0x40] sm:$0xff]
      %v2755 = vld [vmem:[#allocation7 + $0x48] sm:$0xff]
      %v2756 = vld [vmem:[#allocation7 + $0x50] sm:$0xff]
      %v2757 = vld [vmem:[#allocation7 + $0x58] sm:$0xff]
      %v2758 = vld [vmem:[#allocation7 + $0x60] sm:$0xff]
      %v2759 = vld [vmem:[#allocation7 + $0x68] sm:$0xff]
      %v2760 = vld [vmem:[#allocation7 + $0x70] sm:$0xff]
      %v2761 = vld [vmem:[#allocation7 + $0x78] sm:$0xff]
      %v2762 = vld [vmem:[#allocation7 + $0x80] sm:$0xff]
      %v2763 = vld [vmem:[#allocation7 + $0x88] sm:$0xff]
      %v2764 = vld [vmem:[#allocation7 + $0x90] sm:$0xff]
      %v2765 = vld [vmem:[#allocation7 + $0x98] sm:$0xff]
      %v2766 = vld [vmem:[#allocation7 + $0xa0] sm:$0xff]
      %v2767 = vld [vmem:[#allocation7 + $0xa8] sm:$0xff]
      %v2768 = vld [vmem:[#allocation7 + $0xb0] sm:$0xff]
      %v2769 = vld [vmem:[#allocation7 + $0xb8] sm:$0xff]
      %v2770 = vld [vmem:[#allocation7 + $0xc0] sm:$0xff]
      %v2771 = vld [vmem:[#allocation7 + $0xc8] sm:$0xff]
      %v2772 = vld [vmem:[#allocation7 + $0xd0] sm:$0xff]
      %v2773 = vpack.c.bf16 %v2747, %v2746
      %v2774 = vpack.c.bf16 %v2749, %v2748
      %v2775 = vpack.c.bf16 %v2751, %v2750
      %v2776 = vpack.c.bf16 %v2753, %v2752
      %v2777 = vpack.c.bf16 %v2755, %v2754
      %v2778 = vpack.c.bf16 %v2757, %v2756
      %v2779 = vpack.c.bf16 %v2759, %v2758
      %v2780 = vpack.c.bf16 %v2761, %v2760
      %v2781 = vpack.c.bf16 %v2763, %v2762
      %v2782 = vpack.c.bf16 %v2765, %v2764
      %v2783 = vpack.c.bf16 %v2767, %v2766
      %v2784 = vpack.c.bf16 %v2769, %v2768
      %v2785 = vpack.c.bf16 %v2771, %v2770
      %v2786 = vpack.c.bf16 %v2772, %v2772
      %v2787 = vld [vmem:[%s6] sm:$0xff]
      %v2788 = vld [vmem:[%s6 + $0x8] sm:$0xff]
      %v2789 = vld [vmem:[%s6 + $0x10] sm:$0xff]
      %v2790 = vld [vmem:[%s6 + $0x18] sm:$0xff]
      %v2791 = vld [vmem:[%s12] sm:$0xff]
      %v2792 = vld [vmem:[%s12 + $0x8] sm:$0xff]
      %v2793 = vld [vmem:[%s12 + $0x10] sm:$0xff]
      %v2794 = vld [vmem:[%s12 + $0x18] sm:$0xff]
      %v2799 = vunpack.c.l.b16 %v2787
      %v2800 = vunpack.c.h.b16 %v2787
      %v2801 = vunpack.c.l.b16 %v2788
      %v2802 = vunpack.c.h.b16 %v2788
      %v2803 = vunpack.c.l.b16 %v2789
      %v2804 = vunpack.c.h.b16 %v2789
      %v2805 = vunpack.c.l.b16 %v2790
      %v2806 = vunpack.c.h.b16 %v2790
      %v2807 = vpack.c.b16 %v2801, %v2799
      %v2808 = vpack.c.b16 %v2802, %v2800
      %v2809 = vpack.c.b16 %v2805, %v2803
      %v2810 = vpack.c.b16 %v2806, %v2804
      %vm2813 = vcmask 719872
      %v2815 = vsel %vm2813, %v2808, 0
      %v2818 = vsel %vm2813, %v2810, 0
      %vm2820 = vcmask 1043456
      %v2822 = vsel %vm2820, %v2786, 0
      %2824 = vmatpush.bf16.msra.mxu0 %v2780
      %2825 = vmatpush.bf16.msra.mxu0 %v2779
      %2826 = vmatpush.bf16.msra.mxu0 %v2778
      %2827 = vmatpush.bf16.msra.mxu0 %v2777
      %2828 = vmatpush.bf16.msra.mxu0 %v2776
      %2829 = vmatpush.bf16.msra.mxu0 %v2775
      %2830 = vmatpush.bf16.msra.mxu0 %v2774
      %2831 = vmatpush.bf16.msra.mxu0 %v2773
      %2832 = vmatmul.bf16.gmra.mxu0 %v2807
      %v2833 = vpop.f32.mrf.mxu0
      %v2834 = vadd.f32 %v2791, %v2833
      %v2835 = vpop.f32.mrf.mxu0
      %v2836 = vadd.f32 %v2792, %v2835
      %2837 = vmatmul.bf16.gmra.mxu0 %v2809
      %v2838 = vpop.f32.mrf.mxu0
      %v2839 = vadd.f32 %v2793, %v2838
      %v2840 = vpop.f32.mrf.mxu0
      %v2841 = vadd.f32 %v2794, %v2840
      %2842 = vdwg.mxu0
      %2843 = vmatpush.bf16.msra.mxu0 0
      %2844 = vmatpush.bf16.msra.mxu0 0
      %2845 = vmatpush.bf16.msra.mxu0 %v2822
      %2846 = vmatpush.bf16.msra.mxu0 %v2785
      %2847 = vmatpush.bf16.msra.mxu0 %v2784
      %2848 = vmatpush.bf16.msra.mxu0 %v2783
      %2849 = vmatpush.bf16.msra.mxu0 %v2782
      %2850 = vmatpush.bf16.msra.mxu0 %v2781
      %2851 = vmatmul.bf16.gmra.mxu0 %v2815
      %v2852 = vpop.f32.mrf.mxu0
      %v2853 = vadd.f32 %v2834, %v2852
      %v2854 = vpop.f32.mrf.mxu0
      %v2855 = vadd.f32 %v2836, %v2854
      %2856 = vmatmul.bf16.gmra.mxu0 %v2818
      %v2857 = vpop.f32.mrf.mxu0
      %v2858 = vadd.f32 %v2839, %v2857
      %v2859 = vpop.f32.mrf.mxu0
      %v2860 = vadd.f32 %v2841, %v2859
      %2861 = vdwg.mxu0
      %2862 = vst.msk [vmem:[%s575] sm:$0xff] %vm2626, %v2853
      %2863 = vst.msk [vmem:[%s575 + $0x8] sm:$0xff] %vm2626, %v2855
      %2864 = vst.msk [vmem:[%s575 + $0x10] sm:$0xff] %vm2626, %v2858
      %2865 = vst.msk [vmem:[%s575 + $0x18] sm:$0xff] %vm2626, %v2860
      %p2866 = scmp.lt.s32.totalorder %s29, 1
      %s2867 = scalar_select %p2866, %s29, 1
      %s2868 = smul.addr %s2867, 4
      %s2869 = smul.addr %s2868, 8
      %s2870 = scalar_lea.vmem %s18, %s2869
      // Predicated region
      $region128: #{_lambda_.1} parent=91 // pred_check
        %p2871 = pneg %p430
      $region129: #{_lambda_.1} parent=91 // pred_check_branch
        %2873 = sbr.rel (%p2871) target = $region131
      $region130: #{_lambda_.1} parent=91 // pred_region
        _
      $region131: #{_lambda_.1} parent=91 // pred_fallthru
        _
    $region92: #{_lambda_.1} parent=5 // pred_fallthru
      _
    %p2874 = scmp.le.s32.totalorder 2, %s24
    // Predicated region
    $region132: #{_lambda_.1} parent=5 // pred_check
      %p2875 = pneg %p2874
    $region133: #{_lambda_.1} parent=5 // pred_check_branch
      %2877 = sbr.rel (%p2875) target = $region135
    $region134: #{_lambda_.1} parent=5 // pred_region
      %s2878 = ssub.s32 %s24, 2
      // Predicated region
      $region136: #{_lambda_.1} parent=134 // pred_check
        %p2879 = pneg %p436
      $region137: #{_lambda_.1} parent=134 // pred_check_branch
        %2881 = sbr.rel (%p2879) target = $region139
      $region138: #{_lambda_.1} parent=134 // pred_region
        %p2882 = scmp.lt.s32.totalorder %s30, 1
        %s2883 = scalar_select %p2882, %s30, 1
        %s2884 = smul.addr %s2883, 4
        %s2885 = smul.addr %s2884, 8
        %s2886 = scalar_lea.vmem %s18, %s2885
      $region139: #{_lambda_.1} parent=134 // pred_fallthru
        _
    $region135: #{_lambda_.1} parent=5 // pred_fallthru
      _
  $region6: #{_lambda_.1} parent=0 // loop_footer
    %s28 = sadd.s32 1, %s24
  $region7: #{_lambda_.1} parent=0 // loop_footer_branch
    %23 = sbr.rel target = $region3
  $region8: #{_lambda_.1} parent=0 // loop_exit
    _

</llo_original>
